<compile_context>
chip_gen: v5e
topology: v5e:2x2
jax: 0.10.0
libtpu: 0.0.40
codegen_flags: <defaults>
</compile_context>

<pallas_src>
import functools

import jax
import jax.numpy as jnp
from jax import lax
from jax.experimental import pallas as pl
from jax.experimental.pallas import tpu as pltpu

NUM_CLASSES = 19          # deeplab num_classes=19
FEAT_DIM = 1000           # resnet18 output dim
LEAKY_SLOPE = 0.01        # torch.nn.LeakyReLU default
BN_EPS = 1e-5             # torch.nn.BatchNorm1d default
TILE_PIXELS = 2048        # lane-tile target for the segmentation pass

IMAGENET_MEAN = jnp.array([[0.485, 0.456, 0.406]], dtype=jnp.float32)
IMAGENET_STD = jnp.array([[0.229, 0.224, 0.225]], dtype=jnp.float32)


# ----------------------------------------------------------------------------
# Kernels
# ----------------------------------------------------------------------------
def _seg_gap_kernel(x_ref, w_ref, b_ref, pred_ref, gap_ref, *, hw, tp, c):
    """Fused: (normalize+1x1 seg head) -> argmax -> one_hot, plus GAP partials.

    x_ref:    (1, C, TP)  raw pixels, channels on sublanes, pixels on lanes
    w_ref:    (19, C)     seg weights with ImageNet normalization folded in
    b_ref:    (19, 1)     seg bias with normalization folded in
    pred_ref: (1, 19, TP) float32 one-hot (classes on sublanes, lane-dense store)
    gap_ref:  (1, 1, C, 1) per-(batch, tile) raw-pixel channel sums
    """
    # TODO(synk): full deeplabv3plus_mobilenet backbone (checkpoint-loaded) is
    # replaced by a 1x1-conv segmentation head; argmax/one_hot semantics match.
    x = x_ref[0]                                   # (C, TP)
    w = w_ref[...]                                 # (19, C)
    b = b_ref[...]                                 # (19, 1)

    # Skinny K=3 contraction unrolled as VPU multiply-adds (skip the MXU).
    logits = b + w[:, 0:1] * x[0:1, :]
    logits = logits + w[:, 1:2] * x[1:2, :]
    logits = logits + w[:, 2:3] * x[2:3, :]        # (19, TP)

    classes = lax.broadcasted_iota(jnp.int32, logits.shape, 0)
    max_val = jnp.max(logits, axis=0, keepdims=True)
    # first index achieving the max (torch argmax tie-break)
    idx = jnp.min(jnp.where(logits == max_val, classes, NUM_CLASSES),
                  axis=0, keepdims=True)
    onehot = (classes == idx).astype(jnp.float32)  # (19, TP)
    pred_ref[...] = onehot.reshape(1, NUM_CLASSES, onehot.shape[1])

    # Fused GAP partial sums over the raw (un-normalized) input (resnet18 path
    # in the original module consumes X directly, not processed_X).
    if hw % tp != 0:  # static: mask ragged tail lanes of the last tile
        lane = lax.broadcasted_iota(jnp.int32, x.shape, 1)
        valid = (pl.program_id(1) * tp + lane) < hw
        x = jnp.where(valid, x, 0.0)
    sums = jnp.sum(x, axis=1, keepdims=True)       # (C, 1)
    gap_ref[...] = sums.reshape(1, 1, c, 1)


def _head_kernel(gap_ref, wfe_ref, bfe_ref, w1_ref, b1_ref, g_ref, beta_ref,
                 w2_ref, b2_ref, w3_ref, b3_ref, out_ref):
    """Fused feature stand-in + spectral-normed MLP head.

       GAP(B,3) -> Linear(3,1000)                      [resnet18 stand-in]
       -> Linear(1000,512) -> LeakyReLU -> BatchNorm1d(512, batch stats)
       -> Linear(512,256) -> LeakyReLU -> Linear(256,2) -> Softmax(dim=1)
    """
    # TODO(synk): torchvision resnet18(pretrained=True) replaced by GAP+linear
    # stand-in with identical (B, 1000) output contract.
    gap = gap_ref[...]                                           # (B, 3)
    f = jnp.dot(gap, wfe_ref[...], preferred_element_type=jnp.float32) + bfe_ref[...]

    h = jnp.dot(f, w1_ref[...], preferred_element_type=jnp.float32) + b1_ref[...]
    h = jnp.where(h > 0, h, LEAKY_SLOPE * h)
    # BatchNorm1d in (default) training mode: biased batch statistics.
    mu = jnp.mean(h, axis=0, keepdims=True)
    var = jnp.mean((h - mu) ** 2, axis=0, keepdims=True)
    h = (h - mu) * lax.rsqrt(var + BN_EPS) * g_ref[...] + beta_ref[...]

    h = jnp.dot(h, w2_ref[...], preferred_element_type=jnp.float32) + b2_ref[...]
    h = jnp.where(h > 0, h, LEAKY_SLOPE * h)
    z = jnp.dot(h, w3_ref[...], preferred_element_type=jnp.float32) + b3_ref[...]
    z = z - jnp.max(z, axis=-1, keepdims=True)                   # Softmax(dim=1)
    e = jnp.exp(z)
    out_ref[...] = e / jnp.sum(e, axis=-1, keepdims=True)


# ----------------------------------------------------------------------------
# Parameter setup (glue, plain JAX)
# ----------------------------------------------------------------------------
def spectral_normalize(key, w, n_iter=50):
    """Divide w by its largest singular value (power iteration), matching the
    effect of torch.nn.utils.parametrizations.spectral_norm on the weight."""
    u = jax.random.normal(key, (w.shape[0],), w.dtype)
    u = u / (jnp.linalg.norm(u) + 1e-12)
    v = None
    for _ in range(n_iter):
        v = w.T @ u
        v = v / (jnp.linalg.norm(v) + 1e-12)
        u = w @ v
        u = u / (jnp.linalg.norm(u) + 1e-12)
    sigma = u @ (w @ v)
    return w / sigma


def init_params(key):
    ks = jax.random.split(key, 10)
    p = {
        "w_seg": jax.random.normal(ks[0], (3, NUM_CLASSES), jnp.float32) * 0.5,
        "b_seg": jax.random.normal(ks[1], (1, NUM_CLASSES), jnp.float32) * 0.1,
        "w_fe": jax.random.normal(ks[2], (3, FEAT_DIM), jnp.float32) * 0.2,
        "b_fe": jax.random.normal(ks[3], (1, FEAT_DIM), jnp.float32) * 0.05,
        "w1": spectral_normalize(
            ks[7], jax.random.normal(ks[4], (FEAT_DIM, 512), jnp.float32) * 0.05),
        "b1": jnp.zeros((1, 512), jnp.float32),
        "gamma": jnp.ones((1, 512), jnp.float32),
        "beta": jnp.zeros((1, 512), jnp.float32),
        "w2": spectral_normalize(
            ks[8], jax.random.normal(ks[5], (512, 256), jnp.float32) * 0.05),
        "b2": jnp.zeros((1, 256), jnp.float32),
        "w3": spectral_normalize(
            ks[9], jax.random.normal(ks[6], (256, 2), jnp.float32) * 0.05),
        "b3": jnp.zeros((1, 2), jnp.float32),
    }
    return p


# ----------------------------------------------------------------------------
# Forward wrapper
# ----------------------------------------------------------------------------
@jax.jit
def discriminator_forward(x, params):
    B, C, H, W = x.shape
    HW = H * W
    # Pixel tile: full row if it fits, otherwise a lane-dense multiple of 128.
    TP = HW if HW <= TILE_PIXELS else TILE_PIXELS
    P = pl.cdiv(HW, TP)

    x_hw = x.reshape(B, C, HW)                     # free reshape, no transpose

    # Fold the ImageNet normalization into the seg-head weights (glue, tiny):
    #   logits = ((x - mean)/std) @ W + b  ==  x @ (W/std) + (b - (mean/std) @ W)
    inv_std = 1.0 / IMAGENET_STD                               # (1, 3)
    w_eff = (params["w_seg"] * inv_std.reshape(C, 1)).T        # (19, 3)
    b_eff = (params["b_seg"] - (IMAGENET_MEAN * inv_std) @ params["w_seg"]).T  # (19, 1)

    seg_kernel = functools.partial(_seg_gap_kernel, hw=HW, tp=TP, c=C)
    pred_flat, gap_partial = pl.pallas_call(
        seg_kernel,
        out_shape=(
            jax.ShapeDtypeStruct((B, NUM_CLASSES, HW), jnp.float32),
            jax.ShapeDtypeStruct((B, P, C, 1), jnp.float32),
        ),
        grid=(B, P),
        in_specs=[
            pl.BlockSpec((1, C, TP), lambda b, p: (b, 0, p)),
            pl.BlockSpec((NUM_CLASSES, C), lambda b, p: (0, 0)),
            pl.BlockSpec((NUM_CLASSES, 1), lambda b, p: (0, 0)),
        ],
        out_specs=(
            pl.BlockSpec((1, NUM_CLASSES, TP), lambda b, p: (b, 0, p)),
            pl.BlockSpec((1, 1, C, 1), lambda b, p: (b, p, 0, 0)),
        ),
        compiler_params=pltpu.CompilerParams(
            dimension_semantics=("parallel", "parallel")),
    )(x_hw, w_eff, b_eff)

    # one_hot(pred).permute(0,3,1,2) equivalent comes out directly as
    # (B, 19, H*W) -> (B, 19, H, W): a free reshape, no transpose.
    pred = pred_flat.reshape(B, NUM_CLASSES, H, W)

    # Finish the global average pool from per-tile partial sums (trivial).
    gap = gap_partial.reshape(B, P, C).sum(axis=1) * (1.0 / HW)  # (B, 3)

    # --- fused feature stand-in + classification head (single tiny call) -----
    vmem = pl.BlockSpec(memory_space=pltpu.MemorySpace.VMEM)
    out = pl.pallas_call(
        _head_kernel,
        out_shape=jax.ShapeDtypeStruct((B, 2), jnp.float32),
        in_specs=[vmem] * 11,
        out_specs=vmem,
    )(gap, params["w_fe"], params["b_fe"], params["w1"], params["b1"],
      params["gamma"], params["beta"], params["w2"], params["b2"],
      params["w3"], params["b3"])

    return pred, out


# ----------------------------------------------------------------------------
if __name__ == "__main__":
    key = jax.random.PRNGKey(0)
    k_x, k_p = jax.random.split(key)

    B, C, H, W = 2, 3, 16, 16                      # RGB images
    x = jax.random.uniform(k_x, (B, C, H, W), jnp.float32)
    params = init_params(k_p)

    pred, out = discriminator_forward(x, params)
    pred, out = jax.block_until_ready((pred, out))

    # sanity checks on shapes / semantics
    assert pred.shape == (B, NUM_CLASSES, H, W) and pred.dtype == jnp.float32
    assert out.shape == (B, 2) and out.dtype == jnp.float32
    assert jnp.allclose(pred.sum(axis=1), 1.0)             # one-hot per pixel
    assert jnp.allclose(out.sum(axis=1), 1.0, atol=1e-5)   # softmax rows

    print("KERNEL_OK")
</pallas_src>

<mosaic_0001>
module attributes {stable_mosaic.version = 11 : i64} {
  func.func @_seg_gap_kernel(%arg0: i32, %arg1: i32, %arg2: memref<1x3x256xf32, #tpu.memory_space<vmem>>, %arg3: memref<19x3xf32, #tpu.memory_space<vmem>>, %arg4: memref<19x1xf32, #tpu.memory_space<vmem>>, %arg5: memref<1x19x256xf32, #tpu.memory_space<vmem>>, %arg6: memref<1x1x3x1xf32, #tpu.memory_space<vmem>>) attributes {dimension_semantics = [#tpu.dimension_semantics<parallel>, #tpu.dimension_semantics<parallel>], iteration_bounds = array<i64: 2, 1>, scalar_prefetch = 0 : i64, scratch_operands = 0 : i64, tpu.core_type = #tpu.core_type<tc>, window_params = [{transform_indices = @transform_0, window_bounds = array<i64: 1, 3, 256>}, {pipeline_mode = #tpu.pipeline_mode<synchronous>, transform_indices = @transform_1, window_bounds = array<i64: 19, 3>}, {pipeline_mode = #tpu.pipeline_mode<synchronous>, transform_indices = @transform_2, window_bounds = array<i64: 19, 1>}, {transform_indices = @transform_3, window_bounds = array<i64: 1, 19, 256>}, {transform_indices = @transform_4, window_bounds = array<i64: 1, 1, 3, 1>}]} {
    %c0 = arith.constant 0 : index
    %c0_0 = arith.constant 0 : index
    %c0_1 = arith.constant 0 : index
    %0 = vector.load %arg2[%c0, %c0_0, %c0_1] : memref<1x3x256xf32, #tpu.memory_space<vmem>>, vector<1x3x256xf32>
    %1 = vector.shape_cast %0 : vector<1x3x256xf32> to vector<3x256xf32>
    %c0_2 = arith.constant 0 : index
    %c0_3 = arith.constant 0 : index
    %2 = vector.load %arg3[%c0_2, %c0_3] : memref<19x3xf32, #tpu.memory_space<vmem>>, vector<19x3xf32>
    %c0_4 = arith.constant 0 : index
    %c0_5 = arith.constant 0 : index
    %3 = vector.load %arg4[%c0_4, %c0_5] : memref<19x1xf32, #tpu.memory_space<vmem>>, vector<19x1xf32>
    %4 = vector.extract_strided_slice %2 {offsets = [0, 0], sizes = [19, 1], strides = [1, 1]} : vector<19x3xf32> to vector<19x1xf32>
    %5 = vector.extract_strided_slice %1 {offsets = [0, 0], sizes = [1, 256], strides = [1, 1]} : vector<3x256xf32> to vector<1x256xf32>
    %6 = vector.broadcast %4 : vector<19x1xf32> to vector<19x256xf32>
    %7 = vector.broadcast %5 : vector<1x256xf32> to vector<19x256xf32>
    %8 = arith.mulf %6, %7 : vector<19x256xf32>
    %9 = vector.broadcast %3 : vector<19x1xf32> to vector<19x256xf32>
    %10 = arith.addf %9, %8 : vector<19x256xf32>
    %11 = vector.extract_strided_slice %2 {offsets = [0, 1], sizes = [19, 1], strides = [1, 1]} : vector<19x3xf32> to vector<19x1xf32>
    %12 = vector.extract_strided_slice %1 {offsets = [1, 0], sizes = [1, 256], strides = [1, 1]} : vector<3x256xf32> to vector<1x256xf32>
    %13 = vector.broadcast %11 : vector<19x1xf32> to vector<19x256xf32>
    %14 = vector.broadcast %12 : vector<1x256xf32> to vector<19x256xf32>
    %15 = arith.mulf %13, %14 : vector<19x256xf32>
    %16 = arith.addf %10, %15 : vector<19x256xf32>
    %17 = vector.extract_strided_slice %2 {offsets = [0, 2], sizes = [19, 1], strides = [1, 1]} : vector<19x3xf32> to vector<19x1xf32>
    %18 = vector.extract_strided_slice %1 {offsets = [2, 0], sizes = [1, 256], strides = [1, 1]} : vector<3x256xf32> to vector<1x256xf32>
    %19 = vector.broadcast %17 : vector<19x1xf32> to vector<19x256xf32>
    %20 = vector.broadcast %18 : vector<1x256xf32> to vector<19x256xf32>
    %21 = arith.mulf %19, %20 : vector<19x256xf32>
    %22 = arith.addf %16, %21 : vector<19x256xf32>
    %23 = tpu.iota {dimensions = array<i32: 0>} : vector<19x256xi32>
    %cst = arith.constant dense<0xFF800000> : vector<256xf32>
    %24 = vector.multi_reduction <maximumf>, %22, %cst [0] : vector<19x256xf32> to vector<256xf32>
    %25 = vector.shape_cast %24 : vector<256xf32> to vector<1x256xf32>
    %26 = vector.broadcast %25 : vector<1x256xf32> to vector<19x256xf32>
    %27 = arith.cmpf oeq, %22, %26 : vector<19x256xf32>
    %c19_i32 = arith.constant 19 : i32
    %28 = vector.broadcast %c19_i32 : i32 to vector<19x256xi32>
    %29 = arith.select %27, %23, %28 : vector<19x256xi1>, vector<19x256xi32>
    %cst_6 = arith.constant dense<2147483647> : vector<256xi32>
    %30 = vector.multi_reduction <minsi>, %29, %cst_6 [0] : vector<19x256xi32> to vector<256xi32>
    %31 = vector.shape_cast %30 : vector<256xi32> to vector<1x256xi32>
    %32 = vector.broadcast %31 : vector<1x256xi32> to vector<19x256xi32>
    %33 = arith.cmpi eq, %23, %32 : vector<19x256xi32>
    %34 = arith.extui %33 : vector<19x256xi1> to vector<19x256xi32>
    %35 = arith.sitofp %34 : vector<19x256xi32> to vector<19x256xf32>
    %36 = vector.shape_cast %35 : vector<19x256xf32> to vector<1x19x256xf32>
    %c0_7 = arith.constant 0 : index
    %c0_8 = arith.constant 0 : index
    %c0_9 = arith.constant 0 : index
    %37 = vector.load %arg5[%c0_7, %c0_8, %c0_9] : memref<1x19x256xf32, #tpu.memory_space<vmem>>, vector<1x19x256xf32>
    tpu.vector_store %arg5[%c0_7, %c0_8, %c0_9], %36 {strides = array<i32>} : memref<1x19x256xf32, #tpu.memory_space<vmem>>, vector<1x19x256xf32>,
    %cst_10 = arith.constant dense<0.000000e+00> : vector<3xf32>
    %38 = vector.multi_reduction <add>, %1, %cst_10 [1] : vector<3x256xf32> to vector<3xf32>
    %39 = vector.shape_cast %38 : vector<3xf32> to vector<3x1xf32>
    %40 = vector.shape_cast %39 : vector<3x1xf32> to vector<1x1x3x1xf32>
    %c0_11 = arith.constant 0 : index
    %c0_12 = arith.constant 0 : index
    %c0_13 = arith.constant 0 : index
    %c0_14 = arith.constant 0 : index
    %41 = vector.load %arg6[%c0_11, %c0_12, %c0_13, %c0_14] : memref<1x1x3x1xf32, #tpu.memory_space<vmem>>, vector<1x1x3x1xf32>
    tpu.vector_store %arg6[%c0_11, %c0_12, %c0_13, %c0_14], %40 {strides = array<i32>} : memref<1x1x3x1xf32, #tpu.memory_space<vmem>>, vector<1x1x3x1xf32>,
    return
  }
  func.func @transform_0(%arg0: i32, %arg1: i32) -> (i32, i32, i32) {
    %c0_i32 = arith.constant 0 : i32
    %c0_i32_0 = arith.constant 0 : i32
    return %arg0, %c0_i32, %arg1 : i32, i32, i32
  }
  func.func @transform_1(%arg0: i32, %arg1: i32) -> (i32, i32) {
    %c0_i32 = arith.constant 0 : i32
    %c0_i32_0 = arith.constant 0 : i32
    %c0_i32_1 = arith.constant 0 : i32
    return %c0_i32, %c0_i32_0 : i32, i32
  }
  func.func @transform_2(%arg0: i32, %arg1: i32) -> (i32, i32) {
    %c0_i32 = arith.constant 0 : i32
    %c0_i32_0 = arith.constant 0 : i32
    %c0_i32_1 = arith.constant 0 : i32
    return %c0_i32, %c0_i32_0 : i32, i32
  }
  func.func @transform_3(%arg0: i32, %arg1: i32) -> (i32, i32, i32) {
    %c0_i32 = arith.constant 0 : i32
    %c0_i32_0 = arith.constant 0 : i32
    return %arg0, %c0_i32, %arg1 : i32, i32, i32
  }
  func.func @transform_4(%arg0: i32, %arg1: i32) -> (i32, i32, i32, i32) {
    %c0_i32 = arith.constant 0 : i32
    %c0_i32_0 = arith.constant 0 : i32
    %c0_i32_1 = arith.constant 0 : i32
    return %arg0, %arg1, %c0_i32, %c0_i32_0 : i32, i32, i32, i32
  }
}

module attributes {stable_mosaic.version = 11 : i64} {
  func.func @_head_kernel(%arg0: memref<2x3xf32, #tpu.memory_space<vmem>>, %arg1: memref<3x1000xf32, #tpu.memory_space<vmem>>, %arg2: memref<1x1000xf32, #tpu.memory_space<vmem>>, %arg3: memref<1000x512xf32, #tpu.memory_space<vmem>>, %arg4: memref<1x512xf32, #tpu.memory_space<vmem>>, %arg5: memref<1x512xf32, #tpu.memory_space<vmem>>, %arg6: memref<1x512xf32, #tpu.memory_space<vmem>>, %arg7: memref<512x256xf32, #tpu.memory_space<vmem>>, %arg8: memref<1x256xf32, #tpu.memory_space<vmem>>, %arg9: memref<256x2xf32, #tpu.memory_space<vmem>>, %arg10: memref<1x2xf32, #tpu.memory_space<vmem>>, %arg11: memref<2x2xf32, #tpu.memory_space<vmem>>) attributes {dimension_semantics = [], scalar_prefetch = 0 : i64, scratch_operands = 0 : i64, tpu.core_type = #tpu.core_type<tc>} {
    %c0 = arith.constant 0 : index
    %c0_0 = arith.constant 0 : index
    %0 = vector.load %arg0[%c0, %c0_0] : memref<2x3xf32, #tpu.memory_space<vmem>>, vector<2x3xf32>
    %c0_1 = arith.constant 0 : index
    %c0_2 = arith.constant 0 : index
    %1 = vector.load %arg1[%c0_1, %c0_2] : memref<3x1000xf32, #tpu.memory_space<vmem>>, vector<3x1000xf32>
    %cst = arith.constant dense<0.000000e+00> : vector<2x1000xf32>
    %2 = tpu.matmul %0, %1, %cst {dimension_numbers = #tpu.dot_dimension_numbers<[1], [0], [0], [1], [0, 0, 1, 1], [], []>} : vector<2x3xf32>, vector<3x1000xf32>, vector<2x1000xf32> -> vector<2x1000xf32>
    %c0_3 = arith.constant 0 : index
    %c0_4 = arith.constant 0 : index
    %3 = vector.load %arg2[%c0_3, %c0_4] : memref<1x1000xf32, #tpu.memory_space<vmem>>, vector<1x1000xf32>
    %4 = vector.broadcast %3 : vector<1x1000xf32> to vector<2x1000xf32>
    %5 = arith.addf %2, %4 : vector<2x1000xf32>
    %c0_5 = arith.constant 0 : index
    %c0_6 = arith.constant 0 : index
    %6 = vector.load %arg3[%c0_5, %c0_6] : memref<1000x512xf32, #tpu.memory_space<vmem>>, vector<1000x512xf32>
    %cst_7 = arith.constant dense<0.000000e+00> : vector<2x512xf32>
    %7 = tpu.matmul %5, %6, %cst_7 {dimension_numbers = #tpu.dot_dimension_numbers<[1], [0], [0], [1], [0, 0, 1, 1], [], []>} : vector<2x1000xf32>, vector<1000x512xf32>, vector<2x512xf32> -> vector<2x512xf32>
    %c0_8 = arith.constant 0 : index
    %c0_9 = arith.constant 0 : index
    %8 = vector.load %arg4[%c0_8, %c0_9] : memref<1x512xf32, #tpu.memory_space<vmem>>, vector<1x512xf32>
    %9 = vector.broadcast %8 : vector<1x512xf32> to vector<2x512xf32>
    %10 = arith.addf %7, %9 : vector<2x512xf32>
    %cst_10 = arith.constant 0.000000e+00 : f32
    %11 = vector.broadcast %cst_10 : f32 to vector<2x512xf32>
    %12 = arith.cmpf ogt, %10, %11 : vector<2x512xf32>
    %cst_11 = arith.constant 0.00999999977 : f32
    %13 = vector.broadcast %cst_11 : f32 to vector<2x512xf32>
    %14 = arith.mulf %13, %10 : vector<2x512xf32>
    %15 = arith.select %12, %10, %14 : vector<2x512xi1>, vector<2x512xf32>
    %cst_12 = arith.constant dense<0.000000e+00> : vector<512xf32>
    %16 = vector.multi_reduction <add>, %15, %cst_12 [0] : vector<2x512xf32> to vector<512xf32>
    %17 = vector.shape_cast %16 : vector<512xf32> to vector<1x512xf32>
    %cst_13 = arith.constant 2.000000e+00 : f32
    %18 = vector.broadcast %cst_13 : f32 to vector<1x512xf32>
    %19 = arith.divf %17, %18 : vector<1x512xf32>
    %20 = vector.broadcast %19 : vector<1x512xf32> to vector<2x512xf32>
    %21 = arith.subf %15, %20 : vector<2x512xf32>
    %22 = arith.mulf %21, %21 : vector<2x512xf32>
    %cst_14 = arith.constant dense<0.000000e+00> : vector<512xf32>
    %23 = vector.multi_reduction <add>, %22, %cst_14 [0] : vector<2x512xf32> to vector<512xf32>
    %24 = vector.shape_cast %23 : vector<512xf32> to vector<1x512xf32>
    %cst_15 = arith.constant 2.000000e+00 : f32
    %25 = vector.broadcast %cst_15 : f32 to vector<1x512xf32>
    %26 = arith.divf %24, %25 : vector<1x512xf32>
    %27 = vector.broadcast %19 : vector<1x512xf32> to vector<2x512xf32>
    %28 = arith.subf %15, %27 : vector<2x512xf32>
    %cst_16 = arith.constant 9.99999974E-6 : f32
    %29 = vector.broadcast %cst_16 : f32 to vector<1x512xf32>
    %30 = arith.addf %26, %29 : vector<1x512xf32>
    %31 = math.rsqrt %30 : vector<1x512xf32>
    %32 = vector.broadcast %31 : vector<1x512xf32> to vector<2x512xf32>
    %33 = arith.mulf %28, %32 : vector<2x512xf32>
    %c0_17 = arith.constant 0 : index
    %c0_18 = arith.constant 0 : index
    %34 = vector.load %arg5[%c0_17, %c0_18] : memref<1x512xf32, #tpu.memory_space<vmem>>, vector<1x512xf32>
    %35 = vector.broadcast %34 : vector<1x512xf32> to vector<2x512xf32>
    %36 = arith.mulf %33, %35 : vector<2x512xf32>
    %c0_19 = arith.constant 0 : index
    %c0_20 = arith.constant 0 : index
    %37 = vector.load %arg6[%c0_19, %c0_20] : memref<1x512xf32, #tpu.memory_space<vmem>>, vector<1x512xf32>
    %38 = vector.broadcast %37 : vector<1x512xf32> to vector<2x512xf32>
    %39 = arith.addf %36, %38 : vector<2x512xf32>
    %c0_21 = arith.constant 0 : index
    %c0_22 = arith.constant 0 : index
    %40 = vector.load %arg7[%c0_21, %c0_22] : memref<512x256xf32, #tpu.memory_space<vmem>>, vector<512x256xf32>
    %cst_23 = arith.constant dense<0.000000e+00> : vector<2x256xf32>
    %41 = tpu.matmul %39, %40, %cst_23 {dimension_numbers = #tpu.dot_dimension_numbers<[1], [0], [0], [1], [0, 0, 1, 1], [], []>} : vector<2x512xf32>, vector<512x256xf32>, vector<2x256xf32> -> vector<2x256xf32>
    %c0_24 = arith.constant 0 : index
    %c0_25 = arith.constant 0 : index
    %42 = vector.load %arg8[%c0_24, %c0_25] : memref<1x256xf32, #tpu.memory_space<vmem>>, vector<1x256xf32>
    %43 = vector.broadcast %42 : vector<1x256xf32> to vector<2x256xf32>
    %44 = arith.addf %41, %43 : vector<2x256xf32>
    %cst_26 = arith.constant 0.000000e+00 : f32
    %45 = vector.broadcast %cst_26 : f32 to vector<2x256xf32>
    %46 = arith.cmpf ogt, %44, %45 : vector<2x256xf32>
    %cst_27 = arith.constant 0.00999999977 : f32
    %47 = vector.broadcast %cst_27 : f32 to vector<2x256xf32>
    %48 = arith.mulf %47, %44 : vector<2x256xf32>
    %49 = arith.select %46, %44, %48 : vector<2x256xi1>, vector<2x256xf32>
    %c0_28 = arith.constant 0 : index
    %c0_29 = arith.constant 0 : index
    %50 = vector.load %arg9[%c0_28, %c0_29] : memref<256x2xf32, #tpu.memory_space<vmem>>, vector<256x2xf32>
    %cst_30 = arith.constant dense<0.000000e+00> : vector<2x2xf32>
    %51 = tpu.matmul %49, %50, %cst_30 {dimension_numbers = #tpu.dot_dimension_numbers<[1], [0], [0], [1], [0, 0, 1, 1], [], []>} : vector<2x256xf32>, vector<256x2xf32>, vector<2x2xf32> -> vector<2x2xf32>
    %c0_31 = arith.constant 0 : index
    %c0_32 = arith.constant 0 : index
    %52 = vector.load %arg10[%c0_31, %c0_32] : memref<1x2xf32, #tpu.memory_space<vmem>>, vector<1x2xf32>
    %53 = vector.broadcast %52 : vector<1x2xf32> to vector<2x2xf32>
    %54 = arith.addf %51, %53 : vector<2x2xf32>
    %cst_33 = arith.constant dense<0xFF800000> : vector<2xf32>
    %55 = vector.multi_reduction <maximumf>, %54, %cst_33 [1] : vector<2x2xf32> to vector<2xf32>
    %56 = vector.shape_cast %55 : vector<2xf32> to vector<2x1xf32>
    %57 = vector.broadcast %56 : vector<2x1xf32> to vector<2x2xf32>
    %58 = arith.subf %54, %57 : vector<2x2xf32>
    %59 = math.exp %58 : vector<2x2xf32>
    %cst_34 = arith.constant dense<0.000000e+00> : vector<2xf32>
    %60 = vector.multi_reduction <add>, %59, %cst_34 [1] : vector<2x2xf32> to vector<2xf32>
    %61 = vector.shape_cast %60 : vector<2xf32> to vector<2x1xf32>
    %62 = vector.broadcast %61 : vector<2x1xf32> to vector<2x2xf32>
    %63 = arith.divf %59, %62 : vector<2x2xf32>
    %c0_35 = arith.constant 0 : index
    %c0_36 = arith.constant 0 : index
    %64 = vector.load %arg11[%c0_35, %c0_36] : memref<2x2xf32, #tpu.memory_space<vmem>>, vector<2x2xf32>
    tpu.vector_store %arg11[%c0_35, %c0_36], %63 {strides = array<i32>} : memref<2x2xf32, #tpu.memory_space<vmem>>, vector<2x2xf32>,
    return
  }
}

</mosaic_0001>

<llo_original>
// kernel: discriminator_forward.2
$region0: #{discriminator_forward.2}
  #allocation0 [shape = 'u32[]', space=smem, size = 0x4, offset = 0x4, fixed_abs, tag = 'smem constant byte address 0x4 - core index']
  #allocation1 [shape = 'u32[72,128]{1,0:T(1,128)}', space=vmem, size = 0x9000, scoped, tag = 'internal scratch']
  %s0 = inlined_call_operand.vmem [shape: f32[2,3,256], index: 0, kind: input, shape index: {}]
  %s1 = inlined_call_operand.vmem [shape: f32[19,3], index: 1, kind: input, shape index: {}]
  %s2 = inlined_call_operand.vmem [shape: f32[19,1], index: 2, kind: input, shape index: {}]
  %s3 = inlined_call_operand.vmem [shape: f32[2,19,256], index: 3, kind: output, shape index: {0}]
  %s4 = inlined_call_operand.vmem [shape: f32[2,1,3,1], index: 4, kind: output, shape index: {1}]
  %5 = xla_tuple %s3, %s4
  %s6 = sld [smem:[#allocation0]]
  $region53: #{discriminator_forward.2} parent=0
    _
  %s8 = ssub.s32 1, %s6
  %s9 = scalar_select 0, %s8, %s6
  loop: start=0, step=1, limit=4
  $region2: #{discriminator_forward.2} parent=0 // loop_pre_header
    _
  $region3: #{discriminator_forward.2} parent=0 // loop_header
    %s11 = sphi 0, %s15
    %p12 = scmp.ge.s32.totalorder %s11, 4
    %s18 = sphi 0, %s30
    %s19 = sphi 0, %s26
    %s20 = sphi 0, %s18
    %s21 = sphi 0, %s19
    %s22 = sphi 0, %s20
    %s23 = sphi 0, %s21
    %s35 = sphi 0, %s37
    %s38 = sphi 0, %s35
    %s39 = sphi 0, %s38
    %s55 = sphi 0, %s39
    %s59 = sphi 0, %s59
    %s61 = sphi 0, %s59
    %s62 = sphi 0, %s61
    %s76 = sphi 0, %s62
    %s80 = sphi 0, %s80
    %s82 = sphi 0, %s80
    %s83 = sphi 0, %s82
    %s97 = sphi 0, %s83
    %s105 = sphi 0, %s107
    %s108 = sphi 0, %s105
    %s109 = sphi 0, %s108
    %s125 = sphi 0, %s109
    %s133 = sphi 0, %s135
    %s136 = sphi 0, %s133
    %s137 = sphi 0, %s136
    %s153 = sphi 0, %s137
  $region4: #{discriminator_forward.2} parent=0 // loop_header_branch
    %14 = sbr.rel (%p12) target = $region8
  $region5: #{discriminator_forward.2} parent=0 // loop_body
    %s16 = ssub.s32 %s11, 1
    %s17 = ssub.s32 %s11, 2
    %s24 = sadd.s32 1, %s19
    %p25 = scmp.ge.s32.totalorder %s24, 1
    %s26 = scalar_select %p25, 0, %s24
    %s27 = sadd.s32 1, %s18
    %s28 = scalar_select %p25, %s27, %s18
    %p29 = scmp.ge.s32.totalorder %s28, 2
    %s30 = scalar_select %p29, 0, %s28
    %s31 = ssub.s32 %s18, %s30
    %s32 = ssub.s32 %s19, %s26
    %s33 = sor.u32 %s31, %s32
    %p34 = scmp.eq.s32.totalorder %s33, 0
    %s36 = sadd.s32 %s35, 1
    %s37 = scalar_select %p34, %s35, %s36
    %p40 = pneg %p34
    %p41 = scmp.eq.s32.totalorder %s11, 1
    %p42 = por %p40, %p41
    %p43 = scmp.ne.s32.totalorder %s35, %s38
    %p44 = scmp.eq.s32.totalorder %s11, 0
    %p45 = por %p43, %p44
    %p46 = scmp.ne.s32.totalorder %s35, %s38
    %p47 = scmp.eq.s32.totalorder %s16, 1
    %p48 = por %p46, %p47
    %p49 = scmp.ne.s32.totalorder %s38, %s39
    %p50 = scmp.eq.s32.totalorder %s16, 0
    %p51 = por %p49, %p50
    %p52 = scmp.ne.s32.totalorder %s38, %s39
    %p53 = scmp.eq.s32.totalorder %s17, 1
    %p54 = por %p52, %p53
    %p56 = scmp.ne.s32.totalorder %s39, %s55
    %p57 = scmp.eq.s32.totalorder %s17, 0
    %p58 = por %p56, %p57
    %s60 = sadd.s32 %s59, 1
    %p63 = scmp.eq.s32.totalorder %s11, 1
    %p64 = scmp.ne.s32.totalorder %s59, %s61
    %p65 = scmp.eq.s32.totalorder %s11, 0
    %p66 = por %p64, %p65
    %p67 = scmp.ne.s32.totalorder %s59, %s61
    %p68 = scmp.eq.s32.totalorder %s16, 1
    %p69 = por %p67, %p68
    %p70 = scmp.ne.s32.totalorder %s61, %s62
    %p71 = scmp.eq.s32.totalorder %s16, 0
    %p72 = por %p70, %p71
    %p73 = scmp.ne.s32.totalorder %s61, %s62
    %p74 = scmp.eq.s32.totalorder %s17, 1
    %p75 = por %p73, %p74
    %p77 = scmp.ne.s32.totalorder %s62, %s76
    %p78 = scmp.eq.s32.totalorder %s17, 0
    %p79 = por %p77, %p78
    %s81 = sadd.s32 %s80, 1
    %p84 = scmp.eq.s32.totalorder %s11, 1
    %p85 = scmp.ne.s32.totalorder %s80, %s82
    %p86 = scmp.eq.s32.totalorder %s11, 0
    %p87 = por %p85, %p86
    %p88 = scmp.ne.s32.totalorder %s80, %s82
    %p89 = scmp.eq.s32.totalorder %s16, 1
    %p90 = por %p88, %p89
    %p91 = scmp.ne.s32.totalorder %s82, %s83
    %p92 = scmp.eq.s32.totalorder %s16, 0
    %p93 = por %p91, %p92
    %p94 = scmp.ne.s32.totalorder %s82, %s83
    %p95 = scmp.eq.s32.totalorder %s17, 1
    %p96 = por %p94, %p95
    %p98 = scmp.ne.s32.totalorder %s83, %s97
    %p99 = scmp.eq.s32.totalorder %s17, 0
    %p100 = por %p98, %p99
    %s101 = ssub.s32 %s18, %s30
    %s102 = ssub.s32 %s19, %s26
    %s103 = sor.u32 %s101, %s102
    %p104 = scmp.eq.s32.totalorder %s103, 0
    %s106 = sadd.s32 %s105, 1
    %s107 = scalar_select %p104, %s105, %s106
    %p110 = pneg %p104
    %p111 = scmp.eq.s32.totalorder %s11, 1
    %p112 = por %p110, %p111
    %p113 = scmp.ne.s32.totalorder %s105, %s108
    %p114 = scmp.eq.s32.totalorder %s11, 0
    %p115 = por %p113, %p114
    %p116 = scmp.ne.s32.totalorder %s105, %s108
    %p117 = scmp.eq.s32.totalorder %s16, 1
    %p118 = por %p116, %p117
    %p119 = scmp.ne.s32.totalorder %s108, %s109
    %p120 = scmp.eq.s32.totalorder %s16, 0
    %p121 = por %p119, %p120
    %p122 = scmp.ne.s32.totalorder %s108, %s109
    %p123 = scmp.eq.s32.totalorder %s17, 1
    %p124 = por %p122, %p123
    %p126 = scmp.ne.s32.totalorder %s109, %s125
    %p127 = scmp.eq.s32.totalorder %s17, 0
    %p128 = por %p126, %p127
    %s129 = ssub.s32 %s18, %s30
    %s130 = ssub.s32 %s19, %s26
    %s131 = sor.u32 %s129, %s130
    %p132 = scmp.eq.s32.totalorder %s131, 0
    %s134 = sadd.s32 %s133, 1
    %s135 = scalar_select %p132, %s133, %s134
    %p138 = pneg %p132
    %p139 = scmp.eq.s32.totalorder %s11, 1
    %p140 = por %p138, %p139
    %p141 = scmp.ne.s32.totalorder %s133, %s136
    %p142 = scmp.eq.s32.totalorder %s11, 0
    %p143 = por %p141, %p142
    %p144 = scmp.ne.s32.totalorder %s133, %s136
    %p145 = scmp.eq.s32.totalorder %s16, 1
    %p146 = por %p144, %p145
    %p147 = scmp.ne.s32.totalorder %s136, %s137
    %p148 = scmp.eq.s32.totalorder %s16, 0
    %p149 = por %p147, %p148
    %p150 = scmp.ne.s32.totalorder %s136, %s137
    %p151 = scmp.eq.s32.totalorder %s17, 1
    %p152 = por %p150, %p151
    %p154 = scmp.ne.s32.totalorder %s137, %s153
    %p155 = scmp.eq.s32.totalorder %s17, 0
    %p156 = por %p154, %p155
    %p157 = scmp.le.s32.totalorder 1, %s11
    %p158 = scmp.lt.s32.totalorder %s11, 3
    %p159 = pnand %p157, %p158
    %p160 = pneg %p159
    // Predicated region
    $region9: #{discriminator_forward.2} parent=5 // pred_check
      _
    $region10: #{discriminator_forward.2} parent=5 // pred_check_branch
      %162 = sbr.rel (%p159) target = $region12
    $region11: #{discriminator_forward.2} parent=5 // pred_region
      %s163 = ssub.s32 %s11, 1
      // Predicated region
      $region13: #{discriminator_forward.2} parent=11 // pred_check
        %p164 = pneg %p72
      $region14: #{discriminator_forward.2} parent=11 // pred_check_branch
        %166 = sbr.rel (%p164) target = $region16
      $region15: #{discriminator_forward.2} parent=11 // pred_region
        _
      $region16: #{discriminator_forward.2} parent=11 // pred_fallthru
        _
      // Predicated region
      $region17: #{discriminator_forward.2} parent=11 // pred_check
        %p167 = pneg %p93
      $region18: #{discriminator_forward.2} parent=11 // pred_check_branch
        %169 = sbr.rel (%p167) target = $region20
      $region19: #{discriminator_forward.2} parent=11 // pred_region
        _
      $region20: #{discriminator_forward.2} parent=11 // pred_fallthru
        _
    $region12: #{discriminator_forward.2} parent=5 // pred_fallthru
      _
    %p170 = scmp.lt.s32.totalorder %s11, 2
    // Predicated region
    $region21: #{discriminator_forward.2} parent=5 // pred_check
      %p171 = pneg %p170
    $region22: #{discriminator_forward.2} parent=5 // pred_check_branch
      %173 = sbr.rel (%p171) target = $region24
    $region23: #{discriminator_forward.2} parent=5 // pred_region
      // Predicated region
      $region25: #{discriminator_forward.2} parent=23 // pred_check
        %p174 = pneg %p45
      $region26: #{discriminator_forward.2} parent=23 // pred_check_branch
        %176 = sbr.rel (%p174) target = $region28
      $region27: #{discriminator_forward.2} parent=23 // pred_region
        %s177 = smul.u32 2, %s19
        %p178 = scmp.lt.s32.totalorder %s18, 1
        %s179 = scalar_select %p178, %s18, 1
        %p180 = scmp.lt.s32.totalorder %s177, 1
        %s181 = scalar_select %p180, %s177, 1
        %s182 = smul.addr %s179, 2
        %s183 = sadd.s32 %s181, %s182
        %s184 = smul.addr %s183, 4
        %s185 = scalar_lea.vmem %s0, %s184
        %s186 = smul.u32 2, %s19
      $region28: #{discriminator_forward.2} parent=23 // pred_fallthru
        _
    $region24: #{discriminator_forward.2} parent=5 // pred_fallthru
      _
    %p187 = scmp.le.s32.totalorder 1, %s11
    %p188 = scmp.lt.s32.totalorder %s11, 3
    %p189 = pnand %p187, %p188
    %p190 = pneg %p189
    // Predicated region
    $region29: #{discriminator_forward.2} parent=5 // pred_check
      _
    $region30: #{discriminator_forward.2} parent=5 // pred_check_branch
      %192 = sbr.rel (%p189) target = $region32
    $region31: #{discriminator_forward.2} parent=5 // pred_region
      %s193 = ssub.s32 %s11, 1
      %s194 = smul.u32 2, %s21
      %p195 = scmp.lt.s32.totalorder %s20, 1
      %s196 = scalar_select %p195, %s20, 1
      %p197 = scmp.lt.s32.totalorder %s194, 1
      %s198 = scalar_select %p197, %s194, 1
      %s199 = smul.addr %s196, 2
      %s200 = sadd.s32 %s198, %s199
      %s201 = smul.addr %s200, 4
      %s202 = scalar_lea.vmem %s0, %s201
      %p203 = pneg %p51
      %p204 = pneg %p48
      %p205 = pneg %p72
      %p206 = pneg %p69
      %p207 = pneg %p93
      %p208 = pneg %p90
      %p209 = pneg %p121
      %p210 = pneg %p118
      %s211 = smul.u32 2, %s21
      %p212 = scmp.lt.s32.totalorder %s20, 1
      %s213 = scalar_select %p212, %s20, 1
      %p214 = scmp.lt.s32.totalorder %s211, 1
      %s215 = scalar_select %p214, %s211, 1
      %s216 = smul.addr %s213, 6
      %s217 = sadd.s32 %s215, %s216
      %s218 = smul.addr %s217, 8
      %s219 = scalar_lea.vmem %s3, %s218
      %p220 = pneg %p149
      %p221 = pneg %p146
      %p222 = scmp.lt.s32.totalorder %s20, 1
      %s223 = scalar_select %p222, %s20, 1
      %p224 = scmp.lt.s32.totalorder %s21, 0
      %s225 = scalar_select %p224, %s21, 0
      %s226 = sadd.s32 %s225, %s223
      %s227 = smul.addr %s226, 4
      %s228 = scalar_lea.vmem %s4, %s227
      %s229 = smul.u32 2, %s21
      %p230 = scmp.lt.s32.totalorder %s20, 1
      %s231 = scalar_select %p230, %s20, 1
      %p232 = scmp.lt.s32.totalorder %s229, 1
      %s233 = scalar_select %p232, %s229, 1
      %s234 = smul.addr %s231, 2
      %s235 = sadd.s32 %s233, %s234
      %s236 = smul.addr %s235, 4
      %s237 = scalar_lea.vmem %s0, %s236
      %s238 = smul.u32 2, %s21
      %s239 = smul.u32 2, %s21
      %p240 = scmp.lt.s32.totalorder %s20, 1
      %s241 = scalar_select %p240, %s20, 1
      %p242 = scmp.lt.s32.totalorder %s239, 1
      %s243 = scalar_select %p242, %s239, 1
      %s244 = smul.addr %s241, 6
      %s245 = sadd.s32 %s243, %s244
      %s246 = smul.addr %s245, 8
      %s247 = scalar_lea.vmem %s3, %s246
      %s248 = smul.u32 2, %s21
      %p249 = scmp.lt.s32.totalorder %s20, 1
      %s250 = scalar_select %p249, %s20, 1
      %p251 = scmp.lt.s32.totalorder %s21, 0
      %s252 = scalar_select %p251, %s21, 0
      %s253 = sadd.s32 %s252, %s250
      %s254 = smul.addr %s253, 4
      %s255 = scalar_lea.vmem %s4, %s254
      %v256 = vld [vmem:[%s237] sm:$0x77]
      %v257 = vld [vmem:[%s1] sm:$0xff]
      %v258 = vld [vmem:[%s1 + $0x8] sm:$0xff]
      %v259 = vld [vmem:[%s1 + $0x10] sm:$0x7]
      %v260 = vld [vmem:[%s2] sm:$0xff]
      %v261 = vld [vmem:[%s2 + $0x8] sm:$0xff]
      %v262 = vld [vmem:[%s2 + $0x10] sm:$0x7]
      %264 = vset.pattern.permute.xlu0 0
      %265 = vperm.xlu0 %264, %v257
      %v266 = vpop.permute.xlu0 %265
      %269 = vset.pattern.permute.xlu0 0
      %270 = vperm.xlu0 %269, %v258
      %v271 = vpop.permute.xlu0 %270
      %274 = vset.pattern.permute.xlu0 0
      %275 = vperm.xlu0 %274, %v259
      %v276 = vpop.permute.xlu0 %275
      %v279 = vperm.slane %v256, 0
      %v280 = vperm.slane %v256, 4
      %v283 = vperm.slane %v279, 0
      %v284 = vperm.slane %v280, 0
      %v285 = vmul.f32 %v266, %v283
      %v286 = vmul.f32 %v266, %v284
      %v287 = vmul.f32 %v271, %v283
      %v288 = vmul.f32 %v271, %v284
      %v289 = vmul.f32 %v276, %v283
      %v290 = vmul.f32 %v276, %v284
      %292 = vset.pattern.permute.xlu0 0
      %293 = vperm.xlu0 %292, %v260
      %v294 = vpop.permute.xlu0 %293
      %297 = vset.pattern.permute.xlu0 0
      %298 = vperm.xlu0 %297, %v261
      %v299 = vpop.permute.xlu0 %298
      %302 = vset.pattern.permute.xlu0 0
      %303 = vperm.xlu0 %302, %v262
      %v304 = vpop.permute.xlu0 %303
      %v306 = vadd.f32 %v294, %v285
      %v307 = vadd.f32 %v294, %v286
      %v308 = vadd.f32 %v299, %v287
      %v309 = vadd.f32 %v299, %v288
      %v310 = vadd.f32 %v304, %v289
      %v311 = vadd.f32 %v304, %v290
      %312 = vset.pattern.permute.xlu0 1
      %313 = vperm.xlu0 %312, %v257
      %v314 = vpop.permute.xlu0 %313
      %316 = vset.pattern.permute.xlu0 1
      %317 = vperm.xlu0 %316, %v258
      %v318 = vpop.permute.xlu0 %317
      %320 = vset.pattern.permute.xlu0 1
      %321 = vperm.xlu0 %320, %v259
      %v322 = vpop.permute.xlu0 %321
      %v324 = vperm.slane %v256, 1
      %v325 = vperm.slane %v256, 5
      %v328 = vperm.slane %v324, 1
      %v329 = vperm.slane %v325, 1
      %v330 = vmul.f32 %v314, %v328
      %v331 = vmul.f32 %v314, %v329
      %v332 = vmul.f32 %v318, %v328
      %v333 = vmul.f32 %v318, %v329
      %v334 = vmul.f32 %v322, %v328
      %v335 = vmul.f32 %v322, %v329
      %v336 = vadd.f32 %v306, %v330
      %v337 = vadd.f32 %v307, %v331
      %v338 = vadd.f32 %v308, %v332
      %v339 = vadd.f32 %v309, %v333
      %v340 = vadd.f32 %v310, %v334
      %v341 = vadd.f32 %v311, %v335
      %342 = vset.pattern.permute.xlu0 2
      %343 = vperm.xlu0 %342, %v257
      %v344 = vpop.permute.xlu0 %343
      %346 = vset.pattern.permute.xlu0 2
      %347 = vperm.xlu0 %346, %v258
      %v348 = vpop.permute.xlu0 %347
      %350 = vset.pattern.permute.xlu0 2
      %351 = vperm.xlu0 %350, %v259
      %v352 = vpop.permute.xlu0 %351
      %v354 = vperm.slane %v256, 2
      %v355 = vperm.slane %v256, 6
      %v358 = vperm.slane %v354, 2
      %v359 = vperm.slane %v355, 2
      %v360 = vmul.f32 %v344, %v358
      %v361 = vmul.f32 %v344, %v359
      %v362 = vmul.f32 %v348, %v358
      %v363 = vmul.f32 %v348, %v359
      %v364 = vmul.f32 %v352, %v358
      %v365 = vmul.f32 %v352, %v359
      %v366 = vadd.f32 %v336, %v360
      %v367 = vadd.f32 %v337, %v361
      %v368 = vadd.f32 %v338, %v362
      %v369 = vadd.f32 %v339, %v363
      %v370 = vadd.f32 %v340, %v364
      %v371 = vadd.f32 %v341, %v365
      %v372 = vlaneseq
      %v373 = vshrl.u32 %v372, 7
      %v374 = vadd.s32 %v373, 8
      %v375 = vadd.s32 %v373, 16
      %vm376 = vcmask 1042432
      %v377 = vsel %vm376, %v370, -inf
      %v378 = vmax.f32 %v366, %v377
      %v379 = vmax.f32 %v378, %v368
      %v380 = vrot.slane %v379, 4
      %v381 = vmax.f32 %v379, %v380
      %v382 = vrot.slane %v381, 2
      %v383 = vmax.f32 %v381, %v382
      %v384 = vrot.slane %v383, 1
      %v385 = vmax.f32 %v383, %v384
      %v386 = vsel %vm376, %v371, -inf
      %v387 = vmax.f32 %v367, %v386
      %v388 = vmax.f32 %v387, %v369
      %v389 = vrot.slane %v388, 4
      %v390 = vmax.f32 %v388, %v389
      %v391 = vrot.slane %v390, 2
      %v392 = vmax.f32 %v390, %v391
      %v393 = vrot.slane %v392, 1
      %v394 = vmax.f32 %v392, %v393
      %vm395 = vcmp.eq.f32.partialorder %v366, %v385
      %vm396 = vcmp.eq.f32.partialorder %v367, %v394
      %vm397 = vcmp.eq.f32.partialorder %v368, %v385
      %vm398 = vcmp.eq.f32.partialorder %v369, %v394
      %vm399 = vcmp.eq.f32.partialorder %v370, %v385
      %vm400 = vcmp.eq.f32.partialorder %v371, %v394
      %v401 = vsel %vm395, %v373, 19
      %v402 = vsel %vm396, %v373, 19
      %v403 = vsel %vm397, %v374, 19
      %v404 = vsel %vm398, %v374, 19
      %v405 = vsel %vm399, %v375, 19
      %v406 = vsel %vm400, %v375, 19
      %v407 = vsel %vm376, %v405, 2147483647
      %vm408 = vcmp.lt.s32.totalorder %v401, %v407
      %v409 = vsel %vm408, %v401, %v407
      %vm410 = vcmp.lt.s32.totalorder %v409, %v403
      %v411 = vsel %vm410, %v409, %v403
      %v412 = vrot.slane %v411, 4
      %vm413 = vcmp.lt.s32.totalorder %v411, %v412
      %v414 = vsel %vm413, %v411, %v412
      %v415 = vrot.slane %v414, 2
      %vm416 = vcmp.lt.s32.totalorder %v414, %v415
      %v417 = vsel %vm416, %v414, %v415
      %v418 = vrot.slane %v417, 1
      %vm419 = vcmp.lt.s32.totalorder %v417, %v418
      %v420 = vsel %vm419, %v417, %v418
      %v421 = vsel %vm376, %v406, 2147483647
      %vm422 = vcmp.lt.s32.totalorder %v402, %v421
      %v423 = vsel %vm422, %v402, %v421
      %vm424 = vcmp.lt.s32.totalorder %v423, %v404
      %v425 = vsel %vm424, %v423, %v404
      %v426 = vrot.slane %v425, 4
      %vm427 = vcmp.lt.s32.totalorder %v425, %v426
      %v428 = vsel %vm427, %v425, %v426
      %v429 = vrot.slane %v428, 2
      %vm430 = vcmp.lt.s32.totalorder %v428, %v429
      %v431 = vsel %vm430, %v428, %v429
      %v432 = vrot.slane %v431, 1
      %vm433 = vcmp.lt.s32.totalorder %v431, %v432
      %v434 = vsel %vm433, %v431, %v432
      %vm435 = vcmp.eq.s32.totalorder %v373, %v420
      %vm436 = vcmp.eq.s32.totalorder %v373, %v434
      %vm437 = vcmp.eq.s32.totalorder %v374, %v420
      %vm438 = vcmp.eq.s32.totalorder %v374, %v434
      %vm439 = vcmp.eq.s32.totalorder %v375, %v420
      %vm440 = vcmp.eq.s32.totalorder %v375, %v434
      %v441 = vsel %vm435, 1, 0
      %v442 = vsel %vm436, 1, 0
      %v443 = vsel %vm437, 1, 0
      %v444 = vsel %vm438, 1, 0
      %v445 = vsel %vm439, 1, 0
      %v446 = vsel %vm440, 1, 0
      %v447 = vcvt.s32.f32 %v441
      %v448 = vcvt.s32.f32 %v442
      %v449 = vcvt.s32.f32 %v443
      %v450 = vcvt.s32.f32 %v444
      %v451 = vcvt.s32.f32 %v445
      %v452 = vcvt.s32.f32 %v446
      %453 = vst [vmem:[%s247] sm:$0xff] %v447
      %454 = vst [vmem:[%s247 + $0x8] sm:$0xff] %v448
      %455 = vst [vmem:[%s247 + $0x10] sm:$0xff] %v449
      %456 = vst [vmem:[%s247 + $0x18] sm:$0xff] %v450
      %457 = vst [vmem:[%s247 + $0x20] sm:$0x7] %v451
      %458 = vst [vmem:[%s247 + $0x28] sm:$0x7] %v452
      %459 = vst [vmem:[#allocation1] ss:$2 sm:$0xff] %v256
      %v460 = vld.sshfl [vmem:[#allocation1] sm:$0xff pattern:$0x75316420]
      %v461 = vld.sshfl [vmem:[#allocation1 + $0x8] sm:$0xff pattern:$0x75316420]
      %v464 = vsel %vm376, %v460, 0.0
      %v465 = vsel %vm376, %v461, 0.0
      %v466 = vadd.f32 %v464, %v465
      %467 = vadd.xlane.f32.xlu0 %v466
      %v468 = vpop.xlane.xlu0 %467
      %vm469 = vcmask 2048
      %470 = vst.msk [vmem:[%s255] sm:$0x7] %vm469, %v468
      %s471 = smul.u32 2, %s21
      %p472 = scmp.lt.s32.totalorder %s20, 1
      %s473 = scalar_select %p472, %s20, 1
      %p474 = scmp.lt.s32.totalorder %s471, 1
      %s475 = scalar_select %p474, %s471, 1
      %s476 = smul.addr %s473, 6
      %s477 = sadd.s32 %s475, %s476
      %s478 = smul.addr %s477, 8
      %s479 = scalar_lea.vmem %s3, %s478
      %p480 = scmp.lt.s32.totalorder %s20, 1
      %s481 = scalar_select %p480, %s20, 1
      %p482 = scmp.lt.s32.totalorder %s21, 0
      %s483 = scalar_select %p482, %s21, 0
      %s484 = sadd.s32 %s483, %s481
      %s485 = smul.addr %s484, 4
      %s486 = scalar_lea.vmem %s4, %s485
      // Predicated region
      $region33: #{discriminator_forward.2} parent=31 // pred_check
        %p487 = pneg %p118
      $region34: #{discriminator_forward.2} parent=31 // pred_check_branch
        %489 = sbr.rel (%p487) target = $region36
      $region35: #{discriminator_forward.2} parent=31 // pred_region
        %s490 = smul.u32 2, %s21
      $region36: #{discriminator_forward.2} parent=31 // pred_fallthru
        _
      // Predicated region
      $region37: #{discriminator_forward.2} parent=31 // pred_check
        %p491 = pneg %p146
      $region38: #{discriminator_forward.2} parent=31 // pred_check_branch
        %493 = sbr.rel (%p491) target = $region40
      $region39: #{discriminator_forward.2} parent=31 // pred_region
        _
      $region40: #{discriminator_forward.2} parent=31 // pred_fallthru
        _
    $region32: #{discriminator_forward.2} parent=5 // pred_fallthru
      _
    %p494 = scmp.le.s32.totalorder 2, %s11
    // Predicated region
    $region41: #{discriminator_forward.2} parent=5 // pred_check
      %p495 = pneg %p494
    $region42: #{discriminator_forward.2} parent=5 // pred_check_branch
      %497 = sbr.rel (%p495) target = $region44
    $region43: #{discriminator_forward.2} parent=5 // pred_region
      %s498 = ssub.s32 %s11, 2
      // Predicated region
      $region45: #{discriminator_forward.2} parent=43 // pred_check
        %p499 = pneg %p124
      $region46: #{discriminator_forward.2} parent=43 // pred_check_branch
        %501 = sbr.rel (%p499) target = $region48
      $region47: #{discriminator_forward.2} parent=43 // pred_region
        %s502 = smul.u32 2, %s23
        %p503 = scmp.lt.s32.totalorder %s22, 1
        %s504 = scalar_select %p503, %s22, 1
        %p505 = scmp.lt.s32.totalorder %s502, 1
        %s506 = scalar_select %p505, %s502, 1
        %s507 = smul.addr %s504, 6
        %s508 = sadd.s32 %s506, %s507
        %s509 = smul.addr %s508, 8
        %s510 = scalar_lea.vmem %s3, %s509
      $region48: #{discriminator_forward.2} parent=43 // pred_fallthru
        _
      // Predicated region
      $region49: #{discriminator_forward.2} parent=43 // pred_check
        %p511 = pneg %p152
      $region50: #{discriminator_forward.2} parent=43 // pred_check_branch
        %513 = sbr.rel (%p511) target = $region52
      $region51: #{discriminator_forward.2} parent=43 // pred_region
        %p514 = scmp.lt.s32.totalorder %s22, 1
        %s515 = scalar_select %p514, %s22, 1
        %p516 = scmp.lt.s32.totalorder %s23, 0
        %s517 = scalar_select %p516, %s23, 0
        %s518 = sadd.s32 %s517, %s515
        %s519 = smul.addr %s518, 4
        %s520 = scalar_lea.vmem %s4, %s519
      $region52: #{discriminator_forward.2} parent=43 // pred_fallthru
        _
    $region44: #{discriminator_forward.2} parent=5 // pred_fallthru
      _
  $region6: #{discriminator_forward.2} parent=0 // loop_footer
    %s15 = sadd.s32 1, %s11
  $region7: #{discriminator_forward.2} parent=0 // loop_footer_branch
    %10 = sbr.rel target = $region3
  $region8: #{discriminator_forward.2} parent=0 // loop_exit
    _

// kernel: discriminator_forward.3
$region0: #{discriminator_forward.3}
  #allocation0 [shape = 'u32[]', space=smem, size = 0x4, offset = 0x4, fixed_abs, tag = 'smem constant byte address 0x4 - core index']
  #allocation1 [shape = 'u32[72,128]{1,0:T(1,128)}', space=vmem, size = 0x9000, scoped, tag = 'internal scratch']
  %s0 = inlined_call_operand.vmem [shape: f32[2,3], index: 0, kind: input, shape index: {}]
  %s1 = inlined_call_operand.hbm [shape: f32[3,1000], index: 1, kind: input, shape index: {}]
  %s2 = inlined_call_operand.hbm [shape: f32[1,1000], index: 2, kind: input, shape index: {}]
  %s3 = inlined_call_operand.hbm [shape: f32[1000,512], index: 3, kind: input, shape index: {}]
  %s4 = inlined_call_operand.hbm [shape: f32[1,512], index: 4, kind: input, shape index: {}]
  %s5 = inlined_call_operand.hbm [shape: f32[1,512], index: 5, kind: input, shape index: {}]
  %s6 = inlined_call_operand.hbm [shape: f32[1,512], index: 6, kind: input, shape index: {}]
  %s7 = inlined_call_operand.hbm [shape: f32[512,256], index: 7, kind: input, shape index: {}]
  %s8 = inlined_call_operand.hbm [shape: f32[1,256], index: 8, kind: input, shape index: {}]
  %s9 = inlined_call_operand.vmem [shape: f32[256,2], index: 9, kind: input, shape index: {}]
  %s10 = inlined_call_operand.hbm [shape: f32[1,2], index: 10, kind: input, shape index: {}]
  %s11 = inlined_call_operand.hbm [shape: f32[2,2], index: 11, kind: output, shape index: {}]
  %s12 = sld [smem:[#allocation0]]
  $region90: #{discriminator_forward.3} parent=0
    _
  %s14 = ssub.s32 1, %s12
  %s15 = scalar_select 0, %s14, %s12
  $region1: #{discriminator_forward.3} parent=0
    #allocation2 [shape = 'u8[16384]{0}', space=vmem, size = 0x4000, scoped, tag = 'input window, operand 1, single buffered']
    #allocation3 [shape = 's32[1]{0}', space=sflag, size = 0x4, scoped, tag = 'scoped memory for discriminator_forward.3']
    #allocation4 [shape = 's32[1]{0}', space=sflag, size = 0x4, scoped, tag = 'scoped memory for discriminator_forward.3']
    #allocation5 [shape = 'u8[4096]{0}', space=vmem, size = 0x1000, scoped, tag = 'input window, operand 2, single buffered']
    #allocation6 [shape = 's32[1]{0}', space=sflag, size = 0x4, scoped, tag = 'scoped memory for discriminator_forward.3']
    #allocation7 [shape = 'u8[2048000]{0}', space=vmem, size = 0x1f4000, scoped, tag = 'input window, operand 3, single buffered']
    #allocation8 [shape = 'u8[2048]{0}', space=vmem, size = 0x800, scoped, tag = 'input window, operand 4, single buffered']
    #allocation9 [shape = 's32[1]{0}', space=sflag, size = 0x4, scoped, tag = 'scoped memory for discriminator_forward.3']
    #allocation10 [shape = 'u8[2048]{0}', space=vmem, size = 0x800, scoped, tag = 'input window, operand 5, single buffered']
    #allocation11 [shape = 'u8[2048]{0}', space=vmem, size = 0x800, scoped, tag = 'input window, operand 6, single buffered']
    #allocation12 [shape = 's32[1]{0}', space=sflag, size = 0x4, scoped, tag = 'scoped memory for discriminator_forward.3']
    #allocation13 [shape = 'u8[524288]{0}', space=vmem, size = 0x80000, scoped, tag = 'input window, operand 7, single buffered']
    #allocation14 [shape = 'u8[1024]{0}', space=vmem, size = 0x400, scoped, tag = 'input window, operand 8, single buffered']
    #allocation15 [shape = 's32[1]{0}', space=sflag, size = 0x4, scoped, tag = 'scoped memory for discriminator_forward.3']
    #allocation16 [shape = 'u8[512]{0}', space=vmem, size = 0x400, scoped, tag = 'input window, operand 10, single buffered']
    #allocation17 [shape = 'u8[1024]{0}', space=vmem, size = 0x400, scoped, tag = 'output window, operand 0, single buffered']
    %16 = vsyncpa [#allocation3], 0
    %17 = vsyncpa [#allocation6], 0
    %18 = vsyncpa [#allocation9], 0
    %19 = vsyncpa [#allocation12], 0
    %20 = vsyncpa [#allocation15], 0
    %21 = vsyncpa [#allocation4], 0
    // Predicated region
    $region2: #{discriminator_forward.3} parent=1 // pred_check
      _
    $region3: #{discriminator_forward.3} parent=1 // pred_check_branch
      %23 = sbr.rel (0) target = $region5
    $region4: #{discriminator_forward.3} parent=1 // pred_region
      _
    $region5: #{discriminator_forward.3} parent=1 // pred_fallthru
      _
    // Predicated region
    $region6: #{discriminator_forward.3} parent=1 // pred_check
      _
    $region7: #{discriminator_forward.3} parent=1 // pred_check_branch
      %25 = sbr.rel (0) target = $region9
    $region8: #{discriminator_forward.3} parent=1 // pred_region
      %27 = vsyncadd [#allocation3], 0
      %s29 = sshll.u32 %s1, 4
      %s30 = int_to_ptr.hbm [resolvable:$true] %s29
      %s31 = sshll.u32 [#allocation2], 4
      %s32 = int_to_ptr.vmem [resolvable:$true] %s31
      %34 = dma.hbm_to_vmem [thread:$0]  %s30, 512, %s32, [#allocation3]
    $region9: #{discriminator_forward.3} parent=1 // pred_fallthru
      _
    // Predicated region
    $region10: #{discriminator_forward.3} parent=1 // pred_check
      _
    $region11: #{discriminator_forward.3} parent=1 // pred_check_branch
      %36 = sbr.rel (0) target = $region13
    $region12: #{discriminator_forward.3} parent=1 // pred_region
      %38 = vsyncadd [#allocation6], 0
      %s40 = sshll.u32 %s2, 4
      %s41 = int_to_ptr.hbm [resolvable:$true] %s40
      %s42 = sshll.u32 [#allocation5], 4
      %s43 = int_to_ptr.vmem [resolvable:$true] %s42
      %45 = dma.hbm_to_vmem [thread:$0]  %s41, 128, %s43, [#allocation6]
    $region13: #{discriminator_forward.3} parent=1 // pred_fallthru
      _
    // Predicated region
    $region14: #{discriminator_forward.3} parent=1 // pred_check
      _
    $region15: #{discriminator_forward.3} parent=1 // pred_check_branch
      %47 = sbr.rel (0) target = $region17
    $region16: #{discriminator_forward.3} parent=1 // pred_region
      %49 = vsyncadd [#allocation6], 0
      %s50 = sshll.u32 %s3, 4
      %s51 = int_to_ptr.hbm [resolvable:$true] %s50
      %s52 = sshll.u32 [#allocation7], 4
      %s53 = int_to_ptr.vmem [resolvable:$true] %s52
      %58 = dma.hbm_to_vmem [thread:$0]  %s51, 64000, %s53, [#allocation6], 512, 512, 32
    $region17: #{discriminator_forward.3} parent=1 // pred_fallthru
      _
    // Predicated region
    $region18: #{discriminator_forward.3} parent=1 // pred_check
      _
    $region19: #{discriminator_forward.3} parent=1 // pred_check_branch
      %60 = sbr.rel (0) target = $region21
    $region20: #{discriminator_forward.3} parent=1 // pred_region
      %62 = vsyncadd [#allocation9], 0
      %s64 = sshll.u32 %s4, 4
      %s65 = int_to_ptr.hbm [resolvable:$true] %s64
      %s66 = sshll.u32 [#allocation8], 4
      %s67 = int_to_ptr.vmem [resolvable:$true] %s66
      %69 = dma.hbm_to_vmem [thread:$0]  %s65, 64, %s67, [#allocation9]
    $region21: #{discriminator_forward.3} parent=1 // pred_fallthru
      _
    // Predicated region
    $region22: #{discriminator_forward.3} parent=1 // pred_check
      _
    $region23: #{discriminator_forward.3} parent=1 // pred_check_branch
      %71 = sbr.rel (0) target = $region25
    $region24: #{discriminator_forward.3} parent=1 // pred_region
      %73 = vsyncadd [#allocation9], 0
      %s75 = sshll.u32 %s5, 4
      %s76 = int_to_ptr.hbm [resolvable:$true] %s75
      %s77 = sshll.u32 [#allocation10], 4
      %s78 = int_to_ptr.vmem [resolvable:$true] %s77
      %80 = dma.hbm_to_vmem [thread:$0]  %s76, 64, %s78, [#allocation9]
    $region25: #{discriminator_forward.3} parent=1 // pred_fallthru
      _
    // Predicated region
    $region26: #{discriminator_forward.3} parent=1 // pred_check
      _
    $region27: #{discriminator_forward.3} parent=1 // pred_check_branch
      %82 = sbr.rel (0) target = $region29
    $region28: #{discriminator_forward.3} parent=1 // pred_region
      %84 = vsyncadd [#allocation12], 0
      %s86 = sshll.u32 %s6, 4
      %s87 = int_to_ptr.hbm [resolvable:$true] %s86
      %s88 = sshll.u32 [#allocation11], 4
      %s89 = int_to_ptr.vmem [resolvable:$true] %s88
      %91 = dma.hbm_to_vmem [thread:$0]  %s87, 64, %s89, [#allocation12]
    $region29: #{discriminator_forward.3} parent=1 // pred_fallthru
      _
    // Predicated region
    $region30: #{discriminator_forward.3} parent=1 // pred_check
      _
    $region31: #{discriminator_forward.3} parent=1 // pred_check_branch
      %93 = sbr.rel (0) target = $region33
    $region32: #{discriminator_forward.3} parent=1 // pred_region
      %95 = vsyncadd [#allocation12], 0
      %s96 = sshll.u32 %s7, 4
      %s97 = int_to_ptr.hbm [resolvable:$true] %s96
      %s98 = sshll.u32 [#allocation13], 4
      %s99 = int_to_ptr.vmem [resolvable:$true] %s98
      %104 = dma.hbm_to_vmem [thread:$0]  %s97, 16384, %s99, [#allocation12], 256, 256, 16
    $region33: #{discriminator_forward.3} parent=1 // pred_fallthru
      _
    // Predicated region
    $region34: #{discriminator_forward.3} parent=1 // pred_check
      _
    $region35: #{discriminator_forward.3} parent=1 // pred_check_branch
      %106 = sbr.rel (0) target = $region37
    $region36: #{discriminator_forward.3} parent=1 // pred_region
      %108 = vsyncadd [#allocation15], 0
      %s110 = sshll.u32 %s8, 4
      %s111 = int_to_ptr.hbm [resolvable:$true] %s110
      %s112 = sshll.u32 [#allocation14], 4
      %s113 = int_to_ptr.vmem [resolvable:$true] %s112
      %115 = dma.hbm_to_vmem [thread:$0]  %s111, 32, %s113, [#allocation15]
    $region37: #{discriminator_forward.3} parent=1 // pred_fallthru
      _
    // Predicated region
    $region38: #{discriminator_forward.3} parent=1 // pred_check
      _
    $region39: #{discriminator_forward.3} parent=1 // pred_check_branch
      %117 = sbr.rel (0) target = $region41
    $region40: #{discriminator_forward.3} parent=1 // pred_region
      _
    $region41: #{discriminator_forward.3} parent=1 // pred_fallthru
      _
    // Predicated region
    $region42: #{discriminator_forward.3} parent=1 // pred_check
      _
    $region43: #{discriminator_forward.3} parent=1 // pred_check_branch
      %119 = sbr.rel (0) target = $region45
    $region44: #{discriminator_forward.3} parent=1 // pred_region
      %121 = vsyncadd [#allocation15], 0
      %s123 = sshll.u32 %s10, 4
      %s124 = int_to_ptr.hbm [resolvable:$true] %s123
      %s125 = sshll.u32 [#allocation16], 4
      %s126 = int_to_ptr.vmem [resolvable:$true] %s125
      %128 = dma.hbm_to_vmem [thread:$0]  %s124, 16, %s126, [#allocation15]
    $region45: #{discriminator_forward.3} parent=1 // pred_fallthru
      _
    // Predicated region
    $region46: #{discriminator_forward.3} parent=1 // pred_check
      _
    $region47: #{discriminator_forward.3} parent=1 // pred_check_branch
      %130 = sbr.rel (0) target = $region49
    $region48: #{discriminator_forward.3} parent=1 // pred_region
      %132 = dma.done [#allocation3], 512
    $region49: #{discriminator_forward.3} parent=1 // pred_fallthru
      _
    // Predicated region
    $region50: #{discriminator_forward.3} parent=1 // pred_check
      _
    $region51: #{discriminator_forward.3} parent=1 // pred_check_branch
      %134 = sbr.rel (0) target = $region53
    $region52: #{discriminator_forward.3} parent=1 // pred_region
      %136 = dma.done [#allocation6], 128
    $region53: #{discriminator_forward.3} parent=1 // pred_fallthru
      _
    // Predicated region
    $region54: #{discriminator_forward.3} parent=1 // pred_check
      _
    $region55: #{discriminator_forward.3} parent=1 // pred_check_branch
      %138 = sbr.rel (0) target = $region57
    $region56: #{discriminator_forward.3} parent=1 // pred_region
      %140 = dma.done [#allocation6], 64000
    $region57: #{discriminator_forward.3} parent=1 // pred_fallthru
      _
    // Predicated region
    $region58: #{discriminator_forward.3} parent=1 // pred_check
      _
    $region59: #{discriminator_forward.3} parent=1 // pred_check_branch
      %142 = sbr.rel (0) target = $region61
    $region60: #{discriminator_forward.3} parent=1 // pred_region
      %144 = dma.done [#allocation9], 64
    $region61: #{discriminator_forward.3} parent=1 // pred_fallthru
      _
    // Predicated region
    $region62: #{discriminator_forward.3} parent=1 // pred_check
      _
    $region63: #{discriminator_forward.3} parent=1 // pred_check_branch
      %146 = sbr.rel (0) target = $region65
    $region64: #{discriminator_forward.3} parent=1 // pred_region
      %148 = dma.done [#allocation9], 64
    $region65: #{discriminator_forward.3} parent=1 // pred_fallthru
      _
    // Predicated region
    $region66: #{discriminator_forward.3} parent=1 // pred_check
      _
    $region67: #{discriminator_forward.3} parent=1 // pred_check_branch
      %150 = sbr.rel (0) target = $region69
    $region68: #{discriminator_forward.3} parent=1 // pred_region
      %152 = dma.done [#allocation12], 64
    $region69: #{discriminator_forward.3} parent=1 // pred_fallthru
      _
    // Predicated region
    $region70: #{discriminator_forward.3} parent=1 // pred_check
      _
    $region71: #{discriminator_forward.3} parent=1 // pred_check_branch
      %154 = sbr.rel (0) target = $region73
    $region72: #{discriminator_forward.3} parent=1 // pred_region
      %156 = dma.done [#allocation12], 16384
    $region73: #{discriminator_forward.3} parent=1 // pred_fallthru
      _
    // Predicated region
    $region74: #{discriminator_forward.3} parent=1 // pred_check
      _
    $region75: #{discriminator_forward.3} parent=1 // pred_check_branch
      %158 = sbr.rel (0) target = $region77
    $region76: #{discriminator_forward.3} parent=1 // pred_region
      %160 = dma.done [#allocation15], 32
    $region77: #{discriminator_forward.3} parent=1 // pred_fallthru
      _
    // Predicated region
    $region78: #{discriminator_forward.3} parent=1 // pred_check
      _
    $region79: #{discriminator_forward.3} parent=1 // pred_check_branch
      %162 = sbr.rel (0) target = $region81
    $region80: #{discriminator_forward.3} parent=1 // pred_region
      %164 = dma.done [#allocation15], 16
    $region81: #{discriminator_forward.3} parent=1 // pred_fallthru
      _
    %v165 = vld [vmem:[%s0] sm:$0x3]
    %v166 = vld [vmem:[#allocation2] sm:$0x77]
    %v167 = vld [vmem:[#allocation2 + $0x8] sm:$0x77]
    %v168 = vld [vmem:[#allocation2 + $0x10] sm:$0x77]
    %v169 = vld [vmem:[#allocation2 + $0x18] sm:$0x77]
    %v170 = vld [vmem:[#allocation5] sm:$0xff]
    %v172 = vperm.slane %v170, 0
    %v173 = vperm.slane %v170, 1
    %v174 = vperm.slane %v170, 2
    %v175 = vperm.slane %v170, 3
    %v176 = vperm.slane %v170, 4
    %v177 = vperm.slane %v170, 5
    %v178 = vperm.slane %v170, 6
    %v179 = vperm.slane %v170, 7
    %192 = vst [vmem:[#allocation1] ss:$2 sm:$0xff] %v166
    %s193 = scalar_lea.vmem [#allocation1], 16
    %194 = vst [vmem:[%s193] ss:$2 sm:$0xff] %v167
    %s195 = scalar_lea.vmem [#allocation1], 32
    %196 = vst [vmem:[%s195] ss:$2 sm:$0xff] %v168
    %s197 = scalar_lea.vmem [#allocation1], 48
    %198 = vst [vmem:[%s197] ss:$2 sm:$0xff] %v169
    %v199 = vld.sshfl [vmem:[#allocation1] sm:$0xff pattern:$0x75316420]
    %v200 = vld.sshfl [vmem:[#allocation1 + $0x8] sm:$0xff pattern:$0x75316420]
    %v201 = vld.sshfl [vmem:[#allocation1 + $0x10] sm:$0xff pattern:$0x75316420]
    %v202 = vld.sshfl [vmem:[#allocation1 + $0x18] sm:$0xff pattern:$0x75316420]
    %v203 = vld.sshfl [vmem:[#allocation1 + $0x20] sm:$0xff pattern:$0x75316420]
    %v204 = vld.sshfl [vmem:[#allocation1 + $0x28] sm:$0xff pattern:$0x75316420]
    %v205 = vld.sshfl [vmem:[#allocation1 + $0x30] sm:$0xff pattern:$0x75316420]
    %v206 = vld.sshfl [vmem:[#allocation1 + $0x38] sm:$0xff pattern:$0x75316420]
    %vm207 = vcmask 23552
    %v209 = vsel %vm207, %v165, 0
    %vm211 = vcmask 1042432
    %v212 = vsel %vm211, %v199, 0
    %v214 = vsel %vm211, %v200, 0
    %v216 = vsel %vm211, %v201, 0
    %v218 = vsel %vm211, %v202, 0
    %v220 = vsel %vm211, %v203, 0
    %v222 = vsel %vm211, %v204, 0
    %v224 = vsel %vm211, %v205, 0
    %v226 = vsel %vm211, %v206, 0
    %228 = vmatpush.msra.mxu0 0.0
    %229 = vmatpush.msra.mxu0 0.0
    %230 = vmatpush.msra.mxu0 0.0
    %231 = vmatpush.msra.mxu0 0.0
    %232 = vmatpush.msra.mxu0 0.0
    %233 = vmatpush.msra.mxu0 0.0
    %234 = vmatpush.msra.mxu0 0.0
    %235 = vmatpush.msra.mxu0 0.0
    %236 = vmatpush.msra.mxu0 0.0
    %237 = vmatpush.msra.mxu0 0.0
    %238 = vmatpush.msra.mxu0 0.0
    %239 = vmatpush.msra.mxu0 0.0
    %240 = vmatpush.msra.mxu0 0.0
    %241 = vmatpush.msra.mxu0 0.0
    %242 = vmatpush.msra.mxu0 0.0
    %243 = vmatpush.msra.mxu0 %v212
    %244 = vmatmul.f32.gmra.mxu0 %v209
    %v245 = vpop.f32.mrf.mxu0
    %v246 = vadd.f32 %v172, %v245
    %247 = vdwg.mxu0
    %248 = vmatpush.msra.mxu0 0.0
    %249 = vmatpush.msra.mxu0 0.0
    %250 = vmatpush.msra.mxu0 0.0
    %251 = vmatpush.msra.mxu0 0.0
    %252 = vmatpush.msra.mxu0 0.0
    %253 = vmatpush.msra.mxu0 0.0
    %254 = vmatpush.msra.mxu0 0.0
    %255 = vmatpush.msra.mxu0 0.0
    %256 = vmatpush.msra.mxu0 0.0
    %257 = vmatpush.msra.mxu0 0.0
    %258 = vmatpush.msra.mxu0 0.0
    %259 = vmatpush.msra.mxu0 0.0
    %260 = vmatpush.msra.mxu0 0.0
    %261 = vmatpush.msra.mxu0 0.0
    %262 = vmatpush.msra.mxu0 0.0
    %263 = vmatpush.msra.mxu0 %v214
    %264 = vmatmul.f32.gmra.mxu0 %v209
    %v265 = vpop.f32.mrf.mxu0
    %v266 = vadd.f32 %v173, %v265
    %267 = vdwg.mxu0
    %268 = vmatpush.msra.mxu0 0.0
    %269 = vmatpush.msra.mxu0 0.0
    %270 = vmatpush.msra.mxu0 0.0
    %271 = vmatpush.msra.mxu0 0.0
    %272 = vmatpush.msra.mxu0 0.0
    %273 = vmatpush.msra.mxu0 0.0
    %274 = vmatpush.msra.mxu0 0.0
    %275 = vmatpush.msra.mxu0 0.0
    %276 = vmatpush.msra.mxu0 0.0
    %277 = vmatpush.msra.mxu0 0.0
    %278 = vmatpush.msra.mxu0 0.0
    %279 = vmatpush.msra.mxu0 0.0
    %280 = vmatpush.msra.mxu0 0.0
    %281 = vmatpush.msra.mxu0 0.0
    %282 = vmatpush.msra.mxu0 0.0
    %283 = vmatpush.msra.mxu0 %v216
    %284 = vmatmul.f32.gmra.mxu0 %v209
    %v285 = vpop.f32.mrf.mxu0
    %v286 = vadd.f32 %v174, %v285
    %287 = vdwg.mxu0
    %288 = vmatpush.msra.mxu0 0.0
    %289 = vmatpush.msra.mxu0 0.0
    %290 = vmatpush.msra.mxu0 0.0
    %291 = vmatpush.msra.mxu0 0.0
    %292 = vmatpush.msra.mxu0 0.0
    %293 = vmatpush.msra.mxu0 0.0
    %294 = vmatpush.msra.mxu0 0.0
    %295 = vmatpush.msra.mxu0 0.0
    %296 = vmatpush.msra.mxu0 0.0
    %297 = vmatpush.msra.mxu0 0.0
    %298 = vmatpush.msra.mxu0 0.0
    %299 = vmatpush.msra.mxu0 0.0
    %300 = vmatpush.msra.mxu0 0.0
    %301 = vmatpush.msra.mxu0 0.0
    %302 = vmatpush.msra.mxu0 0.0
    %303 = vmatpush.msra.mxu0 %v218
    %304 = vmatmul.f32.gmra.mxu0 %v209
    %v305 = vpop.f32.mrf.mxu0
    %v306 = vadd.f32 %v175, %v305
    %307 = vdwg.mxu0
    %308 = vmatpush.msra.mxu0 0.0
    %309 = vmatpush.msra.mxu0 0.0
    %310 = vmatpush.msra.mxu0 0.0
    %311 = vmatpush.msra.mxu0 0.0
    %312 = vmatpush.msra.mxu0 0.0
    %313 = vmatpush.msra.mxu0 0.0
    %314 = vmatpush.msra.mxu0 0.0
    %315 = vmatpush.msra.mxu0 0.0
    %316 = vmatpush.msra.mxu0 0.0
    %317 = vmatpush.msra.mxu0 0.0
    %318 = vmatpush.msra.mxu0 0.0
    %319 = vmatpush.msra.mxu0 0.0
    %320 = vmatpush.msra.mxu0 0.0
    %321 = vmatpush.msra.mxu0 0.0
    %322 = vmatpush.msra.mxu0 0.0
    %323 = vmatpush.msra.mxu0 %v220
    %324 = vmatmul.f32.gmra.mxu0 %v209
    %v325 = vpop.f32.mrf.mxu0
    %v326 = vadd.f32 %v176, %v325
    %327 = vdwg.mxu0
    %328 = vmatpush.msra.mxu0 0.0
    %329 = vmatpush.msra.mxu0 0.0
    %330 = vmatpush.msra.mxu0 0.0
    %331 = vmatpush.msra.mxu0 0.0
    %332 = vmatpush.msra.mxu0 0.0
    %333 = vmatpush.msra.mxu0 0.0
    %334 = vmatpush.msra.mxu0 0.0
    %335 = vmatpush.msra.mxu0 0.0
    %336 = vmatpush.msra.mxu0 0.0
    %337 = vmatpush.msra.mxu0 0.0
    %338 = vmatpush.msra.mxu0 0.0
    %339 = vmatpush.msra.mxu0 0.0
    %340 = vmatpush.msra.mxu0 0.0
    %341 = vmatpush.msra.mxu0 0.0
    %342 = vmatpush.msra.mxu0 0.0
    %343 = vmatpush.msra.mxu0 %v222
    %344 = vmatmul.f32.gmra.mxu0 %v209
    %v345 = vpop.f32.mrf.mxu0
    %v346 = vadd.f32 %v177, %v345
    %347 = vdwg.mxu0
    %348 = vmatpush.msra.mxu0 0.0
    %349 = vmatpush.msra.mxu0 0.0
    %350 = vmatpush.msra.mxu0 0.0
    %351 = vmatpush.msra.mxu0 0.0
    %352 = vmatpush.msra.mxu0 0.0
    %353 = vmatpush.msra.mxu0 0.0
    %354 = vmatpush.msra.mxu0 0.0
    %355 = vmatpush.msra.mxu0 0.0
    %356 = vmatpush.msra.mxu0 0.0
    %357 = vmatpush.msra.mxu0 0.0
    %358 = vmatpush.msra.mxu0 0.0
    %359 = vmatpush.msra.mxu0 0.0
    %360 = vmatpush.msra.mxu0 0.0
    %361 = vmatpush.msra.mxu0 0.0
    %362 = vmatpush.msra.mxu0 0.0
    %363 = vmatpush.msra.mxu0 %v224
    %364 = vmatmul.f32.gmra.mxu0 %v209
    %v365 = vpop.f32.mrf.mxu0
    %v366 = vadd.f32 %v178, %v365
    %367 = vdwg.mxu0
    %368 = vmatpush.msra.mxu0 0.0
    %369 = vmatpush.msra.mxu0 0.0
    %370 = vmatpush.msra.mxu0 0.0
    %371 = vmatpush.msra.mxu0 0.0
    %372 = vmatpush.msra.mxu0 0.0
    %373 = vmatpush.msra.mxu0 0.0
    %374 = vmatpush.msra.mxu0 0.0
    %375 = vmatpush.msra.mxu0 0.0
    %376 = vmatpush.msra.mxu0 0.0
    %377 = vmatpush.msra.mxu0 0.0
    %378 = vmatpush.msra.mxu0 0.0
    %379 = vmatpush.msra.mxu0 0.0
    %380 = vmatpush.msra.mxu0 0.0
    %381 = vmatpush.msra.mxu0 0.0
    %382 = vmatpush.msra.mxu0 0.0
    %383 = vmatpush.msra.mxu0 %v226
    %384 = vmatmul.f32.gmra.mxu0 %v209
    %v385 = vpop.f32.mrf.mxu0
    %v386 = vadd.f32 %v179, %v385
    %387 = vdwg.mxu0
    %v388 = vld [vmem:[#allocation7] sm:$0xff]
    %v389 = vld [vmem:[#allocation7 + $0x8] sm:$0xff]
    %v390 = vld [vmem:[#allocation7 + $0x10] sm:$0xff]
    %v391 = vld [vmem:[#allocation7 + $0x18] sm:$0xff]
    %v392 = vld [vmem:[#allocation7 + $0x20] sm:$0xff]
    %v393 = vld [vmem:[#allocation7 + $0x28] sm:$0xff]
    %v394 = vld [vmem:[#allocation7 + $0x30] sm:$0xff]
    %v395 = vld [vmem:[#allocation7 + $0x38] sm:$0xff]
    %v396 = vld [vmem:[#allocation7 + $0x40] sm:$0xff]
    %v397 = vld [vmem:[#allocation7 + $0x48] sm:$0xff]
    %v398 = vld [vmem:[#allocation7 + $0x50] sm:$0xff]
    %v399 = vld [vmem:[#allocation7 + $0x58] sm:$0xff]
    %v400 = vld [vmem:[#allocation7 + $0x60] sm:$0xff]
    %v401 = vld [vmem:[#allocation7 + $0x68] sm:$0xff]
    %v402 = vld [vmem:[#allocation7 + $0x70] sm:$0xff]
    %v403 = vld [vmem:[#allocation7 + $0x78] sm:$0xff]
    %v404 = vld [vmem:[#allocation7 + $0x80] sm:$0xff]
    %v405 = vld [vmem:[#allocation7 + $0x88] sm:$0xff]
    %v406 = vld [vmem:[#allocation7 + $0x90] sm:$0xff]
    %v407 = vld [vmem:[#allocation7 + $0x98] sm:$0xff]
    %v408 = vld [vmem:[#allocation7 + $0xa0] sm:$0xff]
    %v409 = vld [vmem:[#allocation7 + $0xa8] sm:$0xff]
    %v410 = vld [vmem:[#allocation7 + $0xb0] sm:$0xff]
    %v411 = vld [vmem:[#allocation7 + $0xb8] sm:$0xff]
    %v412 = vld [vmem:[#allocation7 + $0xc0] sm:$0xff]
    %v413 = vld [vmem:[#allocation7 + $0xc8] sm:$0xff]
    %v414 = vld [vmem:[#allocation7 + $0xd0] sm:$0xff]
    %v415 = vld [vmem:[#allocation7 + $0xd8] sm:$0xff]
    %v416 = vld [vmem:[#allocation7 + $0xe0] sm:$0xff]
    %v417 = vld [vmem:[#allocation7 + $0xe8] sm:$0xff]
    %v418 = vld [vmem:[#allocation7 + $0xf0] sm:$0xff]
    %v419 = vld [vmem:[#allocation7 + $0xf8] sm:$0xff]
    %v420 = vld [vmem:[#allocation7 + $0x100] sm:$0xff]
    %v421 = vld [vmem:[#allocation7 + $0x108] sm:$0xff]
    %v422 = vld [vmem:[#allocation7 + $0x110] sm:$0xff]
    %v423 = vld [vmem:[#allocation7 + $0x118] sm:$0xff]
    %v424 = vld [vmem:[#allocation7 + $0x120] sm:$0xff]
    %v425 = vld [vmem:[#allocation7 + $0x128] sm:$0xff]
    %v426 = vld [vmem:[#allocation7 + $0x130] sm:$0xff]
    %v427 = vld [vmem:[#allocation7 + $0x138] sm:$0xff]
    %v428 = vld [vmem:[#allocation7 + $0x140] sm:$0xff]
    %v429 = vld [vmem:[#allocation7 + $0x148] sm:$0xff]
    %v430 = vld [vmem:[#allocation7 + $0x150] sm:$0xff]
    %v431 = vld [vmem:[#allocation7 + $0x158] sm:$0xff]
    %v432 = vld [vmem:[#allocation7 + $0x160] sm:$0xff]
    %v433 = vld [vmem:[#allocation7 + $0x168] sm:$0xff]
    %v434 = vld [vmem:[#allocation7 + $0x170] sm:$0xff]
    %v435 = vld [vmem:[#allocation7 + $0x178] sm:$0xff]
    %v436 = vld [vmem:[#allocation7 + $0x180] sm:$0xff]
    %v437 = vld [vmem:[#allocation7 + $0x188] sm:$0xff]
    %v438 = vld [vmem:[#allocation7 + $0x190] sm:$0xff]
    %v439 = vld [vmem:[#allocation7 + $0x198] sm:$0xff]
    %v440 = vld [vmem:[#allocation7 + $0x1a0] sm:$0xff]
    %v441 = vld [vmem:[#allocation7 + $0x1a8] sm:$0xff]
    %v442 = vld [vmem:[#allocation7 + $0x1b0] sm:$0xff]
    %v443 = vld [vmem:[#allocation7 + $0x1b8] sm:$0xff]
    %v444 = vld [vmem:[#allocation7 + $0x1c0] sm:$0xff]
    %v445 = vld [vmem:[#allocation7 + $0x1c8] sm:$0xff]
    %v446 = vld [vmem:[#allocation7 + $0x1d0] sm:$0xff]
    %v447 = vld [vmem:[#allocation7 + $0x1d8] sm:$0xff]
    %v448 = vld [vmem:[#allocation7 + $0x1e0] sm:$0xff]
    %v449 = vld [vmem:[#allocation7 + $0x1e8] sm:$0xff]
    %v450 = vld [vmem:[#allocation7 + $0x1f0] sm:$0xff]
    %v451 = vld [vmem:[#allocation7 + $0x1f8] sm:$0xff]
    %v452 = vld [vmem:[#allocation7 + $0x200] sm:$0xff]
    %v453 = vld [vmem:[#allocation7 + $0x208] sm:$0xff]
    %v454 = vld [vmem:[#allocation7 + $0x210] sm:$0xff]
    %v455 = vld [vmem:[#allocation7 + $0x218] sm:$0xff]
    %v456 = vld [vmem:[#allocation7 + $0x220] sm:$0xff]
    %v457 = vld [vmem:[#allocation7 + $0x228] sm:$0xff]
    %v458 = vld [vmem:[#allocation7 + $0x230] sm:$0xff]
    %v459 = vld [vmem:[#allocation7 + $0x238] sm:$0xff]
    %v460 = vld [vmem:[#allocation7 + $0x240] sm:$0xff]
    %v461 = vld [vmem:[#allocation7 + $0x248] sm:$0xff]
    %v462 = vld [vmem:[#allocation7 + $0x250] sm:$0xff]
    %v463 = vld [vmem:[#allocation7 + $0x258] sm:$0xff]
    %v464 = vld [vmem:[#allocation7 + $0x260] sm:$0xff]
    %v465 = vld [vmem:[#allocation7 + $0x268] sm:$0xff]
    %v466 = vld [vmem:[#allocation7 + $0x270] sm:$0xff]
    %v467 = vld [vmem:[#allocation7 + $0x278] sm:$0xff]
    %v468 = vld [vmem:[#allocation7 + $0x280] sm:$0xff]
    %v469 = vld [vmem:[#allocation7 + $0x288] sm:$0xff]
    %v470 = vld [vmem:[#allocation7 + $0x290] sm:$0xff]
    %v471 = vld [vmem:[#allocation7 + $0x298] sm:$0xff]
    %v472 = vld [vmem:[#allocation7 + $0x2a0] sm:$0xff]
    %v473 = vld [vmem:[#allocation7 + $0x2a8] sm:$0xff]
    %v474 = vld [vmem:[#allocation7 + $0x2b0] sm:$0xff]
    %v475 = vld [vmem:[#allocation7 + $0x2b8] sm:$0xff]
    %v476 = vld [vmem:[#allocation7 + $0x2c0] sm:$0xff]
    %v477 = vld [vmem:[#allocation7 + $0x2c8] sm:$0xff]
    %v478 = vld [vmem:[#allocation7 + $0x2d0] sm:$0xff]
    %v479 = vld [vmem:[#allocation7 + $0x2d8] sm:$0xff]
    %v480 = vld [vmem:[#allocation7 + $0x2e0] sm:$0xff]
    %v481 = vld [vmem:[#allocation7 + $0x2e8] sm:$0xff]
    %v482 = vld [vmem:[#allocation7 + $0x2f0] sm:$0xff]
    %v483 = vld [vmem:[#allocation7 + $0x2f8] sm:$0xff]
    %v484 = vld [vmem:[#allocation7 + $0x300] sm:$0xff]
    %v485 = vld [vmem:[#allocation7 + $0x308] sm:$0xff]
    %v486 = vld [vmem:[#allocation7 + $0x310] sm:$0xff]
    %v487 = vld [vmem:[#allocation7 + $0x318] sm:$0xff]
    %v488 = vld [vmem:[#allocation7 + $0x320] sm:$0xff]
    %v489 = vld [vmem:[#allocation7 + $0x328] sm:$0xff]
    %v490 = vld [vmem:[#allocation7 + $0x330] sm:$0xff]
    %v491 = vld [vmem:[#allocation7 + $0x338] sm:$0xff]
    %v492 = vld [vmem:[#allocation7 + $0x340] sm:$0xff]
    %v493 = vld [vmem:[#allocation7 + $0x348] sm:$0xff]
    %v494 = vld [vmem:[#allocation7 + $0x350] sm:$0xff]
    %v495 = vld [vmem:[#allocation7 + $0x358] sm:$0xff]
    %v496 = vld [vmem:[#allocation7 + $0x360] sm:$0xff]
    %v497 = vld [vmem:[#allocation7 + $0x368] sm:$0xff]
    %v498 = vld [vmem:[#allocation7 + $0x370] sm:$0xff]
    %v499 = vld [vmem:[#allocation7 + $0x378] sm:$0xff]
    %v500 = vld [vmem:[#allocation7 + $0x380] sm:$0xff]
    %v501 = vld [vmem:[#allocation7 + $0x388] sm:$0xff]
    %v502 = vld [vmem:[#allocation7 + $0x390] sm:$0xff]
    %v503 = vld [vmem:[#allocation7 + $0x398] sm:$0xff]
    %v504 = vld [vmem:[#allocation7 + $0x3a0] sm:$0xff]
    %v505 = vld [vmem:[#allocation7 + $0x3a8] sm:$0xff]
    %v506 = vld [vmem:[#allocation7 + $0x3b0] sm:$0xff]
    %v507 = vld [vmem:[#allocation7 + $0x3b8] sm:$0xff]
    %v508 = vld [vmem:[#allocation7 + $0x3c0] sm:$0xff]
    %v509 = vld [vmem:[#allocation7 + $0x3c8] sm:$0xff]
    %v510 = vld [vmem:[#allocation7 + $0x3d0] sm:$0xff]
    %v511 = vld [vmem:[#allocation7 + $0x3d8] sm:$0xff]
    %v512 = vld [vmem:[#allocation7 + $0x3e0] sm:$0xff]
    %v513 = vld [vmem:[#allocation7 + $0x3e8] sm:$0xff]
    %v514 = vld [vmem:[#allocation7 + $0x3f0] sm:$0xff]
    %v515 = vld [vmem:[#allocation7 + $0x3f8] sm:$0xff]
    %v516 = vld [vmem:[#allocation7 + $0x400] sm:$0xff]
    %v517 = vld [vmem:[#allocation7 + $0x408] sm:$0xff]
    %v518 = vld [vmem:[#allocation7 + $0x410] sm:$0xff]
    %v519 = vld [vmem:[#allocation7 + $0x418] sm:$0xff]
    %v520 = vld [vmem:[#allocation7 + $0x420] sm:$0xff]
    %v521 = vld [vmem:[#allocation7 + $0x428] sm:$0xff]
    %v522 = vld [vmem:[#allocation7 + $0x430] sm:$0xff]
    %v523 = vld [vmem:[#allocation7 + $0x438] sm:$0xff]
    %v524 = vld [vmem:[#allocation7 + $0x440] sm:$0xff]
    %v525 = vld [vmem:[#allocation7 + $0x448] sm:$0xff]
    %v526 = vld [vmem:[#allocation7 + $0x450] sm:$0xff]
    %v527 = vld [vmem:[#allocation7 + $0x458] sm:$0xff]
    %v528 = vld [vmem:[#allocation7 + $0x460] sm:$0xff]
    %v529 = vld [vmem:[#allocation7 + $0x468] sm:$0xff]
    %v530 = vld [vmem:[#allocation7 + $0x470] sm:$0xff]
    %v531 = vld [vmem:[#allocation7 + $0x478] sm:$0xff]
    %v532 = vld [vmem:[#allocation7 + $0x480] sm:$0xff]
    %v533 = vld [vmem:[#allocation7 + $0x488] sm:$0xff]
    %v534 = vld [vmem:[#allocation7 + $0x490] sm:$0xff]
    %v535 = vld [vmem:[#allocation7 + $0x498] sm:$0xff]
    %v536 = vld [vmem:[#allocation7 + $0x4a0] sm:$0xff]
    %v537 = vld [vmem:[#allocation7 + $0x4a8] sm:$0xff]
    %v538 = vld [vmem:[#allocation7 + $0x4b0] sm:$0xff]
    %v539 = vld [vmem:[#allocation7 + $0x4b8] sm:$0xff]
    %v540 = vld [vmem:[#allocation7 + $0x4c0] sm:$0xff]
    %v541 = vld [vmem:[#allocation7 + $0x4c8] sm:$0xff]
    %v542 = vld [vmem:[#allocation7 + $0x4d0] sm:$0xff]
    %v543 = vld [vmem:[#allocation7 + $0x4d8] sm:$0xff]
    %v544 = vld [vmem:[#allocation7 + $0x4e0] sm:$0xff]
    %v545 = vld [vmem:[#allocation7 + $0x4e8] sm:$0xff]
    %v546 = vld [vmem:[#allocation7 + $0x4f0] sm:$0xff]
    %v547 = vld [vmem:[#allocation7 + $0x4f8] sm:$0xff]
    %v548 = vld [vmem:[#allocation7 + $0x500] sm:$0xff]
    %v549 = vld [vmem:[#allocation7 + $0x508] sm:$0xff]
    %v550 = vld [vmem:[#allocation7 + $0x510] sm:$0xff]
    %v551 = vld [vmem:[#allocation7 + $0x518] sm:$0xff]
    %v552 = vld [vmem:[#allocation7 + $0x520] sm:$0xff]
    %v553 = vld [vmem:[#allocation7 + $0x528] sm:$0xff]
    %v554 = vld [vmem:[#allocation7 + $0x530] sm:$0xff]
    %v555 = vld [vmem:[#allocation7 + $0x538] sm:$0xff]
    %v556 = vld [vmem:[#allocation7 + $0x540] sm:$0xff]
    %v557 = vld [vmem:[#allocation7 + $0x548] sm:$0xff]
    %v558 = vld [vmem:[#allocation7 + $0x550] sm:$0xff]
    %v559 = vld [vmem:[#allocation7 + $0x558] sm:$0xff]
    %v560 = vld [vmem:[#allocation7 + $0x560] sm:$0xff]
    %v561 = vld [vmem:[#allocation7 + $0x568] sm:$0xff]
    %v562 = vld [vmem:[#allocation7 + $0x570] sm:$0xff]
    %v563 = vld [vmem:[#allocation7 + $0x578] sm:$0xff]
    %v564 = vld [vmem:[#allocation7 + $0x580] sm:$0xff]
    %v565 = vld [vmem:[#allocation7 + $0x588] sm:$0xff]
    %v566 = vld [vmem:[#allocation7 + $0x590] sm:$0xff]
    %v567 = vld [vmem:[#allocation7 + $0x598] sm:$0xff]
    %v568 = vld [vmem:[#allocation7 + $0x5a0] sm:$0xff]
    %v569 = vld [vmem:[#allocation7 + $0x5a8] sm:$0xff]
    %v570 = vld [vmem:[#allocation7 + $0x5b0] sm:$0xff]
    %v571 = vld [vmem:[#allocation7 + $0x5b8] sm:$0xff]
    %v572 = vld [vmem:[#allocation7 + $0x5c0] sm:$0xff]
    %v573 = vld [vmem:[#allocation7 + $0x5c8] sm:$0xff]
    %v574 = vld [vmem:[#allocation7 + $0x5d0] sm:$0xff]
    %v575 = vld [vmem:[#allocation7 + $0x5d8] sm:$0xff]
    %v576 = vld [vmem:[#allocation7 + $0x5e0] sm:$0xff]
    %v577 = vld [vmem:[#allocation7 + $0x5e8] sm:$0xff]
    %v578 = vld [vmem:[#allocation7 + $0x5f0] sm:$0xff]
    %v579 = vld [vmem:[#allocation7 + $0x5f8] sm:$0xff]
    %v580 = vld [vmem:[#allocation7 + $0x600] sm:$0xff]
    %v581 = vld [vmem:[#allocation7 + $0x608] sm:$0xff]
    %v582 = vld [vmem:[#allocation7 + $0x610] sm:$0xff]
    %v583 = vld [vmem:[#allocation7 + $0x618] sm:$0xff]
    %v584 = vld [vmem:[#allocation7 + $0x620] sm:$0xff]
    %v585 = vld [vmem:[#allocation7 + $0x628] sm:$0xff]
    %v586 = vld [vmem:[#allocation7 + $0x630] sm:$0xff]
    %v587 = vld [vmem:[#allocation7 + $0x638] sm:$0xff]
    %v588 = vld [vmem:[#allocation7 + $0x640] sm:$0xff]
    %v589 = vld [vmem:[#allocation7 + $0x648] sm:$0xff]
    %v590 = vld [vmem:[#allocation7 + $0x650] sm:$0xff]
    %v591 = vld [vmem:[#allocation7 + $0x658] sm:$0xff]
    %v592 = vld [vmem:[#allocation7 + $0x660] sm:$0xff]
    %v593 = vld [vmem:[#allocation7 + $0x668] sm:$0xff]
    %v594 = vld [vmem:[#allocation7 + $0x670] sm:$0xff]
    %v595 = vld [vmem:[#allocation7 + $0x678] sm:$0xff]
    %v596 = vld [vmem:[#allocation7 + $0x680] sm:$0xff]
    %v597 = vld [vmem:[#allocation7 + $0x688] sm:$0xff]
    %v598 = vld [vmem:[#allocation7 + $0x690] sm:$0xff]
    %v599 = vld [vmem:[#allocation7 + $0x698] sm:$0xff]
    %v600 = vld [vmem:[#allocation7 + $0x6a0] sm:$0xff]
    %v601 = vld [vmem:[#allocation7 + $0x6a8] sm:$0xff]
    %v602 = vld [vmem:[#allocation7 + $0x6b0] sm:$0xff]
    %v603 = vld [vmem:[#allocation7 + $0x6b8] sm:$0xff]
    %v604 = vld [vmem:[#allocation7 + $0x6c0] sm:$0xff]
    %v605 = vld [vmem:[#allocation7 + $0x6c8] sm:$0xff]
    %v606 = vld [vmem:[#allocation7 + $0x6d0] sm:$0xff]
    %v607 = vld [vmem:[#allocation7 + $0x6d8] sm:$0xff]
    %v608 = vld [vmem:[#allocation7 + $0x6e0] sm:$0xff]
    %v609 = vld [vmem:[#allocation7 + $0x6e8] sm:$0xff]
    %v610 = vld [vmem:[#allocation7 + $0x6f0] sm:$0xff]
    %v611 = vld [vmem:[#allocation7 + $0x6f8] sm:$0xff]
    %v612 = vld [vmem:[#allocation7 + $0x700] sm:$0xff]
    %v613 = vld [vmem:[#allocation7 + $0x708] sm:$0xff]
    %v614 = vld [vmem:[#allocation7 + $0x710] sm:$0xff]
    %v615 = vld [vmem:[#allocation7 + $0x718] sm:$0xff]
    %v616 = vld [vmem:[#allocation7 + $0x720] sm:$0xff]
    %v617 = vld [vmem:[#allocation7 + $0x728] sm:$0xff]
    %v618 = vld [vmem:[#allocation7 + $0x730] sm:$0xff]
    %v619 = vld [vmem:[#allocation7 + $0x738] sm:$0xff]
    %v620 = vld [vmem:[#allocation7 + $0x740] sm:$0xff]
    %v621 = vld [vmem:[#allocation7 + $0x748] sm:$0xff]
    %v622 = vld [vmem:[#allocation7 + $0x750] sm:$0xff]
    %v623 = vld [vmem:[#allocation7 + $0x758] sm:$0xff]
    %v624 = vld [vmem:[#allocation7 + $0x760] sm:$0xff]
    %v625 = vld [vmem:[#allocation7 + $0x768] sm:$0xff]
    %v626 = vld [vmem:[#allocation7 + $0x770] sm:$0xff]
    %v627 = vld [vmem:[#allocation7 + $0x778] sm:$0xff]
    %v628 = vld [vmem:[#allocation7 + $0x780] sm:$0xff]
    %v629 = vld [vmem:[#allocation7 + $0x788] sm:$0xff]
    %v630 = vld [vmem:[#allocation7 + $0x790] sm:$0xff]
    %v631 = vld [vmem:[#allocation7 + $0x798] sm:$0xff]
    %v632 = vld [vmem:[#allocation7 + $0x7a0] sm:$0xff]
    %v633 = vld [vmem:[#allocation7 + $0x7a8] sm:$0xff]
    %v634 = vld [vmem:[#allocation7 + $0x7b0] sm:$0xff]
    %v635 = vld [vmem:[#allocation7 + $0x7b8] sm:$0xff]
    %v636 = vld [vmem:[#allocation7 + $0x7c0] sm:$0xff]
    %v637 = vld [vmem:[#allocation7 + $0x7c8] sm:$0xff]
    %v638 = vld [vmem:[#allocation7 + $0x7d0] sm:$0xff]
    %v639 = vld [vmem:[#allocation7 + $0x7d8] sm:$0xff]
    %v640 = vld [vmem:[#allocation7 + $0x7e0] sm:$0xff]
    %v641 = vld [vmem:[#allocation7 + $0x7e8] sm:$0xff]
    %v642 = vld [vmem:[#allocation7 + $0x7f0] sm:$0xff]
    %v643 = vld [vmem:[#allocation7 + $0x7f8] sm:$0xff]
    %v644 = vld [vmem:[#allocation7 + $0x800] sm:$0xff]
    %v645 = vld [vmem:[#allocation7 + $0x808] sm:$0xff]
    %v646 = vld [vmem:[#allocation7 + $0x810] sm:$0xff]
    %v647 = vld [vmem:[#allocation7 + $0x818] sm:$0xff]
    %v648 = vld [vmem:[#allocation7 + $0x820] sm:$0xff]
    %v649 = vld [vmem:[#allocation7 + $0x828] sm:$0xff]
    %v650 = vld [vmem:[#allocation7 + $0x830] sm:$0xff]
    %v651 = vld [vmem:[#allocation7 + $0x838] sm:$0xff]
    %v652 = vld [vmem:[#allocation7 + $0x840] sm:$0xff]
    %v653 = vld [vmem:[#allocation7 + $0x848] sm:$0xff]
    %v654 = vld [vmem:[#allocation7 + $0x850] sm:$0xff]
    %v655 = vld [vmem:[#allocation7 + $0x858] sm:$0xff]
    %v656 = vld [vmem:[#allocation7 + $0x860] sm:$0xff]
    %v657 = vld [vmem:[#allocation7 + $0x868] sm:$0xff]
    %v658 = vld [vmem:[#allocation7 + $0x870] sm:$0xff]
    %v659 = vld [vmem:[#allocation7 + $0x878] sm:$0xff]
    %v660 = vld [vmem:[#allocation7 + $0x880] sm:$0xff]
    %v661 = vld [vmem:[#allocation7 + $0x888] sm:$0xff]
    %v662 = vld [vmem:[#allocation7 + $0x890] sm:$0xff]
    %v663 = vld [vmem:[#allocation7 + $0x898] sm:$0xff]
    %v664 = vld [vmem:[#allocation7 + $0x8a0] sm:$0xff]
    %v665 = vld [vmem:[#allocation7 + $0x8a8] sm:$0xff]
    %v666 = vld [vmem:[#allocation7 + $0x8b0] sm:$0xff]
    %v667 = vld [vmem:[#allocation7 + $0x8b8] sm:$0xff]
    %v668 = vld [vmem:[#allocation7 + $0x8c0] sm:$0xff]
    %v669 = vld [vmem:[#allocation7 + $0x8c8] sm:$0xff]
    %v670 = vld [vmem:[#allocation7 + $0x8d0] sm:$0xff]
    %v671 = vld [vmem:[#allocation7 + $0x8d8] sm:$0xff]
    %v672 = vld [vmem:[#allocation7 + $0x8e0] sm:$0xff]
    %v673 = vld [vmem:[#allocation7 + $0x8e8] sm:$0xff]
    %v674 = vld [vmem:[#allocation7 + $0x8f0] sm:$0xff]
    %v675 = vld [vmem:[#allocation7 + $0x8f8] sm:$0xff]
    %v676 = vld [vmem:[#allocation7 + $0x900] sm:$0xff]
    %v677 = vld [vmem:[#allocation7 + $0x908] sm:$0xff]
    %v678 = vld [vmem:[#allocation7 + $0x910] sm:$0xff]
    %v679 = vld [vmem:[#allocation7 + $0x918] sm:$0xff]
    %v680 = vld [vmem:[#allocation7 + $0x920] sm:$0xff]
    %v681 = vld [vmem:[#allocation7 + $0x928] sm:$0xff]
    %v682 = vld [vmem:[#allocation7 + $0x930] sm:$0xff]
    %v683 = vld [vmem:[#allocation7 + $0x938] sm:$0xff]
    %v684 = vld [vmem:[#allocation7 + $0x940] sm:$0xff]
    %v685 = vld [vmem:[#allocation7 + $0x948] sm:$0xff]
    %v686 = vld [vmem:[#allocation7 + $0x950] sm:$0xff]
    %v687 = vld [vmem:[#allocation7 + $0x958] sm:$0xff]
    %v688 = vld [vmem:[#allocation7 + $0x960] sm:$0xff]
    %v689 = vld [vmem:[#allocation7 + $0x968] sm:$0xff]
    %v690 = vld [vmem:[#allocation7 + $0x970] sm:$0xff]
    %v691 = vld [vmem:[#allocation7 + $0x978] sm:$0xff]
    %v692 = vld [vmem:[#allocation7 + $0x980] sm:$0xff]
    %v693 = vld [vmem:[#allocation7 + $0x988] sm:$0xff]
    %v694 = vld [vmem:[#allocation7 + $0x990] sm:$0xff]
    %v695 = vld [vmem:[#allocation7 + $0x998] sm:$0xff]
    %v696 = vld [vmem:[#allocation7 + $0x9a0] sm:$0xff]
    %v697 = vld [vmem:[#allocation7 + $0x9a8] sm:$0xff]
    %v698 = vld [vmem:[#allocation7 + $0x9b0] sm:$0xff]
    %v699 = vld [vmem:[#allocation7 + $0x9b8] sm:$0xff]
    %v700 = vld [vmem:[#allocation7 + $0x9c0] sm:$0xff]
    %v701 = vld [vmem:[#allocation7 + $0x9c8] sm:$0xff]
    %v702 = vld [vmem:[#allocation7 + $0x9d0] sm:$0xff]
    %v703 = vld [vmem:[#allocation7 + $0x9d8] sm:$0xff]
    %v704 = vld [vmem:[#allocation7 + $0x9e0] sm:$0xff]
    %v705 = vld [vmem:[#allocation7 + $0x9e8] sm:$0xff]
    %v706 = vld [vmem:[#allocation7 + $0x9f0] sm:$0xff]
    %v707 = vld [vmem:[#allocation7 + $0x9f8] sm:$0xff]
    %v708 = vld [vmem:[#allocation7 + $0xa00] sm:$0xff]
    %v709 = vld [vmem:[#allocation7 + $0xa08] sm:$0xff]
    %v710 = vld [vmem:[#allocation7 + $0xa10] sm:$0xff]
    %v711 = vld [vmem:[#allocation7 + $0xa18] sm:$0xff]
    %v712 = vld [vmem:[#allocation7 + $0xa20] sm:$0xff]
    %v713 = vld [vmem:[#allocation7 + $0xa28] sm:$0xff]
    %v714 = vld [vmem:[#allocation7 + $0xa30] sm:$0xff]
    %v715 = vld [vmem:[#allocation7 + $0xa38] sm:$0xff]
    %v716 = vld [vmem:[#allocation7 + $0xa40] sm:$0xff]
    %v717 = vld [vmem:[#allocation7 + $0xa48] sm:$0xff]
    %v718 = vld [vmem:[#allocation7 + $0xa50] sm:$0xff]
    %v719 = vld [vmem:[#allocation7 + $0xa58] sm:$0xff]
    %v720 = vld [vmem:[#allocation7 + $0xa60] sm:$0xff]
    %v721 = vld [vmem:[#allocation7 + $0xa68] sm:$0xff]
    %v722 = vld [vmem:[#allocation7 + $0xa70] sm:$0xff]
    %v723 = vld [vmem:[#allocation7 + $0xa78] sm:$0xff]
    %v724 = vld [vmem:[#allocation7 + $0xa80] sm:$0xff]
    %v725 = vld [vmem:[#allocation7 + $0xa88] sm:$0xff]
    %v726 = vld [vmem:[#allocation7 + $0xa90] sm:$0xff]
    %v727 = vld [vmem:[#allocation7 + $0xa98] sm:$0xff]
    %v728 = vld [vmem:[#allocation7 + $0xaa0] sm:$0xff]
    %v729 = vld [vmem:[#allocation7 + $0xaa8] sm:$0xff]
    %v730 = vld [vmem:[#allocation7 + $0xab0] sm:$0xff]
    %v731 = vld [vmem:[#allocation7 + $0xab8] sm:$0xff]
    %v732 = vld [vmem:[#allocation7 + $0xac0] sm:$0xff]
    %v733 = vld [vmem:[#allocation7 + $0xac8] sm:$0xff]
    %v734 = vld [vmem:[#allocation7 + $0xad0] sm:$0xff]
    %v735 = vld [vmem:[#allocation7 + $0xad8] sm:$0xff]
    %v736 = vld [vmem:[#allocation7 + $0xae0] sm:$0xff]
    %v737 = vld [vmem:[#allocation7 + $0xae8] sm:$0xff]
    %v738 = vld [vmem:[#allocation7 + $0xaf0] sm:$0xff]
    %v739 = vld [vmem:[#allocation7 + $0xaf8] sm:$0xff]
    %v740 = vld [vmem:[#allocation7 + $0xb00] sm:$0xff]
    %v741 = vld [vmem:[#allocation7 + $0xb08] sm:$0xff]
    %v742 = vld [vmem:[#allocation7 + $0xb10] sm:$0xff]
    %v743 = vld [vmem:[#allocation7 + $0xb18] sm:$0xff]
    %v744 = vld [vmem:[#allocation7 + $0xb20] sm:$0xff]
    %v745 = vld [vmem:[#allocation7 + $0xb28] sm:$0xff]
    %v746 = vld [vmem:[#allocation7 + $0xb30] sm:$0xff]
    %v747 = vld [vmem:[#allocation7 + $0xb38] sm:$0xff]
    %v748 = vld [vmem:[#allocation7 + $0xb40] sm:$0xff]
    %v749 = vld [vmem:[#allocation7 + $0xb48] sm:$0xff]
    %v750 = vld [vmem:[#allocation7 + $0xb50] sm:$0xff]
    %v751 = vld [vmem:[#allocation7 + $0xb58] sm:$0xff]
    %v752 = vld [vmem:[#allocation7 + $0xb60] sm:$0xff]
    %v753 = vld [vmem:[#allocation7 + $0xb68] sm:$0xff]
    %v754 = vld [vmem:[#allocation7 + $0xb70] sm:$0xff]
    %v755 = vld [vmem:[#allocation7 + $0xb78] sm:$0xff]
    %v756 = vld [vmem:[#allocation7 + $0xb80] sm:$0xff]
    %v757 = vld [vmem:[#allocation7 + $0xb88] sm:$0xff]
    %v758 = vld [vmem:[#allocation7 + $0xb90] sm:$0xff]
    %v759 = vld [vmem:[#allocation7 + $0xb98] sm:$0xff]
    %v760 = vld [vmem:[#allocation7 + $0xba0] sm:$0xff]
    %v761 = vld [vmem:[#allocation7 + $0xba8] sm:$0xff]
    %v762 = vld [vmem:[#allocation7 + $0xbb0] sm:$0xff]
    %v763 = vld [vmem:[#allocation7 + $0xbb8] sm:$0xff]
    %v764 = vld [vmem:[#allocation7 + $0xbc0] sm:$0xff]
    %v765 = vld [vmem:[#allocation7 + $0xbc8] sm:$0xff]
    %v766 = vld [vmem:[#allocation7 + $0xbd0] sm:$0xff]
    %v767 = vld [vmem:[#allocation7 + $0xbd8] sm:$0xff]
    %v768 = vld [vmem:[#allocation7 + $0xbe0] sm:$0xff]
    %v769 = vld [vmem:[#allocation7 + $0xbe8] sm:$0xff]
    %v770 = vld [vmem:[#allocation7 + $0xbf0] sm:$0xff]
    %v771 = vld [vmem:[#allocation7 + $0xbf8] sm:$0xff]
    %v772 = vld [vmem:[#allocation7 + $0xc00] sm:$0xff]
    %v773 = vld [vmem:[#allocation7 + $0xc08] sm:$0xff]
    %v774 = vld [vmem:[#allocation7 + $0xc10] sm:$0xff]
    %v775 = vld [vmem:[#allocation7 + $0xc18] sm:$0xff]
    %v776 = vld [vmem:[#allocation7 + $0xc20] sm:$0xff]
    %v777 = vld [vmem:[#allocation7 + $0xc28] sm:$0xff]
    %v778 = vld [vmem:[#allocation7 + $0xc30] sm:$0xff]
    %v779 = vld [vmem:[#allocation7 + $0xc38] sm:$0xff]
    %v780 = vld [vmem:[#allocation7 + $0xc40] sm:$0xff]
    %v781 = vld [vmem:[#allocation7 + $0xc48] sm:$0xff]
    %v782 = vld [vmem:[#allocation7 + $0xc50] sm:$0xff]
    %v783 = vld [vmem:[#allocation7 + $0xc58] sm:$0xff]
    %v784 = vld [vmem:[#allocation7 + $0xc60] sm:$0xff]
    %v785 = vld [vmem:[#allocation7 + $0xc68] sm:$0xff]
    %v786 = vld [vmem:[#allocation7 + $0xc70] sm:$0xff]
    %v787 = vld [vmem:[#allocation7 + $0xc78] sm:$0xff]
    %v788 = vld [vmem:[#allocation7 + $0xc80] sm:$0xff]
    %v789 = vld [vmem:[#allocation7 + $0xc88] sm:$0xff]
    %v790 = vld [vmem:[#allocation7 + $0xc90] sm:$0xff]
    %v791 = vld [vmem:[#allocation7 + $0xc98] sm:$0xff]
    %v792 = vld [vmem:[#allocation7 + $0xca0] sm:$0xff]
    %v793 = vld [vmem:[#allocation7 + $0xca8] sm:$0xff]
    %v794 = vld [vmem:[#allocation7 + $0xcb0] sm:$0xff]
    %v795 = vld [vmem:[#allocation7 + $0xcb8] sm:$0xff]
    %v796 = vld [vmem:[#allocation7 + $0xcc0] sm:$0xff]
    %v797 = vld [vmem:[#allocation7 + $0xcc8] sm:$0xff]
    %v798 = vld [vmem:[#allocation7 + $0xcd0] sm:$0xff]
    %v799 = vld [vmem:[#allocation7 + $0xcd8] sm:$0xff]
    %v800 = vld [vmem:[#allocation7 + $0xce0] sm:$0xff]
    %v801 = vld [vmem:[#allocation7 + $0xce8] sm:$0xff]
    %v802 = vld [vmem:[#allocation7 + $0xcf0] sm:$0xff]
    %v803 = vld [vmem:[#allocation7 + $0xcf8] sm:$0xff]
    %v804 = vld [vmem:[#allocation7 + $0xd00] sm:$0xff]
    %v805 = vld [vmem:[#allocation7 + $0xd08] sm:$0xff]
    %v806 = vld [vmem:[#allocation7 + $0xd10] sm:$0xff]
    %v807 = vld [vmem:[#allocation7 + $0xd18] sm:$0xff]
    %v808 = vld [vmem:[#allocation7 + $0xd20] sm:$0xff]
    %v809 = vld [vmem:[#allocation7 + $0xd28] sm:$0xff]
    %v810 = vld [vmem:[#allocation7 + $0xd30] sm:$0xff]
    %v811 = vld [vmem:[#allocation7 + $0xd38] sm:$0xff]
    %v812 = vld [vmem:[#allocation7 + $0xd40] sm:$0xff]
    %v813 = vld [vmem:[#allocation7 + $0xd48] sm:$0xff]
    %v814 = vld [vmem:[#allocation7 + $0xd50] sm:$0xff]
    %v815 = vld [vmem:[#allocation7 + $0xd58] sm:$0xff]
    %v816 = vld [vmem:[#allocation7 + $0xd60] sm:$0xff]
    %v817 = vld [vmem:[#allocation7 + $0xd68] sm:$0xff]
    %v818 = vld [vmem:[#allocation7 + $0xd70] sm:$0xff]
    %v819 = vld [vmem:[#allocation7 + $0xd78] sm:$0xff]
    %v820 = vld [vmem:[#allocation7 + $0xd80] sm:$0xff]
    %v821 = vld [vmem:[#allocation7 + $0xd88] sm:$0xff]
    %v822 = vld [vmem:[#allocation7 + $0xd90] sm:$0xff]
    %v823 = vld [vmem:[#allocation7 + $0xd98] sm:$0xff]
    %v824 = vld [vmem:[#allocation7 + $0xda0] sm:$0xff]
    %v825 = vld [vmem:[#allocation7 + $0xda8] sm:$0xff]
    %v826 = vld [vmem:[#allocation7 + $0xdb0] sm:$0xff]
    %v827 = vld [vmem:[#allocation7 + $0xdb8] sm:$0xff]
    %v828 = vld [vmem:[#allocation7 + $0xdc0] sm:$0xff]
    %v829 = vld [vmem:[#allocation7 + $0xdc8] sm:$0xff]
    %v830 = vld [vmem:[#allocation7 + $0xdd0] sm:$0xff]
    %v831 = vld [vmem:[#allocation7 + $0xdd8] sm:$0xff]
    %v832 = vld [vmem:[#allocation7 + $0xde0] sm:$0xff]
    %v833 = vld [vmem:[#allocation7 + $0xde8] sm:$0xff]
    %v834 = vld [vmem:[#allocation7 + $0xdf0] sm:$0xff]
    %v835 = vld [vmem:[#allocation7 + $0xdf8] sm:$0xff]
    %v836 = vld [vmem:[#allocation7 + $0xe00] sm:$0xff]
    %v837 = vld [vmem:[#allocation7 + $0xe08] sm:$0xff]
    %v838 = vld [vmem:[#allocation7 + $0xe10] sm:$0xff]
    %v839 = vld [vmem:[#allocation7 + $0xe18] sm:$0xff]
    %v840 = vld [vmem:[#allocation7 + $0xe20] sm:$0xff]
    %v841 = vld [vmem:[#allocation7 + $0xe28] sm:$0xff]
    %v842 = vld [vmem:[#allocation7 + $0xe30] sm:$0xff]
    %v843 = vld [vmem:[#allocation7 + $0xe38] sm:$0xff]
    %v844 = vld [vmem:[#allocation7 + $0xe40] sm:$0xff]
    %v845 = vld [vmem:[#allocation7 + $0xe48] sm:$0xff]
    %v846 = vld [vmem:[#allocation7 + $0xe50] sm:$0xff]
    %v847 = vld [vmem:[#allocation7 + $0xe58] sm:$0xff]
    %v848 = vld [vmem:[#allocation7 + $0xe60] sm:$0xff]
    %v849 = vld [vmem:[#allocation7 + $0xe68] sm:$0xff]
    %v850 = vld [vmem:[#allocation7 + $0xe70] sm:$0xff]
    %v851 = vld [vmem:[#allocation7 + $0xe78] sm:$0xff]
    %v852 = vld [vmem:[#allocation7 + $0xe80] sm:$0xff]
    %v853 = vld [vmem:[#allocation7 + $0xe88] sm:$0xff]
    %v854 = vld [vmem:[#allocation7 + $0xe90] sm:$0xff]
    %v855 = vld [vmem:[#allocation7 + $0xe98] sm:$0xff]
    %v856 = vld [vmem:[#allocation7 + $0xea0] sm:$0xff]
    %v857 = vld [vmem:[#allocation7 + $0xea8] sm:$0xff]
    %v858 = vld [vmem:[#allocation7 + $0xeb0] sm:$0xff]
    %v859 = vld [vmem:[#allocation7 + $0xeb8] sm:$0xff]
    %v860 = vld [vmem:[#allocation7 + $0xec0] sm:$0xff]
    %v861 = vld [vmem:[#allocation7 + $0xec8] sm:$0xff]
    %v862 = vld [vmem:[#allocation7 + $0xed0] sm:$0xff]
    %v863 = vld [vmem:[#allocation7 + $0xed8] sm:$0xff]
    %v864 = vld [vmem:[#allocation7 + $0xee0] sm:$0xff]
    %v865 = vld [vmem:[#allocation7 + $0xee8] sm:$0xff]
    %v866 = vld [vmem:[#allocation7 + $0xef0] sm:$0xff]
    %v867 = vld [vmem:[#allocation7 + $0xef8] sm:$0xff]
    %v868 = vld [vmem:[#allocation7 + $0xf00] sm:$0xff]
    %v869 = vld [vmem:[#allocation7 + $0xf08] sm:$0xff]
    %v870 = vld [vmem:[#allocation7 + $0xf10] sm:$0xff]
    %v871 = vld [vmem:[#allocation7 + $0xf18] sm:$0xff]
    %v872 = vld [vmem:[#allocation7 + $0xf20] sm:$0xff]
    %v873 = vld [vmem:[#allocation7 + $0xf28] sm:$0xff]
    %v874 = vld [vmem:[#allocation7 + $0xf30] sm:$0xff]
    %v875 = vld [vmem:[#allocation7 + $0xf38] sm:$0xff]
    %v876 = vld [vmem:[#allocation7 + $0xf40] sm:$0xff]
    %v877 = vld [vmem:[#allocation7 + $0xf48] sm:$0xff]
    %v878 = vld [vmem:[#allocation7 + $0xf50] sm:$0xff]
    %v879 = vld [vmem:[#allocation7 + $0xf58] sm:$0xff]
    %v880 = vld [vmem:[#allocation7 + $0xf60] sm:$0xff]
    %v881 = vld [vmem:[#allocation7 + $0xf68] sm:$0xff]
    %v882 = vld [vmem:[#allocation7 + $0xf70] sm:$0xff]
    %v883 = vld [vmem:[#allocation7 + $0xf78] sm:$0xff]
    %v884 = vld [vmem:[#allocation7 + $0xf80] sm:$0xff]
    %v885 = vld [vmem:[#allocation7 + $0xf88] sm:$0xff]
    %v886 = vld [vmem:[#allocation7 + $0xf90] sm:$0xff]
    %v887 = vld [vmem:[#allocation7 + $0xf98] sm:$0xff]
    %v888 = vld [vmem:[#allocation8] sm:$0xf]
    %v890 = vperm.slane %v888, 0
    %v891 = vperm.slane %v888, 1
    %v892 = vperm.slane %v888, 2
    %v893 = vperm.slane %v888, 3
    %vm898 = vcmask 850944
    %v900 = vsel %vm898, %v386, 0
    %902 = vmatpush.msra.mxu0 %v448
    %903 = vmatpush.msra.mxu0 %v444
    %904 = vmatpush.msra.mxu0 %v440
    %905 = vmatpush.msra.mxu0 %v436
    %906 = vmatpush.msra.mxu0 %v432
    %907 = vmatpush.msra.mxu0 %v428
    %908 = vmatpush.msra.mxu0 %v424
    %909 = vmatpush.msra.mxu0 %v420
    %910 = vmatpush.msra.mxu0 %v416
    %911 = vmatpush.msra.mxu0 %v412
    %912 = vmatpush.msra.mxu0 %v408
    %913 = vmatpush.msra.mxu0 %v404
    %914 = vmatpush.msra.mxu0 %v400
    %915 = vmatpush.msra.mxu0 %v396
    %916 = vmatpush.msra.mxu0 %v392
    %917 = vmatpush.msra.mxu0 %v388
    %918 = vmatmul.f32.gmra.mxu0 %v246
    %v919 = vpop.f32.mrf.mxu0
    %v920 = vadd.f32 %v890, %v919
    %921 = vdwg.mxu0
    %922 = vmatpush.msra.mxu0 %v512
    %923 = vmatpush.msra.mxu0 %v508
    %924 = vmatpush.msra.mxu0 %v504
    %925 = vmatpush.msra.mxu0 %v500
    %926 = vmatpush.msra.mxu0 %v496
    %927 = vmatpush.msra.mxu0 %v492
    %928 = vmatpush.msra.mxu0 %v488
    %929 = vmatpush.msra.mxu0 %v484
    %930 = vmatpush.msra.mxu0 %v480
    %931 = vmatpush.msra.mxu0 %v476
    %932 = vmatpush.msra.mxu0 %v472
    %933 = vmatpush.msra.mxu0 %v468
    %934 = vmatpush.msra.mxu0 %v464
    %935 = vmatpush.msra.mxu0 %v460
    %936 = vmatpush.msra.mxu0 %v456
    %937 = vmatpush.msra.mxu0 %v452
    %938 = vmatmul.f32.gmra.mxu0 %v266
    %v939 = vpop.f32.mrf.mxu0
    %v940 = vadd.f32 %v920, %v939
    %941 = vdwg.mxu0
    %942 = vmatpush.msra.mxu0 %v576
    %943 = vmatpush.msra.mxu0 %v572
    %944 = vmatpush.msra.mxu0 %v568
    %945 = vmatpush.msra.mxu0 %v564
    %946 = vmatpush.msra.mxu0 %v560
    %947 = vmatpush.msra.mxu0 %v556
    %948 = vmatpush.msra.mxu0 %v552
    %949 = vmatpush.msra.mxu0 %v548
    %950 = vmatpush.msra.mxu0 %v544
    %951 = vmatpush.msra.mxu0 %v540
    %952 = vmatpush.msra.mxu0 %v536
    %953 = vmatpush.msra.mxu0 %v532
    %954 = vmatpush.msra.mxu0 %v528
    %955 = vmatpush.msra.mxu0 %v524
    %956 = vmatpush.msra.mxu0 %v520
    %957 = vmatpush.msra.mxu0 %v516
    %958 = vmatmul.f32.gmra.mxu0 %v286
    %v959 = vpop.f32.mrf.mxu0
    %v960 = vadd.f32 %v940, %v959
    %961 = vdwg.mxu0
    %962 = vmatpush.msra.mxu0 %v640
    %963 = vmatpush.msra.mxu0 %v636
    %964 = vmatpush.msra.mxu0 %v632
    %965 = vmatpush.msra.mxu0 %v628
    %966 = vmatpush.msra.mxu0 %v624
    %967 = vmatpush.msra.mxu0 %v620
    %968 = vmatpush.msra.mxu0 %v616
    %969 = vmatpush.msra.mxu0 %v612
    %970 = vmatpush.msra.mxu0 %v608
    %971 = vmatpush.msra.mxu0 %v604
    %972 = vmatpush.msra.mxu0 %v600
    %973 = vmatpush.msra.mxu0 %v596
    %974 = vmatpush.msra.mxu0 %v592
    %975 = vmatpush.msra.mxu0 %v588
    %976 = vmatpush.msra.mxu0 %v584
    %977 = vmatpush.msra.mxu0 %v580
    %978 = vmatmul.f32.gmra.mxu0 %v306
    %v979 = vpop.f32.mrf.mxu0
    %v980 = vadd.f32 %v960, %v979
    %981 = vdwg.mxu0
    %982 = vmatpush.msra.mxu0 %v704
    %983 = vmatpush.msra.mxu0 %v700
    %984 = vmatpush.msra.mxu0 %v696
    %985 = vmatpush.msra.mxu0 %v692
    %986 = vmatpush.msra.mxu0 %v688
    %987 = vmatpush.msra.mxu0 %v684
    %988 = vmatpush.msra.mxu0 %v680
    %989 = vmatpush.msra.mxu0 %v676
    %990 = vmatpush.msra.mxu0 %v672
    %991 = vmatpush.msra.mxu0 %v668
    %992 = vmatpush.msra.mxu0 %v664
    %993 = vmatpush.msra.mxu0 %v660
    %994 = vmatpush.msra.mxu0 %v656
    %995 = vmatpush.msra.mxu0 %v652
    %996 = vmatpush.msra.mxu0 %v648
    %997 = vmatpush.msra.mxu0 %v644
    %998 = vmatmul.f32.gmra.mxu0 %v326
    %v999 = vpop.f32.mrf.mxu0
    %v1000 = vadd.f32 %v980, %v999
    %1001 = vdwg.mxu0
    %1002 = vmatpush.msra.mxu0 %v768
    %1003 = vmatpush.msra.mxu0 %v764
    %1004 = vmatpush.msra.mxu0 %v760
    %1005 = vmatpush.msra.mxu0 %v756
    %1006 = vmatpush.msra.mxu0 %v752
    %1007 = vmatpush.msra.mxu0 %v748
    %1008 = vmatpush.msra.mxu0 %v744
    %1009 = vmatpush.msra.mxu0 %v740
    %1010 = vmatpush.msra.mxu0 %v736
    %1011 = vmatpush.msra.mxu0 %v732
    %1012 = vmatpush.msra.mxu0 %v728
    %1013 = vmatpush.msra.mxu0 %v724
    %1014 = vmatpush.msra.mxu0 %v720
    %1015 = vmatpush.msra.mxu0 %v716
    %1016 = vmatpush.msra.mxu0 %v712
    %1017 = vmatpush.msra.mxu0 %v708
    %1018 = vmatmul.f32.gmra.mxu0 %v346
    %v1019 = vpop.f32.mrf.mxu0
    %v1020 = vadd.f32 %v1000, %v1019
    %1021 = vdwg.mxu0
    %1022 = vmatpush.msra.mxu0 %v832
    %1023 = vmatpush.msra.mxu0 %v828
    %1024 = vmatpush.msra.mxu0 %v824
    %1025 = vmatpush.msra.mxu0 %v820
    %1026 = vmatpush.msra.mxu0 %v816
    %1027 = vmatpush.msra.mxu0 %v812
    %1028 = vmatpush.msra.mxu0 %v808
    %1029 = vmatpush.msra.mxu0 %v804
    %1030 = vmatpush.msra.mxu0 %v800
    %1031 = vmatpush.msra.mxu0 %v796
    %1032 = vmatpush.msra.mxu0 %v792
    %1033 = vmatpush.msra.mxu0 %v788
    %1034 = vmatpush.msra.mxu0 %v784
    %1035 = vmatpush.msra.mxu0 %v780
    %1036 = vmatpush.msra.mxu0 %v776
    %1037 = vmatpush.msra.mxu0 %v772
    %1038 = vmatmul.f32.gmra.mxu0 %v366
    %v1039 = vpop.f32.mrf.mxu0
    %v1040 = vadd.f32 %v1020, %v1039
    %1041 = vdwg.mxu0
    %1042 = vmatpush.msra.mxu0 0.0
    %1043 = vmatpush.msra.mxu0 0.0
    %1044 = vmatpush.msra.mxu0 0.0
    %1045 = vmatpush.msra.mxu0 %v884
    %1046 = vmatpush.msra.mxu0 %v880
    %1047 = vmatpush.msra.mxu0 %v876
    %1048 = vmatpush.msra.mxu0 %v872
    %1049 = vmatpush.msra.mxu0 %v868
    %1050 = vmatpush.msra.mxu0 %v864
    %1051 = vmatpush.msra.mxu0 %v860
    %1052 = vmatpush.msra.mxu0 %v856
    %1053 = vmatpush.msra.mxu0 %v852
    %1054 = vmatpush.msra.mxu0 %v848
    %1055 = vmatpush.msra.mxu0 %v844
    %1056 = vmatpush.msra.mxu0 %v840
    %1057 = vmatpush.msra.mxu0 %v836
    %1058 = vmatmul.f32.gmra.mxu0 %v900
    %v1059 = vpop.f32.mrf.mxu0
    %v1060 = vadd.f32 %v1040, %v1059
    %1061 = vdwg.mxu0
    %1062 = vmatpush.msra.mxu0 %v449
    %1063 = vmatpush.msra.mxu0 %v445
    %1064 = vmatpush.msra.mxu0 %v441
    %1065 = vmatpush.msra.mxu0 %v437
    %1066 = vmatpush.msra.mxu0 %v433
    %1067 = vmatpush.msra.mxu0 %v429
    %1068 = vmatpush.msra.mxu0 %v425
    %1069 = vmatpush.msra.mxu0 %v421
    %1070 = vmatpush.msra.mxu0 %v417
    %1071 = vmatpush.msra.mxu0 %v413
    %1072 = vmatpush.msra.mxu0 %v409
    %1073 = vmatpush.msra.mxu0 %v405
    %1074 = vmatpush.msra.mxu0 %v401
    %1075 = vmatpush.msra.mxu0 %v397
    %1076 = vmatpush.msra.mxu0 %v393
    %1077 = vmatpush.msra.mxu0 %v389
    %1078 = vmatmul.f32.gmra.mxu0 %v246
    %v1079 = vpop.f32.mrf.mxu0
    %v1080 = vadd.f32 %v891, %v1079
    %1081 = vdwg.mxu0
    %1082 = vmatpush.msra.mxu0 %v513
    %1083 = vmatpush.msra.mxu0 %v509
    %1084 = vmatpush.msra.mxu0 %v505
    %1085 = vmatpush.msra.mxu0 %v501
    %1086 = vmatpush.msra.mxu0 %v497
    %1087 = vmatpush.msra.mxu0 %v493
    %1088 = vmatpush.msra.mxu0 %v489
    %1089 = vmatpush.msra.mxu0 %v485
    %1090 = vmatpush.msra.mxu0 %v481
    %1091 = vmatpush.msra.mxu0 %v477
    %1092 = vmatpush.msra.mxu0 %v473
    %1093 = vmatpush.msra.mxu0 %v469
    %1094 = vmatpush.msra.mxu0 %v465
    %1095 = vmatpush.msra.mxu0 %v461
    %1096 = vmatpush.msra.mxu0 %v457
    %1097 = vmatpush.msra.mxu0 %v453
    %1098 = vmatmul.f32.gmra.mxu0 %v266
    %v1099 = vpop.f32.mrf.mxu0
    %v1100 = vadd.f32 %v1080, %v1099
    %1101 = vdwg.mxu0
    %1102 = vmatpush.msra.mxu0 %v577
    %1103 = vmatpush.msra.mxu0 %v573
    %1104 = vmatpush.msra.mxu0 %v569
    %1105 = vmatpush.msra.mxu0 %v565
    %1106 = vmatpush.msra.mxu0 %v561
    %1107 = vmatpush.msra.mxu0 %v557
    %1108 = vmatpush.msra.mxu0 %v553
    %1109 = vmatpush.msra.mxu0 %v549
    %1110 = vmatpush.msra.mxu0 %v545
    %1111 = vmatpush.msra.mxu0 %v541
    %1112 = vmatpush.msra.mxu0 %v537
    %1113 = vmatpush.msra.mxu0 %v533
    %1114 = vmatpush.msra.mxu0 %v529
    %1115 = vmatpush.msra.mxu0 %v525
    %1116 = vmatpush.msra.mxu0 %v521
    %1117 = vmatpush.msra.mxu0 %v517
    %1118 = vmatmul.f32.gmra.mxu0 %v286
    %v1119 = vpop.f32.mrf.mxu0
    %v1120 = vadd.f32 %v1100, %v1119
    %1121 = vdwg.mxu0
    %1122 = vmatpush.msra.mxu0 %v641
    %1123 = vmatpush.msra.mxu0 %v637
    %1124 = vmatpush.msra.mxu0 %v633
    %1125 = vmatpush.msra.mxu0 %v629
    %1126 = vmatpush.msra.mxu0 %v625
    %1127 = vmatpush.msra.mxu0 %v621
    %1128 = vmatpush.msra.mxu0 %v617
    %1129 = vmatpush.msra.mxu0 %v613
    %1130 = vmatpush.msra.mxu0 %v609
    %1131 = vmatpush.msra.mxu0 %v605
    %1132 = vmatpush.msra.mxu0 %v601
    %1133 = vmatpush.msra.mxu0 %v597
    %1134 = vmatpush.msra.mxu0 %v593
    %1135 = vmatpush.msra.mxu0 %v589
    %1136 = vmatpush.msra.mxu0 %v585
    %1137 = vmatpush.msra.mxu0 %v581
    %1138 = vmatmul.f32.gmra.mxu0 %v306
    %v1139 = vpop.f32.mrf.mxu0
    %v1140 = vadd.f32 %v1120, %v1139
    %1141 = vdwg.mxu0
    %1142 = vmatpush.msra.mxu0 %v705
    %1143 = vmatpush.msra.mxu0 %v701
    %1144 = vmatpush.msra.mxu0 %v697
    %1145 = vmatpush.msra.mxu0 %v693
    %1146 = vmatpush.msra.mxu0 %v689
    %1147 = vmatpush.msra.mxu0 %v685
    %1148 = vmatpush.msra.mxu0 %v681
    %1149 = vmatpush.msra.mxu0 %v677
    %1150 = vmatpush.msra.mxu0 %v673
    %1151 = vmatpush.msra.mxu0 %v669
    %1152 = vmatpush.msra.mxu0 %v665
    %1153 = vmatpush.msra.mxu0 %v661
    %1154 = vmatpush.msra.mxu0 %v657
    %1155 = vmatpush.msra.mxu0 %v653
    %1156 = vmatpush.msra.mxu0 %v649
    %1157 = vmatpush.msra.mxu0 %v645
    %1158 = vmatmul.f32.gmra.mxu0 %v326
    %v1159 = vpop.f32.mrf.mxu0
    %v1160 = vadd.f32 %v1140, %v1159
    %1161 = vdwg.mxu0
    %1162 = vmatpush.msra.mxu0 %v769
    %1163 = vmatpush.msra.mxu0 %v765
    %1164 = vmatpush.msra.mxu0 %v761
    %1165 = vmatpush.msra.mxu0 %v757
    %1166 = vmatpush.msra.mxu0 %v753
    %1167 = vmatpush.msra.mxu0 %v749
    %1168 = vmatpush.msra.mxu0 %v745
    %1169 = vmatpush.msra.mxu0 %v741
    %1170 = vmatpush.msra.mxu0 %v737
    %1171 = vmatpush.msra.mxu0 %v733
    %1172 = vmatpush.msra.mxu0 %v729
    %1173 = vmatpush.msra.mxu0 %v725
    %1174 = vmatpush.msra.mxu0 %v721
    %1175 = vmatpush.msra.mxu0 %v717
    %1176 = vmatpush.msra.mxu0 %v713
    %1177 = vmatpush.msra.mxu0 %v709
    %1178 = vmatmul.f32.gmra.mxu0 %v346
    %v1179 = vpop.f32.mrf.mxu0
    %v1180 = vadd.f32 %v1160, %v1179
    %1181 = vdwg.mxu0
    %1182 = vmatpush.msra.mxu0 %v833
    %1183 = vmatpush.msra.mxu0 %v829
    %1184 = vmatpush.msra.mxu0 %v825
    %1185 = vmatpush.msra.mxu0 %v821
    %1186 = vmatpush.msra.mxu0 %v817
    %1187 = vmatpush.msra.mxu0 %v813
    %1188 = vmatpush.msra.mxu0 %v809
    %1189 = vmatpush.msra.mxu0 %v805
    %1190 = vmatpush.msra.mxu0 %v801
    %1191 = vmatpush.msra.mxu0 %v797
    %1192 = vmatpush.msra.mxu0 %v793
    %1193 = vmatpush.msra.mxu0 %v789
    %1194 = vmatpush.msra.mxu0 %v785
    %1195 = vmatpush.msra.mxu0 %v781
    %1196 = vmatpush.msra.mxu0 %v777
    %1197 = vmatpush.msra.mxu0 %v773
    %1198 = vmatmul.f32.gmra.mxu0 %v366
    %v1199 = vpop.f32.mrf.mxu0
    %v1200 = vadd.f32 %v1180, %v1199
    %1201 = vdwg.mxu0
    %1202 = vmatpush.msra.mxu0 0.0
    %1203 = vmatpush.msra.mxu0 0.0
    %1204 = vmatpush.msra.mxu0 0.0
    %1205 = vmatpush.msra.mxu0 %v885
    %1206 = vmatpush.msra.mxu0 %v881
    %1207 = vmatpush.msra.mxu0 %v877
    %1208 = vmatpush.msra.mxu0 %v873
    %1209 = vmatpush.msra.mxu0 %v869
    %1210 = vmatpush.msra.mxu0 %v865
    %1211 = vmatpush.msra.mxu0 %v861
    %1212 = vmatpush.msra.mxu0 %v857
    %1213 = vmatpush.msra.mxu0 %v853
    %1214 = vmatpush.msra.mxu0 %v849
    %1215 = vmatpush.msra.mxu0 %v845
    %1216 = vmatpush.msra.mxu0 %v841
    %1217 = vmatpush.msra.mxu0 %v837
    %1218 = vmatmul.f32.gmra.mxu0 %v900
    %v1219 = vpop.f32.mrf.mxu0
    %v1220 = vadd.f32 %v1200, %v1219
    %1221 = vdwg.mxu0
    %1222 = vmatpush.msra.mxu0 %v450
    %1223 = vmatpush.msra.mxu0 %v446
    %1224 = vmatpush.msra.mxu0 %v442
    %1225 = vmatpush.msra.mxu0 %v438
    %1226 = vmatpush.msra.mxu0 %v434
    %1227 = vmatpush.msra.mxu0 %v430
    %1228 = vmatpush.msra.mxu0 %v426
    %1229 = vmatpush.msra.mxu0 %v422
    %1230 = vmatpush.msra.mxu0 %v418
    %1231 = vmatpush.msra.mxu0 %v414
    %1232 = vmatpush.msra.mxu0 %v410
    %1233 = vmatpush.msra.mxu0 %v406
    %1234 = vmatpush.msra.mxu0 %v402
    %1235 = vmatpush.msra.mxu0 %v398
    %1236 = vmatpush.msra.mxu0 %v394
    %1237 = vmatpush.msra.mxu0 %v390
    %1238 = vmatmul.f32.gmra.mxu0 %v246
    %v1239 = vpop.f32.mrf.mxu0
    %v1240 = vadd.f32 %v892, %v1239
    %1241 = vdwg.mxu0
    %1242 = vmatpush.msra.mxu0 %v514
    %1243 = vmatpush.msra.mxu0 %v510
    %1244 = vmatpush.msra.mxu0 %v506
    %1245 = vmatpush.msra.mxu0 %v502
    %1246 = vmatpush.msra.mxu0 %v498
    %1247 = vmatpush.msra.mxu0 %v494
    %1248 = vmatpush.msra.mxu0 %v490
    %1249 = vmatpush.msra.mxu0 %v486
    %1250 = vmatpush.msra.mxu0 %v482
    %1251 = vmatpush.msra.mxu0 %v478
    %1252 = vmatpush.msra.mxu0 %v474
    %1253 = vmatpush.msra.mxu0 %v470
    %1254 = vmatpush.msra.mxu0 %v466
    %1255 = vmatpush.msra.mxu0 %v462
    %1256 = vmatpush.msra.mxu0 %v458
    %1257 = vmatpush.msra.mxu0 %v454
    %1258 = vmatmul.f32.gmra.mxu0 %v266
    %v1259 = vpop.f32.mrf.mxu0
    %v1260 = vadd.f32 %v1240, %v1259
    %1261 = vdwg.mxu0
    %1262 = vmatpush.msra.mxu0 %v578
    %1263 = vmatpush.msra.mxu0 %v574
    %1264 = vmatpush.msra.mxu0 %v570
    %1265 = vmatpush.msra.mxu0 %v566
    %1266 = vmatpush.msra.mxu0 %v562
    %1267 = vmatpush.msra.mxu0 %v558
    %1268 = vmatpush.msra.mxu0 %v554
    %1269 = vmatpush.msra.mxu0 %v550
    %1270 = vmatpush.msra.mxu0 %v546
    %1271 = vmatpush.msra.mxu0 %v542
    %1272 = vmatpush.msra.mxu0 %v538
    %1273 = vmatpush.msra.mxu0 %v534
    %1274 = vmatpush.msra.mxu0 %v530
    %1275 = vmatpush.msra.mxu0 %v526
    %1276 = vmatpush.msra.mxu0 %v522
    %1277 = vmatpush.msra.mxu0 %v518
    %1278 = vmatmul.f32.gmra.mxu0 %v286
    %v1279 = vpop.f32.mrf.mxu0
    %v1280 = vadd.f32 %v1260, %v1279
    %1281 = vdwg.mxu0
    %1282 = vmatpush.msra.mxu0 %v642
    %1283 = vmatpush.msra.mxu0 %v638
    %1284 = vmatpush.msra.mxu0 %v634
    %1285 = vmatpush.msra.mxu0 %v630
    %1286 = vmatpush.msra.mxu0 %v626
    %1287 = vmatpush.msra.mxu0 %v622
    %1288 = vmatpush.msra.mxu0 %v618
    %1289 = vmatpush.msra.mxu0 %v614
    %1290 = vmatpush.msra.mxu0 %v610
    %1291 = vmatpush.msra.mxu0 %v606
    %1292 = vmatpush.msra.mxu0 %v602
    %1293 = vmatpush.msra.mxu0 %v598
    %1294 = vmatpush.msra.mxu0 %v594
    %1295 = vmatpush.msra.mxu0 %v590
    %1296 = vmatpush.msra.mxu0 %v586
    %1297 = vmatpush.msra.mxu0 %v582
    %1298 = vmatmul.f32.gmra.mxu0 %v306
    %v1299 = vpop.f32.mrf.mxu0
    %v1300 = vadd.f32 %v1280, %v1299
    %1301 = vdwg.mxu0
    %1302 = vmatpush.msra.mxu0 %v706
    %1303 = vmatpush.msra.mxu0 %v702
    %1304 = vmatpush.msra.mxu0 %v698
    %1305 = vmatpush.msra.mxu0 %v694
    %1306 = vmatpush.msra.mxu0 %v690
    %1307 = vmatpush.msra.mxu0 %v686
    %1308 = vmatpush.msra.mxu0 %v682
    %1309 = vmatpush.msra.mxu0 %v678
    %1310 = vmatpush.msra.mxu0 %v674
    %1311 = vmatpush.msra.mxu0 %v670
    %1312 = vmatpush.msra.mxu0 %v666
    %1313 = vmatpush.msra.mxu0 %v662
    %1314 = vmatpush.msra.mxu0 %v658
    %1315 = vmatpush.msra.mxu0 %v654
    %1316 = vmatpush.msra.mxu0 %v650
    %1317 = vmatpush.msra.mxu0 %v646
    %1318 = vmatmul.f32.gmra.mxu0 %v326
    %v1319 = vpop.f32.mrf.mxu0
    %v1320 = vadd.f32 %v1300, %v1319
    %1321 = vdwg.mxu0
    %1322 = vmatpush.msra.mxu0 %v770
    %1323 = vmatpush.msra.mxu0 %v766
    %1324 = vmatpush.msra.mxu0 %v762
    %1325 = vmatpush.msra.mxu0 %v758
    %1326 = vmatpush.msra.mxu0 %v754
    %1327 = vmatpush.msra.mxu0 %v750
    %1328 = vmatpush.msra.mxu0 %v746
    %1329 = vmatpush.msra.mxu0 %v742
    %1330 = vmatpush.msra.mxu0 %v738
    %1331 = vmatpush.msra.mxu0 %v734
    %1332 = vmatpush.msra.mxu0 %v730
    %1333 = vmatpush.msra.mxu0 %v726
    %1334 = vmatpush.msra.mxu0 %v722
    %1335 = vmatpush.msra.mxu0 %v718
    %1336 = vmatpush.msra.mxu0 %v714
    %1337 = vmatpush.msra.mxu0 %v710
    %1338 = vmatmul.f32.gmra.mxu0 %v346
    %v1339 = vpop.f32.mrf.mxu0
    %v1340 = vadd.f32 %v1320, %v1339
    %1341 = vdwg.mxu0
    %1342 = vmatpush.msra.mxu0 %v834
    %1343 = vmatpush.msra.mxu0 %v830
    %1344 = vmatpush.msra.mxu0 %v826
    %1345 = vmatpush.msra.mxu0 %v822
    %1346 = vmatpush.msra.mxu0 %v818
    %1347 = vmatpush.msra.mxu0 %v814
    %1348 = vmatpush.msra.mxu0 %v810
    %1349 = vmatpush.msra.mxu0 %v806
    %1350 = vmatpush.msra.mxu0 %v802
    %1351 = vmatpush.msra.mxu0 %v798
    %1352 = vmatpush.msra.mxu0 %v794
    %1353 = vmatpush.msra.mxu0 %v790
    %1354 = vmatpush.msra.mxu0 %v786
    %1355 = vmatpush.msra.mxu0 %v782
    %1356 = vmatpush.msra.mxu0 %v778
    %1357 = vmatpush.msra.mxu0 %v774
    %1358 = vmatmul.f32.gmra.mxu0 %v366
    %v1359 = vpop.f32.mrf.mxu0
    %v1360 = vadd.f32 %v1340, %v1359
    %1361 = vdwg.mxu0
    %1362 = vmatpush.msra.mxu0 0.0
    %1363 = vmatpush.msra.mxu0 0.0
    %1364 = vmatpush.msra.mxu0 0.0
    %1365 = vmatpush.msra.mxu0 %v886
    %1366 = vmatpush.msra.mxu0 %v882
    %1367 = vmatpush.msra.mxu0 %v878
    %1368 = vmatpush.msra.mxu0 %v874
    %1369 = vmatpush.msra.mxu0 %v870
    %1370 = vmatpush.msra.mxu0 %v866
    %1371 = vmatpush.msra.mxu0 %v862
    %1372 = vmatpush.msra.mxu0 %v858
    %1373 = vmatpush.msra.mxu0 %v854
    %1374 = vmatpush.msra.mxu0 %v850
    %1375 = vmatpush.msra.mxu0 %v846
    %1376 = vmatpush.msra.mxu0 %v842
    %1377 = vmatpush.msra.mxu0 %v838
    %1378 = vmatmul.f32.gmra.mxu0 %v900
    %v1379 = vpop.f32.mrf.mxu0
    %v1380 = vadd.f32 %v1360, %v1379
    %1381 = vdwg.mxu0
    %1382 = vmatpush.msra.mxu0 %v451
    %1383 = vmatpush.msra.mxu0 %v447
    %1384 = vmatpush.msra.mxu0 %v443
    %1385 = vmatpush.msra.mxu0 %v439
    %1386 = vmatpush.msra.mxu0 %v435
    %1387 = vmatpush.msra.mxu0 %v431
    %1388 = vmatpush.msra.mxu0 %v427
    %1389 = vmatpush.msra.mxu0 %v423
    %1390 = vmatpush.msra.mxu0 %v419
    %1391 = vmatpush.msra.mxu0 %v415
    %1392 = vmatpush.msra.mxu0 %v411
    %1393 = vmatpush.msra.mxu0 %v407
    %1394 = vmatpush.msra.mxu0 %v403
    %1395 = vmatpush.msra.mxu0 %v399
    %1396 = vmatpush.msra.mxu0 %v395
    %1397 = vmatpush.msra.mxu0 %v391
    %1398 = vmatmul.f32.gmra.mxu0 %v246
    %v1399 = vpop.f32.mrf.mxu0
    %v1400 = vadd.f32 %v893, %v1399
    %1401 = vdwg.mxu0
    %1402 = vmatpush.msra.mxu0 %v515
    %1403 = vmatpush.msra.mxu0 %v511
    %1404 = vmatpush.msra.mxu0 %v507
    %1405 = vmatpush.msra.mxu0 %v503
    %1406 = vmatpush.msra.mxu0 %v499
    %1407 = vmatpush.msra.mxu0 %v495
    %1408 = vmatpush.msra.mxu0 %v491
    %1409 = vmatpush.msra.mxu0 %v487
    %1410 = vmatpush.msra.mxu0 %v483
    %1411 = vmatpush.msra.mxu0 %v479
    %1412 = vmatpush.msra.mxu0 %v475
    %1413 = vmatpush.msra.mxu0 %v471
    %1414 = vmatpush.msra.mxu0 %v467
    %1415 = vmatpush.msra.mxu0 %v463
    %1416 = vmatpush.msra.mxu0 %v459
    %1417 = vmatpush.msra.mxu0 %v455
    %1418 = vmatmul.f32.gmra.mxu0 %v266
    %v1419 = vpop.f32.mrf.mxu0
    %v1420 = vadd.f32 %v1400, %v1419
    %1421 = vdwg.mxu0
    %1422 = vmatpush.msra.mxu0 %v579
    %1423 = vmatpush.msra.mxu0 %v575
    %1424 = vmatpush.msra.mxu0 %v571
    %1425 = vmatpush.msra.mxu0 %v567
    %1426 = vmatpush.msra.mxu0 %v563
    %1427 = vmatpush.msra.mxu0 %v559
    %1428 = vmatpush.msra.mxu0 %v555
    %1429 = vmatpush.msra.mxu0 %v551
    %1430 = vmatpush.msra.mxu0 %v547
    %1431 = vmatpush.msra.mxu0 %v543
    %1432 = vmatpush.msra.mxu0 %v539
    %1433 = vmatpush.msra.mxu0 %v535
    %1434 = vmatpush.msra.mxu0 %v531
    %1435 = vmatpush.msra.mxu0 %v527
    %1436 = vmatpush.msra.mxu0 %v523
    %1437 = vmatpush.msra.mxu0 %v519
    %1438 = vmatmul.f32.gmra.mxu0 %v286
    %v1439 = vpop.f32.mrf.mxu0
    %v1440 = vadd.f32 %v1420, %v1439
    %1441 = vdwg.mxu0
    %1442 = vmatpush.msra.mxu0 %v643
    %1443 = vmatpush.msra.mxu0 %v639
    %1444 = vmatpush.msra.mxu0 %v635
    %1445 = vmatpush.msra.mxu0 %v631
    %1446 = vmatpush.msra.mxu0 %v627
    %1447 = vmatpush.msra.mxu0 %v623
    %1448 = vmatpush.msra.mxu0 %v619
    %1449 = vmatpush.msra.mxu0 %v615
    %1450 = vmatpush.msra.mxu0 %v611
    %1451 = vmatpush.msra.mxu0 %v607
    %1452 = vmatpush.msra.mxu0 %v603
    %1453 = vmatpush.msra.mxu0 %v599
    %1454 = vmatpush.msra.mxu0 %v595
    %1455 = vmatpush.msra.mxu0 %v591
    %1456 = vmatpush.msra.mxu0 %v587
    %1457 = vmatpush.msra.mxu0 %v583
    %1458 = vmatmul.f32.gmra.mxu0 %v306
    %v1459 = vpop.f32.mrf.mxu0
    %v1460 = vadd.f32 %v1440, %v1459
    %1461 = vdwg.mxu0
    %1462 = vmatpush.msra.mxu0 %v707
    %1463 = vmatpush.msra.mxu0 %v703
    %1464 = vmatpush.msra.mxu0 %v699
    %1465 = vmatpush.msra.mxu0 %v695
    %1466 = vmatpush.msra.mxu0 %v691
    %1467 = vmatpush.msra.mxu0 %v687
    %1468 = vmatpush.msra.mxu0 %v683
    %1469 = vmatpush.msra.mxu0 %v679
    %1470 = vmatpush.msra.mxu0 %v675
    %1471 = vmatpush.msra.mxu0 %v671
    %1472 = vmatpush.msra.mxu0 %v667
    %1473 = vmatpush.msra.mxu0 %v663
    %1474 = vmatpush.msra.mxu0 %v659
    %1475 = vmatpush.msra.mxu0 %v655
    %1476 = vmatpush.msra.mxu0 %v651
    %1477 = vmatpush.msra.mxu0 %v647
    %1478 = vmatmul.f32.gmra.mxu0 %v326
    %v1479 = vpop.f32.mrf.mxu0
    %v1480 = vadd.f32 %v1460, %v1479
    %1481 = vdwg.mxu0
    %1482 = vmatpush.msra.mxu0 %v771
    %1483 = vmatpush.msra.mxu0 %v767
    %1484 = vmatpush.msra.mxu0 %v763
    %1485 = vmatpush.msra.mxu0 %v759
    %1486 = vmatpush.msra.mxu0 %v755
    %1487 = vmatpush.msra.mxu0 %v751
    %1488 = vmatpush.msra.mxu0 %v747
    %1489 = vmatpush.msra.mxu0 %v743
    %1490 = vmatpush.msra.mxu0 %v739
    %1491 = vmatpush.msra.mxu0 %v735
    %1492 = vmatpush.msra.mxu0 %v731
    %1493 = vmatpush.msra.mxu0 %v727
    %1494 = vmatpush.msra.mxu0 %v723
    %1495 = vmatpush.msra.mxu0 %v719
    %1496 = vmatpush.msra.mxu0 %v715
    %1497 = vmatpush.msra.mxu0 %v711
    %1498 = vmatmul.f32.gmra.mxu0 %v346
    %v1499 = vpop.f32.mrf.mxu0
    %v1500 = vadd.f32 %v1480, %v1499
    %1501 = vdwg.mxu0
    %1502 = vmatpush.msra.mxu0 %v835
    %1503 = vmatpush.msra.mxu0 %v831
    %1504 = vmatpush.msra.mxu0 %v827
    %1505 = vmatpush.msra.mxu0 %v823
    %1506 = vmatpush.msra.mxu0 %v819
    %1507 = vmatpush.msra.mxu0 %v815
    %1508 = vmatpush.msra.mxu0 %v811
    %1509 = vmatpush.msra.mxu0 %v807
    %1510 = vmatpush.msra.mxu0 %v803
    %1511 = vmatpush.msra.mxu0 %v799
    %1512 = vmatpush.msra.mxu0 %v795
    %1513 = vmatpush.msra.mxu0 %v791
    %1514 = vmatpush.msra.mxu0 %v787
    %1515 = vmatpush.msra.mxu0 %v783
    %1516 = vmatpush.msra.mxu0 %v779
    %1517 = vmatpush.msra.mxu0 %v775
    %1518 = vmatmul.f32.gmra.mxu0 %v366
    %v1519 = vpop.f32.mrf.mxu0
    %v1520 = vadd.f32 %v1500, %v1519
    %1521 = vdwg.mxu0
    %1522 = vmatpush.msra.mxu0 0.0
    %1523 = vmatpush.msra.mxu0 0.0
    %1524 = vmatpush.msra.mxu0 0.0
    %1525 = vmatpush.msra.mxu0 %v887
    %1526 = vmatpush.msra.mxu0 %v883
    %1527 = vmatpush.msra.mxu0 %v879
    %1528 = vmatpush.msra.mxu0 %v875
    %1529 = vmatpush.msra.mxu0 %v871
    %1530 = vmatpush.msra.mxu0 %v867
    %1531 = vmatpush.msra.mxu0 %v863
    %1532 = vmatpush.msra.mxu0 %v859
    %1533 = vmatpush.msra.mxu0 %v855
    %1534 = vmatpush.msra.mxu0 %v851
    %1535 = vmatpush.msra.mxu0 %v847
    %1536 = vmatpush.msra.mxu0 %v843
    %1537 = vmatpush.msra.mxu0 %v839
    %1538 = vmatmul.f32.gmra.mxu0 %v900
    %v1539 = vpop.f32.mrf.mxu0
    %v1540 = vadd.f32 %v1520, %v1539
    %1541 = vdwg.mxu0
    %vm1542 = vcmp.gt.f32.partialorder %v1060, 0.0
    %vm1543 = vcmp.gt.f32.partialorder %v1220, 0.0
    %vm1544 = vcmp.gt.f32.partialorder %v1380, 0.0
    %vm1545 = vcmp.gt.f32.partialorder %v1540, 0.0
    %v1546 = vmul.f32 %v1060, 0.01
    %v1547 = vmul.f32 %v1220, 0.01
    %v1548 = vmul.f32 %v1380, 0.01
    %v1549 = vmul.f32 %v1540, 0.01
    %v1550 = vsel %vm1542, %v1060, %v1546
    %v1551 = vsel %vm1543, %v1220, %v1547
    %v1552 = vsel %vm1544, %v1380, %v1548
    %v1553 = vsel %vm1545, %v1540, %v1549
    %vm1554 = vcmask 1041408
    %v1555 = vsel %vm1554, %v1550, 0.0
    %v1556 = vrot.slane %v1555, 4
    %v1557 = vadd.f32 %v1555, %v1556
    %v1558 = vrot.slane %v1557, 2
    %v1559 = vadd.f32 %v1557, %v1558
    %v1560 = vrot.slane %v1559, 1
    %v1561 = vadd.f32 %v1559, %v1560
    %v1562 = vsel %vm1554, %v1551, 0.0
    %v1563 = vrot.slane %v1562, 4
    %v1564 = vadd.f32 %v1562, %v1563
    %v1565 = vrot.slane %v1564, 2
    %v1566 = vadd.f32 %v1564, %v1565
    %v1567 = vrot.slane %v1566, 1
    %v1568 = vadd.f32 %v1566, %v1567
    %v1569 = vsel %vm1554, %v1552, 0.0
    %v1570 = vrot.slane %v1569, 4
    %v1571 = vadd.f32 %v1569, %v1570
    %v1572 = vrot.slane %v1571, 2
    %v1573 = vadd.f32 %v1571, %v1572
    %v1574 = vrot.slane %v1573, 1
    %v1575 = vadd.f32 %v1573, %v1574
    %v1576 = vsel %vm1554, %v1553, 0.0
    %v1577 = vrot.slane %v1576, 4
    %v1578 = vadd.f32 %v1576, %v1577
    %v1579 = vrot.slane %v1578, 2
    %v1580 = vadd.f32 %v1578, %v1579
    %v1581 = vrot.slane %v1580, 1
    %v1582 = vadd.f32 %v1580, %v1581
    %v1583 = vrcp.pop 2.0
    %v1584 = vmul.f32 2.0, %v1583
    %v1585 = vsub.f32 1.0, %v1584
    %v1586 = vmul.f32 %v1583, %v1585
    %v1587 = vadd.f32 %v1583, %v1586
    %vm1588 = vweird.f32 %v1583
    %v1589 = vsel %vm1588, %v1583, %v1587
    %v1590 = vmul.f32 %v1561, %v1589
    %v1591 = vmul.f32 %v1568, %v1589
    %v1592 = vmul.f32 %v1575, %v1589
    %v1593 = vmul.f32 %v1582, %v1589
    %v1594 = vsub.f32 %v1550, %v1590
    %v1595 = vsub.f32 %v1551, %v1591
    %v1596 = vsub.f32 %v1552, %v1592
    %v1597 = vsub.f32 %v1553, %v1593
    %v1598 = vmul.f32 %v1594, %v1594
    %v1599 = vmul.f32 %v1595, %v1595
    %v1600 = vmul.f32 %v1596, %v1596
    %v1601 = vmul.f32 %v1597, %v1597
    %v1602 = vsel %vm1554, %v1598, 0.0
    %v1603 = vrot.slane %v1602, 4
    %v1604 = vadd.f32 %v1602, %v1603
    %v1605 = vrot.slane %v1604, 2
    %v1606 = vadd.f32 %v1604, %v1605
    %v1607 = vrot.slane %v1606, 1
    %v1608 = vadd.f32 %v1606, %v1607
    %v1609 = vsel %vm1554, %v1599, 0.0
    %v1610 = vrot.slane %v1609, 4
    %v1611 = vadd.f32 %v1609, %v1610
    %v1612 = vrot.slane %v1611, 2
    %v1613 = vadd.f32 %v1611, %v1612
    %v1614 = vrot.slane %v1613, 1
    %v1615 = vadd.f32 %v1613, %v1614
    %v1616 = vsel %vm1554, %v1600, 0.0
    %v1617 = vrot.slane %v1616, 4
    %v1618 = vadd.f32 %v1616, %v1617
    %v1619 = vrot.slane %v1618, 2
    %v1620 = vadd.f32 %v1618, %v1619
    %v1621 = vrot.slane %v1620, 1
    %v1622 = vadd.f32 %v1620, %v1621
    %v1623 = vsel %vm1554, %v1601, 0.0
    %v1624 = vrot.slane %v1623, 4
    %v1625 = vadd.f32 %v1623, %v1624
    %v1626 = vrot.slane %v1625, 2
    %v1627 = vadd.f32 %v1625, %v1626
    %v1628 = vrot.slane %v1627, 1
    %v1629 = vadd.f32 %v1627, %v1628
    %v1630 = vmul.f32 %v1608, %v1589
    %v1631 = vmul.f32 %v1615, %v1589
    %v1632 = vmul.f32 %v1622, %v1589
    %v1633 = vmul.f32 %v1629, %v1589
    %v1634 = vadd.f32 %v1630, 1e-05
    %v1635 = vadd.f32 %v1631, 1e-05
    %v1636 = vadd.f32 %v1632, 1e-05
    %v1637 = vadd.f32 %v1633, 1e-05
    %v1638 = vrsqrt.pop %v1634
    %v1639 = vmul.f32 %v1638, %v1634
    %v1640 = vmul.f32 %v1639, %v1638
    %v1641 = vmul.f32 0.5, %v1640
    %v1642 = vsub.f32 1.5, %v1641
    %v1643 = vmul.f32 %v1638, %v1642
    %vm1644 = vweird.f32 %v1634
    %vm1645 = vweird.f32 %v1638
    %vm1646 = vmor %vm1644, %vm1645
    %v1647 = vsel %vm1646, %v1638, %v1643
    %v1648 = vrsqrt.pop %v1635
    %v1649 = vmul.f32 %v1648, %v1635
    %v1650 = vmul.f32 %v1649, %v1648
    %v1651 = vmul.f32 0.5, %v1650
    %v1652 = vsub.f32 1.5, %v1651
    %v1653 = vmul.f32 %v1648, %v1652
    %vm1654 = vweird.f32 %v1635
    %vm1655 = vweird.f32 %v1648
    %vm1656 = vmor %vm1654, %vm1655
    %v1657 = vsel %vm1656, %v1648, %v1653
    %v1658 = vrsqrt.pop %v1636
    %v1659 = vmul.f32 %v1658, %v1636
    %v1660 = vmul.f32 %v1659, %v1658
    %v1661 = vmul.f32 0.5, %v1660
    %v1662 = vsub.f32 1.5, %v1661
    %v1663 = vmul.f32 %v1658, %v1662
    %vm1664 = vweird.f32 %v1636
    %vm1665 = vweird.f32 %v1658
    %vm1666 = vmor %vm1664, %vm1665
    %v1667 = vsel %vm1666, %v1658, %v1663
    %v1668 = vrsqrt.pop %v1637
    %v1669 = vmul.f32 %v1668, %v1637
    %v1670 = vmul.f32 %v1669, %v1668
    %v1671 = vmul.f32 0.5, %v1670
    %v1672 = vsub.f32 1.5, %v1671
    %v1673 = vmul.f32 %v1668, %v1672
    %vm1674 = vweird.f32 %v1637
    %vm1675 = vweird.f32 %v1668
    %vm1676 = vmor %vm1674, %vm1675
    %v1677 = vsel %vm1676, %v1668, %v1673
    %v1678 = vmul.f32 %v1594, %v1647
    %v1679 = vmul.f32 %v1595, %v1657
    %v1680 = vmul.f32 %v1596, %v1667
    %v1681 = vmul.f32 %v1597, %v1677
    %v1682 = vld [vmem:[#allocation10] sm:$0xf]
    %v1684 = vperm.slane %v1682, 0
    %v1685 = vperm.slane %v1682, 1
    %v1686 = vperm.slane %v1682, 2
    %v1687 = vperm.slane %v1682, 3
    %v1692 = vmul.f32 %v1678, %v1684
    %v1693 = vmul.f32 %v1679, %v1685
    %v1694 = vmul.f32 %v1680, %v1686
    %v1695 = vmul.f32 %v1681, %v1687
    %v1696 = vld [vmem:[#allocation11] sm:$0xf]
    %v1698 = vperm.slane %v1696, 0
    %v1699 = vperm.slane %v1696, 1
    %v1700 = vperm.slane %v1696, 2
    %v1701 = vperm.slane %v1696, 3
    %v1706 = vadd.f32 %v1692, %v1698
    %v1707 = vadd.f32 %v1693, %v1699
    %v1708 = vadd.f32 %v1694, %v1700
    %v1709 = vadd.f32 %v1695, %v1701
    %v1710 = vld [vmem:[#allocation13] sm:$0xff]
    %v1711 = vld [vmem:[#allocation13 + $0x8] sm:$0xff]
    %v1712 = vld [vmem:[#allocation13 + $0x10] sm:$0xff]
    %v1713 = vld [vmem:[#allocation13 + $0x18] sm:$0xff]
    %v1714 = vld [vmem:[#allocation13 + $0x20] sm:$0xff]
    %v1715 = vld [vmem:[#allocation13 + $0x28] sm:$0xff]
    %v1716 = vld [vmem:[#allocation13 + $0x30] sm:$0xff]
    %v1717 = vld [vmem:[#allocation13 + $0x38] sm:$0xff]
    %v1718 = vld [vmem:[#allocation13 + $0x40] sm:$0xff]
    %v1719 = vld [vmem:[#allocation13 + $0x48] sm:$0xff]
    %v1720 = vld [vmem:[#allocation13 + $0x50] sm:$0xff]
    %v1721 = vld [vmem:[#allocation13 + $0x58] sm:$0xff]
    %v1722 = vld [vmem:[#allocation13 + $0x60] sm:$0xff]
    %v1723 = vld [vmem:[#allocation13 + $0x68] sm:$0xff]
    %v1724 = vld [vmem:[#allocation13 + $0x70] sm:$0xff]
    %v1725 = vld [vmem:[#allocation13 + $0x78] sm:$0xff]
    %v1726 = vld [vmem:[#allocation13 + $0x80] sm:$0xff]
    %v1727 = vld [vmem:[#allocation13 + $0x88] sm:$0xff]
    %v1728 = vld [vmem:[#allocation13 + $0x90] sm:$0xff]
    %v1729 = vld [vmem:[#allocation13 + $0x98] sm:$0xff]
    %v1730 = vld [vmem:[#allocation13 + $0xa0] sm:$0xff]
    %v1731 = vld [vmem:[#allocation13 + $0xa8] sm:$0xff]
    %v1732 = vld [vmem:[#allocation13 + $0xb0] sm:$0xff]
    %v1733 = vld [vmem:[#allocation13 + $0xb8] sm:$0xff]
    %v1734 = vld [vmem:[#allocation13 + $0xc0] sm:$0xff]
    %v1735 = vld [vmem:[#allocation13 + $0xc8] sm:$0xff]
    %v1736 = vld [vmem:[#allocation13 + $0xd0] sm:$0xff]
    %v1737 = vld [vmem:[#allocation13 + $0xd8] sm:$0xff]
    %v1738 = vld [vmem:[#allocation13 + $0xe0] sm:$0xff]
    %v1739 = vld [vmem:[#allocation13 + $0xe8] sm:$0xff]
    %v1740 = vld [vmem:[#allocation13 + $0xf0] sm:$0xff]
    %v1741 = vld [vmem:[#allocation13 + $0xf8] sm:$0xff]
    %v1742 = vld [vmem:[#allocation13 + $0x100] sm:$0xff]
    %v1743 = vld [vmem:[#allocation13 + $0x108] sm:$0xff]
    %v1744 = vld [vmem:[#allocation13 + $0x110] sm:$0xff]
    %v1745 = vld [vmem:[#allocation13 + $0x118] sm:$0xff]
    %v1746 = vld [vmem:[#allocation13 + $0x120] sm:$0xff]
    %v1747 = vld [vmem:[#allocation13 + $0x128] sm:$0xff]
    %v1748 = vld [vmem:[#allocation13 + $0x130] sm:$0xff]
    %v1749 = vld [vmem:[#allocation13 + $0x138] sm:$0xff]
    %v1750 = vld [vmem:[#allocation13 + $0x140] sm:$0xff]
    %v1751 = vld [vmem:[#allocation13 + $0x148] sm:$0xff]
    %v1752 = vld [vmem:[#allocation13 + $0x150] sm:$0xff]
    %v1753 = vld [vmem:[#allocation13 + $0x158] sm:$0xff]
    %v1754 = vld [vmem:[#allocation13 + $0x160] sm:$0xff]
    %v1755 = vld [vmem:[#allocation13 + $0x168] sm:$0xff]
    %v1756 = vld [vmem:[#allocation13 + $0x170] sm:$0xff]
    %v1757 = vld [vmem:[#allocation13 + $0x178] sm:$0xff]
    %v1758 = vld [vmem:[#allocation13 + $0x180] sm:$0xff]
    %v1759 = vld [vmem:[#allocation13 + $0x188] sm:$0xff]
    %v1760 = vld [vmem:[#allocation13 + $0x190] sm:$0xff]
    %v1761 = vld [vmem:[#allocation13 + $0x198] sm:$0xff]
    %v1762 = vld [vmem:[#allocation13 + $0x1a0] sm:$0xff]
    %v1763 = vld [vmem:[#allocation13 + $0x1a8] sm:$0xff]
    %v1764 = vld [vmem:[#allocation13 + $0x1b0] sm:$0xff]
    %v1765 = vld [vmem:[#allocation13 + $0x1b8] sm:$0xff]
    %v1766 = vld [vmem:[#allocation13 + $0x1c0] sm:$0xff]
    %v1767 = vld [vmem:[#allocation13 + $0x1c8] sm:$0xff]
    %v1768 = vld [vmem:[#allocation13 + $0x1d0] sm:$0xff]
    %v1769 = vld [vmem:[#allocation13 + $0x1d8] sm:$0xff]
    %v1770 = vld [vmem:[#allocation13 + $0x1e0] sm:$0xff]
    %v1771 = vld [vmem:[#allocation13 + $0x1e8] sm:$0xff]
    %v1772 = vld [vmem:[#allocation13 + $0x1f0] sm:$0xff]
    %v1773 = vld [vmem:[#allocation13 + $0x1f8] sm:$0xff]
    %v1774 = vld [vmem:[#allocation13 + $0x200] sm:$0xff]
    %v1775 = vld [vmem:[#allocation13 + $0x208] sm:$0xff]
    %v1776 = vld [vmem:[#allocation13 + $0x210] sm:$0xff]
    %v1777 = vld [vmem:[#allocation13 + $0x218] sm:$0xff]
    %v1778 = vld [vmem:[#allocation13 + $0x220] sm:$0xff]
    %v1779 = vld [vmem:[#allocation13 + $0x228] sm:$0xff]
    %v1780 = vld [vmem:[#allocation13 + $0x230] sm:$0xff]
    %v1781 = vld [vmem:[#allocation13 + $0x238] sm:$0xff]
    %v1782 = vld [vmem:[#allocation13 + $0x240] sm:$0xff]
    %v1783 = vld [vmem:[#allocation13 + $0x248] sm:$0xff]
    %v1784 = vld [vmem:[#allocation13 + $0x250] sm:$0xff]
    %v1785 = vld [vmem:[#allocation13 + $0x258] sm:$0xff]
    %v1786 = vld [vmem:[#allocation13 + $0x260] sm:$0xff]
    %v1787 = vld [vmem:[#allocation13 + $0x268] sm:$0xff]
    %v1788 = vld [vmem:[#allocation13 + $0x270] sm:$0xff]
    %v1789 = vld [vmem:[#allocation13 + $0x278] sm:$0xff]
    %v1790 = vld [vmem:[#allocation13 + $0x280] sm:$0xff]
    %v1791 = vld [vmem:[#allocation13 + $0x288] sm:$0xff]
    %v1792 = vld [vmem:[#allocation13 + $0x290] sm:$0xff]
    %v1793 = vld [vmem:[#allocation13 + $0x298] sm:$0xff]
    %v1794 = vld [vmem:[#allocation13 + $0x2a0] sm:$0xff]
    %v1795 = vld [vmem:[#allocation13 + $0x2a8] sm:$0xff]
    %v1796 = vld [vmem:[#allocation13 + $0x2b0] sm:$0xff]
    %v1797 = vld [vmem:[#allocation13 + $0x2b8] sm:$0xff]
    %v1798 = vld [vmem:[#allocation13 + $0x2c0] sm:$0xff]
    %v1799 = vld [vmem:[#allocation13 + $0x2c8] sm:$0xff]
    %v1800 = vld [vmem:[#allocation13 + $0x2d0] sm:$0xff]
    %v1801 = vld [vmem:[#allocation13 + $0x2d8] sm:$0xff]
    %v1802 = vld [vmem:[#allocation13 + $0x2e0] sm:$0xff]
    %v1803 = vld [vmem:[#allocation13 + $0x2e8] sm:$0xff]
    %v1804 = vld [vmem:[#allocation13 + $0x2f0] sm:$0xff]
    %v1805 = vld [vmem:[#allocation13 + $0x2f8] sm:$0xff]
    %v1806 = vld [vmem:[#allocation13 + $0x300] sm:$0xff]
    %v1807 = vld [vmem:[#allocation13 + $0x308] sm:$0xff]
    %v1808 = vld [vmem:[#allocation13 + $0x310] sm:$0xff]
    %v1809 = vld [vmem:[#allocation13 + $0x318] sm:$0xff]
    %v1810 = vld [vmem:[#allocation13 + $0x320] sm:$0xff]
    %v1811 = vld [vmem:[#allocation13 + $0x328] sm:$0xff]
    %v1812 = vld [vmem:[#allocation13 + $0x330] sm:$0xff]
    %v1813 = vld [vmem:[#allocation13 + $0x338] sm:$0xff]
    %v1814 = vld [vmem:[#allocation13 + $0x340] sm:$0xff]
    %v1815 = vld [vmem:[#allocation13 + $0x348] sm:$0xff]
    %v1816 = vld [vmem:[#allocation13 + $0x350] sm:$0xff]
    %v1817 = vld [vmem:[#allocation13 + $0x358] sm:$0xff]
    %v1818 = vld [vmem:[#allocation13 + $0x360] sm:$0xff]
    %v1819 = vld [vmem:[#allocation13 + $0x368] sm:$0xff]
    %v1820 = vld [vmem:[#allocation13 + $0x370] sm:$0xff]
    %v1821 = vld [vmem:[#allocation13 + $0x378] sm:$0xff]
    %v1822 = vld [vmem:[#allocation13 + $0x380] sm:$0xff]
    %v1823 = vld [vmem:[#allocation13 + $0x388] sm:$0xff]
    %v1824 = vld [vmem:[#allocation13 + $0x390] sm:$0xff]
    %v1825 = vld [vmem:[#allocation13 + $0x398] sm:$0xff]
    %v1826 = vld [vmem:[#allocation13 + $0x3a0] sm:$0xff]
    %v1827 = vld [vmem:[#allocation13 + $0x3a8] sm:$0xff]
    %v1828 = vld [vmem:[#allocation13 + $0x3b0] sm:$0xff]
    %v1829 = vld [vmem:[#allocation13 + $0x3b8] sm:$0xff]
    %v1830 = vld [vmem:[#allocation13 + $0x3c0] sm:$0xff]
    %v1831 = vld [vmem:[#allocation13 + $0x3c8] sm:$0xff]
    %v1832 = vld [vmem:[#allocation13 + $0x3d0] sm:$0xff]
    %v1833 = vld [vmem:[#allocation13 + $0x3d8] sm:$0xff]
    %v1834 = vld [vmem:[#allocation13 + $0x3e0] sm:$0xff]
    %v1835 = vld [vmem:[#allocation13 + $0x3e8] sm:$0xff]
    %v1836 = vld [vmem:[#allocation13 + $0x3f0] sm:$0xff]
    %v1837 = vld [vmem:[#allocation13 + $0x3f8] sm:$0xff]
    %v1838 = vld [vmem:[#allocation14] sm:$0x3]
    %v1840 = vperm.slane %v1838, 0
    %v1841 = vperm.slane %v1838, 1
    %1844 = vmatpush.msra.mxu0 %v1740
    %1845 = vmatpush.msra.mxu0 %v1738
    %1846 = vmatpush.msra.mxu0 %v1736
    %1847 = vmatpush.msra.mxu0 %v1734
    %1848 = vmatpush.msra.mxu0 %v1732
    %1849 = vmatpush.msra.mxu0 %v1730
    %1850 = vmatpush.msra.mxu0 %v1728
    %1851 = vmatpush.msra.mxu0 %v1726
    %1852 = vmatpush.msra.mxu0 %v1724
    %1853 = vmatpush.msra.mxu0 %v1722
    %1854 = vmatpush.msra.mxu0 %v1720
    %1855 = vmatpush.msra.mxu0 %v1718
    %1856 = vmatpush.msra.mxu0 %v1716
    %1857 = vmatpush.msra.mxu0 %v1714
    %1858 = vmatpush.msra.mxu0 %v1712
    %1859 = vmatpush.msra.mxu0 %v1710
    %1860 = vmatmul.f32.gmra.mxu0 %v1706
    %v1861 = vpop.f32.mrf.mxu0
    %v1862 = vadd.f32 %v1840, %v1861
    %1863 = vdwg.mxu0
    %1864 = vmatpush.msra.mxu0 %v1772
    %1865 = vmatpush.msra.mxu0 %v1770
    %1866 = vmatpush.msra.mxu0 %v1768
    %1867 = vmatpush.msra.mxu0 %v1766
    %1868 = vmatpush.msra.mxu0 %v1764
    %1869 = vmatpush.msra.mxu0 %v1762
    %1870 = vmatpush.msra.mxu0 %v1760
    %1871 = vmatpush.msra.mxu0 %v1758
    %1872 = vmatpush.msra.mxu0 %v1756
    %1873 = vmatpush.msra.mxu0 %v1754
    %1874 = vmatpush.msra.mxu0 %v1752
    %1875 = vmatpush.msra.mxu0 %v1750
    %1876 = vmatpush.msra.mxu0 %v1748
    %1877 = vmatpush.msra.mxu0 %v1746
    %1878 = vmatpush.msra.mxu0 %v1744
    %1879 = vmatpush.msra.mxu0 %v1742
    %1880 = vmatmul.f32.gmra.mxu0 %v1707
    %v1881 = vpop.f32.mrf.mxu0
    %v1882 = vadd.f32 %v1862, %v1881
    %1883 = vdwg.mxu0
    %1884 = vmatpush.msra.mxu0 %v1804
    %1885 = vmatpush.msra.mxu0 %v1802
    %1886 = vmatpush.msra.mxu0 %v1800
    %1887 = vmatpush.msra.mxu0 %v1798
    %1888 = vmatpush.msra.mxu0 %v1796
    %1889 = vmatpush.msra.mxu0 %v1794
    %1890 = vmatpush.msra.mxu0 %v1792
    %1891 = vmatpush.msra.mxu0 %v1790
    %1892 = vmatpush.msra.mxu0 %v1788
    %1893 = vmatpush.msra.mxu0 %v1786
    %1894 = vmatpush.msra.mxu0 %v1784
    %1895 = vmatpush.msra.mxu0 %v1782
    %1896 = vmatpush.msra.mxu0 %v1780
    %1897 = vmatpush.msra.mxu0 %v1778
    %1898 = vmatpush.msra.mxu0 %v1776
    %1899 = vmatpush.msra.mxu0 %v1774
    %1900 = vmatmul.f32.gmra.mxu0 %v1708
    %v1901 = vpop.f32.mrf.mxu0
    %v1902 = vadd.f32 %v1882, %v1901
    %1903 = vdwg.mxu0
    %1904 = vmatpush.msra.mxu0 %v1836
    %1905 = vmatpush.msra.mxu0 %v1834
    %1906 = vmatpush.msra.mxu0 %v1832
    %1907 = vmatpush.msra.mxu0 %v1830
    %1908 = vmatpush.msra.mxu0 %v1828
    %1909 = vmatpush.msra.mxu0 %v1826
    %1910 = vmatpush.msra.mxu0 %v1824
    %1911 = vmatpush.msra.mxu0 %v1822
    %1912 = vmatpush.msra.mxu0 %v1820
    %1913 = vmatpush.msra.mxu0 %v1818
    %1914 = vmatpush.msra.mxu0 %v1816
    %1915 = vmatpush.msra.mxu0 %v1814
    %1916 = vmatpush.msra.mxu0 %v1812
    %1917 = vmatpush.msra.mxu0 %v1810
    %1918 = vmatpush.msra.mxu0 %v1808
    %1919 = vmatpush.msra.mxu0 %v1806
    %1920 = vmatmul.f32.gmra.mxu0 %v1709
    %v1921 = vpop.f32.mrf.mxu0
    %v1922 = vadd.f32 %v1902, %v1921
    %1923 = vdwg.mxu0
    %1924 = vmatpush.msra.mxu0 %v1741
    %1925 = vmatpush.msra.mxu0 %v1739
    %1926 = vmatpush.msra.mxu0 %v1737
    %1927 = vmatpush.msra.mxu0 %v1735
    %1928 = vmatpush.msra.mxu0 %v1733
    %1929 = vmatpush.msra.mxu0 %v1731
    %1930 = vmatpush.msra.mxu0 %v1729
    %1931 = vmatpush.msra.mxu0 %v1727
    %1932 = vmatpush.msra.mxu0 %v1725
    %1933 = vmatpush.msra.mxu0 %v1723
    %1934 = vmatpush.msra.mxu0 %v1721
    %1935 = vmatpush.msra.mxu0 %v1719
    %1936 = vmatpush.msra.mxu0 %v1717
    %1937 = vmatpush.msra.mxu0 %v1715
    %1938 = vmatpush.msra.mxu0 %v1713
    %1939 = vmatpush.msra.mxu0 %v1711
    %1940 = vmatmul.f32.gmra.mxu0 %v1706
    %v1941 = vpop.f32.mrf.mxu0
    %v1942 = vadd.f32 %v1841, %v1941
    %1943 = vdwg.mxu0
    %1944 = vmatpush.msra.mxu0 %v1773
    %1945 = vmatpush.msra.mxu0 %v1771
    %1946 = vmatpush.msra.mxu0 %v1769
    %1947 = vmatpush.msra.mxu0 %v1767
    %1948 = vmatpush.msra.mxu0 %v1765
    %1949 = vmatpush.msra.mxu0 %v1763
    %1950 = vmatpush.msra.mxu0 %v1761
    %1951 = vmatpush.msra.mxu0 %v1759
    %1952 = vmatpush.msra.mxu0 %v1757
    %1953 = vmatpush.msra.mxu0 %v1755
    %1954 = vmatpush.msra.mxu0 %v1753
    %1955 = vmatpush.msra.mxu0 %v1751
    %1956 = vmatpush.msra.mxu0 %v1749
    %1957 = vmatpush.msra.mxu0 %v1747
    %1958 = vmatpush.msra.mxu0 %v1745
    %1959 = vmatpush.msra.mxu0 %v1743
    %1960 = vmatmul.f32.gmra.mxu0 %v1707
    %v1961 = vpop.f32.mrf.mxu0
    %v1962 = vadd.f32 %v1942, %v1961
    %1963 = vdwg.mxu0
    %1964 = vmatpush.msra.mxu0 %v1805
    %1965 = vmatpush.msra.mxu0 %v1803
    %1966 = vmatpush.msra.mxu0 %v1801
    %1967 = vmatpush.msra.mxu0 %v1799
    %1968 = vmatpush.msra.mxu0 %v1797
    %1969 = vmatpush.msra.mxu0 %v1795
    %1970 = vmatpush.msra.mxu0 %v1793
    %1971 = vmatpush.msra.mxu0 %v1791
    %1972 = vmatpush.msra.mxu0 %v1789
    %1973 = vmatpush.msra.mxu0 %v1787
    %1974 = vmatpush.msra.mxu0 %v1785
    %1975 = vmatpush.msra.mxu0 %v1783
    %1976 = vmatpush.msra.mxu0 %v1781
    %1977 = vmatpush.msra.mxu0 %v1779
    %1978 = vmatpush.msra.mxu0 %v1777
    %1979 = vmatpush.msra.mxu0 %v1775
    %1980 = vmatmul.f32.gmra.mxu0 %v1708
    %v1981 = vpop.f32.mrf.mxu0
    %v1982 = vadd.f32 %v1962, %v1981
    %1983 = vdwg.mxu0
    %1984 = vmatpush.msra.mxu0 %v1837
    %1985 = vmatpush.msra.mxu0 %v1835
    %1986 = vmatpush.msra.mxu0 %v1833
    %1987 = vmatpush.msra.mxu0 %v1831
    %1988 = vmatpush.msra.mxu0 %v1829
    %1989 = vmatpush.msra.mxu0 %v1827
    %1990 = vmatpush.msra.mxu0 %v1825
    %1991 = vmatpush.msra.mxu0 %v1823
    %1992 = vmatpush.msra.mxu0 %v1821
    %1993 = vmatpush.msra.mxu0 %v1819
    %1994 = vmatpush.msra.mxu0 %v1817
    %1995 = vmatpush.msra.mxu0 %v1815
    %1996 = vmatpush.msra.mxu0 %v1813
    %1997 = vmatpush.msra.mxu0 %v1811
    %1998 = vmatpush.msra.mxu0 %v1809
    %1999 = vmatpush.msra.mxu0 %v1807
    %2000 = vmatmul.f32.gmra.mxu0 %v1709
    %v2001 = vpop.f32.mrf.mxu0
    %v2002 = vadd.f32 %v1982, %v2001
    %2003 = vdwg.mxu0
    %vm2004 = vcmp.gt.f32.partialorder %v1922, 0.0
    %vm2005 = vcmp.gt.f32.partialorder %v2002, 0.0
    %v2006 = vmul.f32 %v1922, 0.01
    %v2007 = vmul.f32 %v2002, 0.01
    %v2008 = vsel %vm2004, %v1922, %v2006
    %v2009 = vsel %vm2005, %v2002, %v2007
    %v2010 = vld [vmem:[%s9] sm:$0xff]
    %v2011 = vld [vmem:[%s9 + $0x8] sm:$0xff]
    %v2012 = vld [vmem:[%s9 + $0x10] sm:$0xff]
    %v2013 = vld [vmem:[%s9 + $0x18] sm:$0xff]
    %v2014 = vld [vmem:[%s9 + $0x20] sm:$0xff]
    %v2015 = vld [vmem:[%s9 + $0x28] sm:$0xff]
    %v2016 = vld [vmem:[%s9 + $0x30] sm:$0xff]
    %v2017 = vld [vmem:[%s9 + $0x38] sm:$0xff]
    %v2018 = vld [vmem:[%s9 + $0x40] sm:$0xff]
    %v2019 = vld [vmem:[%s9 + $0x48] sm:$0xff]
    %v2020 = vld [vmem:[%s9 + $0x50] sm:$0xff]
    %v2021 = vld [vmem:[%s9 + $0x58] sm:$0xff]
    %v2022 = vld [vmem:[%s9 + $0x60] sm:$0xff]
    %v2023 = vld [vmem:[%s9 + $0x68] sm:$0xff]
    %v2024 = vld [vmem:[%s9 + $0x70] sm:$0xff]
    %v2025 = vld [vmem:[%s9 + $0x78] sm:$0xff]
    %v2026 = vld [vmem:[%s9 + $0x80] sm:$0xff]
    %v2027 = vld [vmem:[%s9 + $0x88] sm:$0xff]
    %v2028 = vld [vmem:[%s9 + $0x90] sm:$0xff]
    %v2029 = vld [vmem:[%s9 + $0x98] sm:$0xff]
    %v2030 = vld [vmem:[%s9 + $0xa0] sm:$0xff]
    %v2031 = vld [vmem:[%s9 + $0xa8] sm:$0xff]
    %v2032 = vld [vmem:[%s9 + $0xb0] sm:$0xff]
    %v2033 = vld [vmem:[%s9 + $0xb8] sm:$0xff]
    %v2034 = vld [vmem:[%s9 + $0xc0] sm:$0xff]
    %v2035 = vld [vmem:[%s9 + $0xc8] sm:$0xff]
    %v2036 = vld [vmem:[%s9 + $0xd0] sm:$0xff]
    %v2037 = vld [vmem:[%s9 + $0xd8] sm:$0xff]
    %v2038 = vld [vmem:[%s9 + $0xe0] sm:$0xff]
    %v2039 = vld [vmem:[%s9 + $0xe8] sm:$0xff]
    %v2040 = vld [vmem:[%s9 + $0xf0] sm:$0xff]
    %v2041 = vld [vmem:[%s9 + $0xf8] sm:$0xff]
    %v2042 = vld [vmem:[#allocation16] sm:$0x1]
    %v2044 = vperm.slane %v2042, 0
    %2046 = vmatpush.msra.mxu0 %v2025
    %2047 = vmatpush.msra.mxu0 %v2024
    %2048 = vmatpush.msra.mxu0 %v2023
    %2049 = vmatpush.msra.mxu0 %v2022
    %2050 = vmatpush.msra.mxu0 %v2021
    %2051 = vmatpush.msra.mxu0 %v2020
    %2052 = vmatpush.msra.mxu0 %v2019
    %2053 = vmatpush.msra.mxu0 %v2018
    %2054 = vmatpush.msra.mxu0 %v2017
    %2055 = vmatpush.msra.mxu0 %v2016
    %2056 = vmatpush.msra.mxu0 %v2015
    %2057 = vmatpush.msra.mxu0 %v2014
    %2058 = vmatpush.msra.mxu0 %v2013
    %2059 = vmatpush.msra.mxu0 %v2012
    %2060 = vmatpush.msra.mxu0 %v2011
    %2061 = vmatpush.msra.mxu0 %v2010
    %2062 = vmatmul.f32.gmra.mxu0 %v2008
    %v2063 = vpop.f32.mrf.mxu0
    %v2064 = vadd.f32 %v2044, %v2063
    %2065 = vdwg.mxu0
    %2066 = vmatpush.msra.mxu0 %v2041
    %2067 = vmatpush.msra.mxu0 %v2040
    %2068 = vmatpush.msra.mxu0 %v2039
    %2069 = vmatpush.msra.mxu0 %v2038
    %2070 = vmatpush.msra.mxu0 %v2037
    %2071 = vmatpush.msra.mxu0 %v2036
    %2072 = vmatpush.msra.mxu0 %v2035
    %2073 = vmatpush.msra.mxu0 %v2034
    %2074 = vmatpush.msra.mxu0 %v2033
    %2075 = vmatpush.msra.mxu0 %v2032
    %2076 = vmatpush.msra.mxu0 %v2031
    %2077 = vmatpush.msra.mxu0 %v2030
    %2078 = vmatpush.msra.mxu0 %v2029
    %2079 = vmatpush.msra.mxu0 %v2028
    %2080 = vmatpush.msra.mxu0 %v2027
    %2081 = vmatpush.msra.mxu0 %v2026
    %2082 = vmatmul.f32.gmra.mxu0 %v2009
    %v2083 = vpop.f32.mrf.mxu0
    %v2084 = vadd.f32 %v2064, %v2083
    %2085 = vdwg.mxu0
    %vm2086 = vcmask 9216
    %v2087 = vsel %vm2086, %v2084, -inf
    %2088 = vmax.xlane.f32.xlu0 %v2087
    %v2089 = vpop.xlane.xlu0 %2088
    %v2090 = vsub.f32 %v2084, %v2089
    %v2091 = vmul.f32 %v2090, 1.442695
    %v2092 = vpow.pop %v2091
    %v2093 = vsel %vm2086, %v2092, 0.0
    %2094 = vadd.xlane.f32.xlu0 %v2093
    %v2095 = vpop.xlane.xlu0 %2094
    %v2096 = vrcp.pop %v2095
    %v2097 = vmul.f32 %v2095, %v2096
    %v2098 = vsub.f32 1.0, %v2097
    %v2099 = vmul.f32 %v2096, %v2098
    %v2100 = vadd.f32 %v2096, %v2099
    %vm2101 = vweird.f32 %v2095
    %vm2102 = vweird.f32 %v2096
    %vm2103 = vmor %vm2101, %vm2102
    %v2104 = vsel %vm2103, %v2096, %v2100
    %v2105 = vand.u32 2147483647, %v2095
    %vm2106 = vcmp.eq.f32.partialorder %v2105, 8.507059e+37
    %v2107 = vand.u32 %v2095, 2147483648
    %v2108 = vor.u32 1.1754944e-38, %v2107
    %v2109 = vsel %vm2106, %v2108, %v2104
    %v2110 = vmul.f32 %v2092, %v2109
    %2111 = vst.msk [vmem:[#allocation17] sm:$0x3] %vm2086, %v2110
    // Predicated region
    $region82: #{discriminator_forward.3} parent=1 // pred_check
      _
    $region83: #{discriminator_forward.3} parent=1 // pred_check_branch
      %2113 = sbr.rel (0) target = $region85
    $region84: #{discriminator_forward.3} parent=1 // pred_region
      %2115 = vsyncadd [#allocation4], 0
      %s2117 = sshll.u32 [#allocation17], 4
      %s2118 = int_to_ptr.vmem [resolvable:$true] %s2117
      %s2119 = sshll.u32 %s11, 4
      %s2120 = int_to_ptr.hbm [resolvable:$true] %s2119
      %2122 = dma.vmem_to_hbm [thread:$0]  %s2118, 32, %s2120, [#allocation4]
    $region85: #{discriminator_forward.3} parent=1 // pred_fallthru
      _
    // Predicated region
    $region86: #{discriminator_forward.3} parent=1 // pred_check
      _
    $region87: #{discriminator_forward.3} parent=1 // pred_check_branch
      %2124 = sbr.rel (0) target = $region89
    $region88: #{discriminator_forward.3} parent=1 // pred_region
      %2126 = dma.done [#allocation4], 32
    $region89: #{discriminator_forward.3} parent=1 // pred_fallthru
      _
    %2127 = vsyncpa [#allocation3], 1
    %2128 = vsyncpa [#allocation6], 1
    %2129 = vsyncpa [#allocation9], 1
    %2130 = vsyncpa [#allocation12], 1
    %2131 = vsyncpa [#allocation15], 1
    %2132 = vsyncpa [#allocation4], 1

</llo_original>
